<compile_context>
chip_gen: v7x
topology: tpu7x:2x2x1
jax: 0.10.0
libtpu: 0.0.40
codegen_flags: <defaults>
</compile_context>

<pallas_src>
import functools

import jax
import jax.numpy as jnp
from jax.experimental import pallas as pl
from jax.experimental.pallas import tpu as pltpu


def _round_up(x, m):
    return ((x + m - 1) // m) * m


_KPAD = 16  # bf16 sublane packing for the contracting dimension


# ---------------------------------------------------------------------------
# Pallas kernel: fused  out = act(A @ B + bias)   (bias broadcasts over out)
# ---------------------------------------------------------------------------
def _gemm_bias_act_kernel(a_ref, b_ref, bias_ref, o_ref, *, relu):
    acc = jnp.dot(a_ref[...], b_ref[...], preferred_element_type=jnp.float32)
    acc = acc + bias_ref[...]
    if relu:
        acc = jnp.maximum(acc, 0.0)
    o_ref[...] = acc.astype(o_ref.dtype)


def gemm_bias_act(a, b, bias, *, relu, n_blocks=1):
    """out(M, N) = act(a(M, K) @ b(K, N) + bias), blocked along N (lane dim)."""
    M, K = a.shape
    K2, N = b.shape
    assert K == K2 and N % n_blocks == 0
    nb = N // n_blocks
    assert n_blocks == 1 or nb % 128 == 0  # aligned blocks when splitting lanes

    return pl.pallas_call(
        functools.partial(_gemm_bias_act_kernel, relu=relu),
        out_shape=jax.ShapeDtypeStruct((M, N), jnp.float32),
        grid_spec=pltpu.PrefetchScalarGridSpec(
            num_scalar_prefetch=0,
            grid=(n_blocks,),
            in_specs=[
                pl.BlockSpec((M, K), lambda i: (0, 0)),    # small weight / LHS
                pl.BlockSpec((K, nb), lambda i: (0, i)),   # lane-blocked RHS
                pl.BlockSpec(bias.shape, lambda i: (0, 0)),
            ],
            out_specs=pl.BlockSpec((M, nb), lambda i: (0, i)),
        ),
        compiler_params=pltpu.CompilerParams(
            dimension_semantics=("parallel",)),
    )(a, b, bias)


# ---------------------------------------------------------------------------
# im2col in the transposed layout: (C, B, L_in) -> patches^T (C*K, B*L_out)
# built from K strided tap-slices (no gather, no big transpose), cast to bf16.
# ---------------------------------------------------------------------------
def _im2col_T(h_cbl, ksize, stride, *, m_align=1):
    C, B, L_in = h_cbl.shape
    L_out = (L_in - ksize) // stride + 1
    span = stride * (L_out - 1) + 1
    h_cbl = h_cbl.astype(jnp.bfloat16)
    taps = [h_cbl[:, :, k:k + span:stride] for k in range(ksize)]  # (C,B,L_out)
    p = jnp.stack(taps, axis=1).reshape(C * ksize, B * L_out)       # (C*K, B*L_out)
    kp = _round_up(C * ksize, _KPAD)
    mp = _round_up(B * L_out, m_align)
    p = jnp.pad(p, ((0, kp - C * ksize), (0, mp - B * L_out)))
    return p, L_out


# ---------------------------------------------------------------------------
# Parameters: PyTorch-style init + one-time (hoisted) kernel-layout prep
# ---------------------------------------------------------------------------
def init_params(key):
    def uinit(k, shape, fan_in):
        bound = 1.0 / jnp.sqrt(fan_in)
        return jax.random.uniform(k, shape, jnp.float32, -bound, bound)

    ks = jax.random.split(key, 8)
    return {
        "w1": uinit(ks[0], (20, 2, 13), 2 * 13),   "b1": uinit(ks[1], (20,), 2 * 13),
        "w2": uinit(ks[2], (40, 20, 11), 20 * 11), "b2": uinit(ks[3], (40,), 20 * 11),
        "w3": uinit(ks[4], (20, 40, 9), 40 * 9),   "b3": uinit(ks[5], (20,), 40 * 9),
        "wl": uinit(ks[6], (3, 1280), 1280),       "bl": uinit(ks[7], (3,), 1280),
    }


def prepare_params(params):
    """Hoist reshape / zero-pad / transpose / bf16 cast out of the forward path."""
    def prep_conv(w, b):
        c_out, c_in, k = w.shape
        kdim = c_in * k
        kp = _round_up(kdim, _KPAD)
        wmat = jnp.zeros((c_out, kp), jnp.float32).at[:, :kdim].set(
            w.reshape(c_out, kdim))
        return wmat.astype(jnp.bfloat16), b.reshape(c_out, 1).astype(jnp.float32)

    w1, b1 = prep_conv(params["w1"], params["b1"])
    w2, b2 = prep_conv(params["w2"], params["b2"])
    w3, b3 = prep_conv(params["w3"], params["b3"])
    return {
        "w1": w1, "b1": b1, "w2": w2, "b2": b2, "w3": w3, "b3": b3,
        "wl_t": params["wl"].T.astype(jnp.bfloat16),          # (1280, 3)
        "bl": params["bl"].reshape(1, 3).astype(jnp.float32),
    }


# ---------------------------------------------------------------------------
# MyDSPNet forward
# ---------------------------------------------------------------------------
@jax.jit
def my_dsp_net_forward(prep, x):
    B = x.shape[0]
    h = jnp.transpose(x, (1, 0, 2))                       # (C_in, B, L) once

    # conv1 + ReLU: 2 "parallel" lane blocks so both v7x TensorCores get work
    p1, l1 = _im2col_T(h, 13, 7, m_align=256)
    h1 = gemm_bias_act(prep["w1"], p1, prep["b1"], relu=True, n_blocks=2)
    h1 = h1[:, :B * l1].reshape(20, B, l1)

    # conv2 + ReLU (single lane-dense block)
    p2, l2 = _im2col_T(h1, 11, 7)
    h2 = gemm_bias_act(prep["w2"], p2, prep["b2"], relu=True)
    h2 = h2[:, :B * l2].reshape(40, B, l2)

    # conv3 + ReLU (single lane-dense block)
    p3, l3 = _im2col_T(h2, 9, 5)
    h3 = gemm_bias_act(prep["w3"], p3, prep["b3"], relu=True)
    h3 = h3[:, :B * l3]

    # flatten (torch .view(B, -1): channel-major) + Linear head, no 256x128 pads
    flat = h3.reshape(20, B, l3).transpose(1, 0, 2).reshape(B, 20 * l3)
    mh = _round_up(B, 8)
    flat = jnp.pad(flat, ((0, mh - B), (0, 0))).astype(jnp.bfloat16)
    out = gemm_bias_act(flat, prep["wl_t"], prep["bl"], relu=False)
    return out[:B]


# ---------------------------------------------------------------------------
# Pure-JAX f32 reference (for correctness cross-check)
# ---------------------------------------------------------------------------
def _ref_conv1d_relu(x, w, b, stride):
    y = jax.lax.conv_general_dilated(
        x, w, window_strides=(stride,), padding="VALID",
        dimension_numbers=("NCH", "OIH", "NCH"),
        precision=jax.lax.Precision.HIGHEST)
    return jax.nn.relu(y + b[None, :, None])


def reference_forward(params, x):
    h = _ref_conv1d_relu(x, params["w1"], params["b1"], 7)
    h = _ref_conv1d_relu(h, params["w2"], params["b2"], 7)
    h = _ref_conv1d_relu(h, params["w3"], params["b3"], 5)
    flat = h.reshape(h.shape[0], -1)
    return flat @ params["wl"].T + params["bl"]


if __name__ == "__main__":
    key = jax.random.PRNGKey(0)
    k_params, k_x = jax.random.split(key)

    B = 2
    L0 = 15910  # smallest input length consistent with Linear(1280, 3): 20 * 64 = 1280
    x = jax.random.normal(k_x, (B, 2, L0), jnp.float32)

    params = init_params(k_params)
    prep = prepare_params(params)

    out = jax.block_until_ready(my_dsp_net_forward(prep, x))
    assert out.shape == (B, 3), out.shape

    ref = jax.block_until_ready(reference_forward(params, x))
    # Kernel uses bf16 operands with f32 accumulation; reference is full f32
    # at HIGHEST precision, so allow a modest tolerance.
    assert jnp.allclose(out, ref, rtol=2e-2, atol=2e-2), (
        "Pallas output mismatch vs reference")

    print("KERNEL_OK")
</pallas_src>

<mosaic_0001>
module attributes {stable_mosaic.version = 11 : i64} {
  func.func @_gemm_bias_act_kernel(%arg0: i32, %arg1: memref<20x32xbf16, #tpu.memory_space<vmem>>, %arg2: memref<32x2304xbf16, #tpu.memory_space<vmem>>, %arg3: memref<20x1xf32, #tpu.memory_space<vmem>>, %arg4: memref<20x2304xf32, #tpu.memory_space<vmem>>) attributes {dimension_semantics = [#tpu.dimension_semantics<parallel>], iteration_bounds = array<i64: 2>, scalar_prefetch = 0 : i64, scratch_operands = 0 : i64, tpu.core_type = #tpu.core_type<tc>, window_params = [{pipeline_mode = #tpu.pipeline_mode<synchronous>, transform_indices = @transform_0, window_bounds = array<i64: 20, 32>}, {transform_indices = @transform_1, window_bounds = array<i64: 32, 2304>}, {pipeline_mode = #tpu.pipeline_mode<synchronous>, transform_indices = @transform_2, window_bounds = array<i64: 20, 1>}, {transform_indices = @transform_3, window_bounds = array<i64: 20, 2304>}]} {
    %c0 = arith.constant 0 : index
    %c0_0 = arith.constant 0 : index
    %0 = vector.load %arg1[%c0, %c0_0] : memref<20x32xbf16, #tpu.memory_space<vmem>>, vector<20x32xbf16>
    %c0_1 = arith.constant 0 : index
    %c0_2 = arith.constant 0 : index
    %1 = vector.load %arg2[%c0_1, %c0_2] : memref<32x2304xbf16, #tpu.memory_space<vmem>>, vector<32x2304xbf16>
    %cst = arith.constant dense<0.000000e+00> : vector<20x2304xf32>
    %2 = tpu.matmul %0, %1, %cst {dimension_numbers = #tpu.dot_dimension_numbers<[1], [0], [0], [1], [0, 0, 1, 1], [], []>} : vector<20x32xbf16>, vector<32x2304xbf16>, vector<20x2304xf32> -> vector<20x2304xf32>
    %c0_3 = arith.constant 0 : index
    %c0_4 = arith.constant 0 : index
    %3 = vector.load %arg3[%c0_3, %c0_4] : memref<20x1xf32, #tpu.memory_space<vmem>>, vector<20x1xf32>
    %4 = vector.broadcast %3 : vector<20x1xf32> to vector<20x2304xf32>
    %5 = arith.addf %2, %4 : vector<20x2304xf32>
    %cst_5 = arith.constant 0.000000e+00 : f32
    %6 = vector.broadcast %cst_5 : f32 to vector<20x2304xf32>
    %7 = arith.maximumf %5, %6 : vector<20x2304xf32>
    %c0_6 = arith.constant 0 : index
    %c0_7 = arith.constant 0 : index
    %8 = vector.load %arg4[%c0_6, %c0_7] : memref<20x2304xf32, #tpu.memory_space<vmem>>, vector<20x2304xf32>
    tpu.vector_store %arg4[%c0_6, %c0_7], %7 {strides = array<i32>} : memref<20x2304xf32, #tpu.memory_space<vmem>>, vector<20x2304xf32>,
    return
  }
  func.func @transform_0(%arg0: i32) -> (i32, i32) {
    %c0_i32 = arith.constant 0 : i32
    %c0_i32_0 = arith.constant 0 : i32
    %c0_i32_1 = arith.constant 0 : i32
    return %c0_i32, %c0_i32_0 : i32, i32
  }
  func.func @transform_1(%arg0: i32) -> (i32, i32) {
    %c0_i32 = arith.constant 0 : i32
    %c0_i32_0 = arith.constant 0 : i32
    return %c0_i32, %arg0 : i32, i32
  }
  func.func @transform_2(%arg0: i32) -> (i32, i32) {
    %c0_i32 = arith.constant 0 : i32
    %c0_i32_0 = arith.constant 0 : i32
    %c0_i32_1 = arith.constant 0 : i32
    return %c0_i32, %c0_i32_0 : i32, i32
  }
  func.func @transform_3(%arg0: i32) -> (i32, i32) {
    %c0_i32 = arith.constant 0 : i32
    %c0_i32_0 = arith.constant 0 : i32
    return %c0_i32, %arg0 : i32, i32
  }
}

module attributes {stable_mosaic.version = 11 : i64} {
  func.func @_gemm_bias_act_kernel(%arg0: i32, %arg1: memref<40x224xbf16, #tpu.memory_space<vmem>>, %arg2: memref<224x648xbf16, #tpu.memory_space<vmem>>, %arg3: memref<40x1xf32, #tpu.memory_space<vmem>>, %arg4: memref<40x648xf32, #tpu.memory_space<vmem>>) attributes {dimension_semantics = [#tpu.dimension_semantics<parallel>], iteration_bounds = array<i64: 1>, scalar_prefetch = 0 : i64, scratch_operands = 0 : i64, tpu.core_type = #tpu.core_type<tc>, window_params = [{pipeline_mode = #tpu.pipeline_mode<synchronous>, transform_indices = @transform_0, window_bounds = array<i64: 40, 224>}, {transform_indices = @transform_1, window_bounds = array<i64: 224, 648>}, {pipeline_mode = #tpu.pipeline_mode<synchronous>, transform_indices = @transform_2, window_bounds = array<i64: 40, 1>}, {transform_indices = @transform_3, window_bounds = array<i64: 40, 648>}]} {
    %c0 = arith.constant 0 : index
    %c0_0 = arith.constant 0 : index
    %0 = vector.load %arg1[%c0, %c0_0] : memref<40x224xbf16, #tpu.memory_space<vmem>>, vector<40x224xbf16>
    %c0_1 = arith.constant 0 : index
    %c0_2 = arith.constant 0 : index
    %1 = vector.load %arg2[%c0_1, %c0_2] : memref<224x648xbf16, #tpu.memory_space<vmem>>, vector<224x648xbf16>
    %cst = arith.constant dense<0.000000e+00> : vector<40x648xf32>
    %2 = tpu.matmul %0, %1, %cst {dimension_numbers = #tpu.dot_dimension_numbers<[1], [0], [0], [1], [0, 0, 1, 1], [], []>} : vector<40x224xbf16>, vector<224x648xbf16>, vector<40x648xf32> -> vector<40x648xf32>
    %c0_3 = arith.constant 0 : index
    %c0_4 = arith.constant 0 : index
    %3 = vector.load %arg3[%c0_3, %c0_4] : memref<40x1xf32, #tpu.memory_space<vmem>>, vector<40x1xf32>
    %4 = vector.broadcast %3 : vector<40x1xf32> to vector<40x648xf32>
    %5 = arith.addf %2, %4 : vector<40x648xf32>
    %cst_5 = arith.constant 0.000000e+00 : f32
    %6 = vector.broadcast %cst_5 : f32 to vector<40x648xf32>
    %7 = arith.maximumf %5, %6 : vector<40x648xf32>
    %c0_6 = arith.constant 0 : index
    %c0_7 = arith.constant 0 : index
    %8 = vector.load %arg4[%c0_6, %c0_7] : memref<40x648xf32, #tpu.memory_space<vmem>>, vector<40x648xf32>
    tpu.vector_store %arg4[%c0_6, %c0_7], %7 {strides = array<i32>} : memref<40x648xf32, #tpu.memory_space<vmem>>, vector<40x648xf32>,
    return
  }
  func.func @transform_0(%arg0: i32) -> (i32, i32) {
    %c0_i32 = arith.constant 0 : i32
    %c0_i32_0 = arith.constant 0 : i32
    %c0_i32_1 = arith.constant 0 : i32
    return %c0_i32, %c0_i32_0 : i32, i32
  }
  func.func @transform_1(%arg0: i32) -> (i32, i32) {
    %c0_i32 = arith.constant 0 : i32
    %c0_i32_0 = arith.constant 0 : i32
    return %c0_i32, %arg0 : i32, i32
  }
  func.func @transform_2(%arg0: i32) -> (i32, i32) {
    %c0_i32 = arith.constant 0 : i32
    %c0_i32_0 = arith.constant 0 : i32
    %c0_i32_1 = arith.constant 0 : i32
    return %c0_i32, %c0_i32_0 : i32, i32
  }
  func.func @transform_3(%arg0: i32) -> (i32, i32) {
    %c0_i32 = arith.constant 0 : i32
    %c0_i32_0 = arith.constant 0 : i32
    return %c0_i32, %arg0 : i32, i32
  }
}

module attributes {stable_mosaic.version = 11 : i64} {
  func.func @_gemm_bias_act_kernel(%arg0: i32, %arg1: memref<20x368xbf16, #tpu.memory_space<vmem>>, %arg2: memref<368x128xbf16, #tpu.memory_space<vmem>>, %arg3: memref<20x1xf32, #tpu.memory_space<vmem>>, %arg4: memref<20x128xf32, #tpu.memory_space<vmem>>) attributes {dimension_semantics = [#tpu.dimension_semantics<parallel>], iteration_bounds = array<i64: 1>, scalar_prefetch = 0 : i64, scratch_operands = 0 : i64, tpu.core_type = #tpu.core_type<tc>, window_params = [{pipeline_mode = #tpu.pipeline_mode<synchronous>, transform_indices = @transform_0, window_bounds = array<i64: 20, 368>}, {transform_indices = @transform_1, window_bounds = array<i64: 368, 128>}, {pipeline_mode = #tpu.pipeline_mode<synchronous>, transform_indices = @transform_2, window_bounds = array<i64: 20, 1>}, {transform_indices = @transform_3, window_bounds = array<i64: 20, 128>}]} {
    %c0 = arith.constant 0 : index
    %c0_0 = arith.constant 0 : index
    %0 = vector.load %arg1[%c0, %c0_0] : memref<20x368xbf16, #tpu.memory_space<vmem>>, vector<20x368xbf16>
    %c0_1 = arith.constant 0 : index
    %c0_2 = arith.constant 0 : index
    %1 = vector.load %arg2[%c0_1, %c0_2] : memref<368x128xbf16, #tpu.memory_space<vmem>>, vector<368x128xbf16>
    %cst = arith.constant dense<0.000000e+00> : vector<20x128xf32>
    %2 = tpu.matmul %0, %1, %cst {dimension_numbers = #tpu.dot_dimension_numbers<[1], [0], [0], [1], [0, 0, 1, 1], [], []>} : vector<20x368xbf16>, vector<368x128xbf16>, vector<20x128xf32> -> vector<20x128xf32>
    %c0_3 = arith.constant 0 : index
    %c0_4 = arith.constant 0 : index
    %3 = vector.load %arg3[%c0_3, %c0_4] : memref<20x1xf32, #tpu.memory_space<vmem>>, vector<20x1xf32>
    %4 = vector.broadcast %3 : vector<20x1xf32> to vector<20x128xf32>
    %5 = arith.addf %2, %4 : vector<20x128xf32>
    %cst_5 = arith.constant 0.000000e+00 : f32
    %6 = vector.broadcast %cst_5 : f32 to vector<20x128xf32>
    %7 = arith.maximumf %5, %6 : vector<20x128xf32>
    %c0_6 = arith.constant 0 : index
    %c0_7 = arith.constant 0 : index
    %8 = vector.load %arg4[%c0_6, %c0_7] : memref<20x128xf32, #tpu.memory_space<vmem>>, vector<20x128xf32>
    tpu.vector_store %arg4[%c0_6, %c0_7], %7 {strides = array<i32>} : memref<20x128xf32, #tpu.memory_space<vmem>>, vector<20x128xf32>,
    return
  }
  func.func @transform_0(%arg0: i32) -> (i32, i32) {
    %c0_i32 = arith.constant 0 : i32
    %c0_i32_0 = arith.constant 0 : i32
    %c0_i32_1 = arith.constant 0 : i32
    return %c0_i32, %c0_i32_0 : i32, i32
  }
  func.func @transform_1(%arg0: i32) -> (i32, i32) {
    %c0_i32 = arith.constant 0 : i32
    %c0_i32_0 = arith.constant 0 : i32
    return %c0_i32, %arg0 : i32, i32
  }
  func.func @transform_2(%arg0: i32) -> (i32, i32) {
    %c0_i32 = arith.constant 0 : i32
    %c0_i32_0 = arith.constant 0 : i32
    %c0_i32_1 = arith.constant 0 : i32
    return %c0_i32, %c0_i32_0 : i32, i32
  }
  func.func @transform_3(%arg0: i32) -> (i32, i32) {
    %c0_i32 = arith.constant 0 : i32
    %c0_i32_0 = arith.constant 0 : i32
    return %c0_i32, %arg0 : i32, i32
  }
}

module attributes {stable_mosaic.version = 11 : i64} {
  func.func @_gemm_bias_act_kernel(%arg0: i32, %arg1: memref<8x1280xbf16, #tpu.memory_space<vmem>>, %arg2: memref<1280x3xbf16, #tpu.memory_space<vmem>>, %arg3: memref<1x3xf32, #tpu.memory_space<vmem>>, %arg4: memref<8x3xf32, #tpu.memory_space<vmem>>) attributes {dimension_semantics = [#tpu.dimension_semantics<parallel>], iteration_bounds = array<i64: 1>, scalar_prefetch = 0 : i64, scratch_operands = 0 : i64, tpu.core_type = #tpu.core_type<tc>, window_params = [{pipeline_mode = #tpu.pipeline_mode<synchronous>, transform_indices = @transform_0, window_bounds = array<i64: 8, 1280>}, {transform_indices = @transform_1, window_bounds = array<i64: 1280, 3>}, {pipeline_mode = #tpu.pipeline_mode<synchronous>, transform_indices = @transform_2, window_bounds = array<i64: 1, 3>}, {transform_indices = @transform_3, window_bounds = array<i64: 8, 3>}]} {
    %c0 = arith.constant 0 : index
    %c0_0 = arith.constant 0 : index
    %0 = vector.load %arg1[%c0, %c0_0] : memref<8x1280xbf16, #tpu.memory_space<vmem>>, vector<8x1280xbf16>
    %c0_1 = arith.constant 0 : index
    %c0_2 = arith.constant 0 : index
    %1 = vector.load %arg2[%c0_1, %c0_2] : memref<1280x3xbf16, #tpu.memory_space<vmem>>, vector<1280x3xbf16>
    %cst = arith.constant dense<0.000000e+00> : vector<8x3xf32>
    %2 = tpu.matmul %0, %1, %cst {dimension_numbers = #tpu.dot_dimension_numbers<[1], [0], [0], [1], [0, 0, 1, 1], [], []>} : vector<8x1280xbf16>, vector<1280x3xbf16>, vector<8x3xf32> -> vector<8x3xf32>
    %c0_3 = arith.constant 0 : index
    %c0_4 = arith.constant 0 : index
    %3 = vector.load %arg3[%c0_3, %c0_4] : memref<1x3xf32, #tpu.memory_space<vmem>>, vector<1x3xf32>
    %4 = vector.broadcast %3 : vector<1x3xf32> to vector<8x3xf32>
    %5 = arith.addf %2, %4 : vector<8x3xf32>
    %c0_5 = arith.constant 0 : index
    %c0_6 = arith.constant 0 : index
    %6 = vector.load %arg4[%c0_5, %c0_6] : memref<8x3xf32, #tpu.memory_space<vmem>>, vector<8x3xf32>
    tpu.vector_store %arg4[%c0_5, %c0_6], %5 {strides = array<i32>} : memref<8x3xf32, #tpu.memory_space<vmem>>, vector<8x3xf32>,
    return
  }
  func.func @transform_0(%arg0: i32) -> (i32, i32) {
    %c0_i32 = arith.constant 0 : i32
    %c0_i32_0 = arith.constant 0 : i32
    %c0_i32_1 = arith.constant 0 : i32
    return %c0_i32, %c0_i32_0 : i32, i32
  }
  func.func @transform_1(%arg0: i32) -> (i32, i32) {
    %c0_i32 = arith.constant 0 : i32
    %c0_i32_0 = arith.constant 0 : i32
    return %c0_i32, %arg0 : i32, i32
  }
  func.func @transform_2(%arg0: i32) -> (i32, i32) {
    %c0_i32 = arith.constant 0 : i32
    %c0_i32_0 = arith.constant 0 : i32
    %c0_i32_1 = arith.constant 0 : i32
    return %c0_i32, %c0_i32_0 : i32, i32
  }
  func.func @transform_3(%arg0: i32) -> (i32, i32) {
    %c0_i32 = arith.constant 0 : i32
    %c0_i32_0 = arith.constant 0 : i32
    return %c0_i32, %arg0 : i32, i32
  }
}

</mosaic_0001>

<llo_original>
// kernel: my_dsp_net_forward.4
$region0: #{my_dsp_net_forward.4}
  #allocation0 [shape = 'u32[]', space=smem, size = 0x4, offset = 0x4, fixed_abs, tag = 'smem constant byte address 0x4 - core index']
  #allocation1 [shape = 'u32[144,128]{1,0:T(1,128)}', space=vmem, size = 0x12000, scoped, tag = 'internal scratch']
  %s0 = inlined_call_operand.vmem [shape: bf16[20,32], index: 0, kind: input, shape index: {}]
  %s1 = inlined_call_operand.vmem [shape: bf16[32,4608], index: 1, kind: input, shape index: {}]
  %s2 = inlined_call_operand.vmem [shape: f32[20,1], index: 2, kind: input, shape index: {}]
  %s3 = inlined_call_operand.vmem [shape: f32[20,4608], index: 3, kind: output, shape index: {}]
  %s4 = sld [smem:[#allocation0]]
  $region87: #{my_dsp_net_forward.4} parent=0
    _
  %s6 = ssub.s32 1, %s4
  %s7 = scalar_select 0, %s6, %s4
  $region1: #{my_dsp_net_forward.4} parent=0
    #allocation2 [shape = 'u8[294912]{0}', space=vmem, size = 0x48000, scoped, tag = 'input window, operand 1']
    #allocation3 [shape = 'u8[442368]{0}', space=vmem, size = 0x6c000, scoped, tag = 'output window, operand 0']
    loop: start=0, step=1, limit=4
    $region2: #{my_dsp_net_forward.4} parent=1 // loop_pre_header
      _
    $region3: #{my_dsp_net_forward.4} parent=1 // loop_header
      %s9 = sphi 0, %s13
      %p10 = scmp.ge.s32.totalorder %s9, 4
      %s17 = sphi 0, %s17
      %s19 = sphi 0, %s17
      %s20 = sphi 0, %s19
      %s34 = sphi 0, %s20
      %s40 = sphi 0, %s42
      %s43 = sphi 0, %s40
      %s44 = sphi 0, %s43
      %s60 = sphi 0, %s44
      %s64 = sphi 0, %s64
      %s66 = sphi 0, %s64
      %s67 = sphi 0, %s66
      %s81 = sphi 0, %s67
      %s87 = sphi 0, %s89
      %s90 = sphi 0, %s87
      %s91 = sphi 0, %s90
      %s107 = sphi 0, %s91
    $region4: #{my_dsp_net_forward.4} parent=1 // loop_header_branch
      %12 = sbr.rel (%p10) target = $region8
    $region5: #{my_dsp_net_forward.4} parent=1 // loop_body
      %s14 = ssub.s32 %s9, 1
      %s15 = ssub.s32 %s9, 2
      %s16 = sadd.s32 %s9, 1
      %s18 = sadd.s32 %s17, 1
      %p21 = scmp.eq.s32.totalorder %s9, 1
      %p22 = scmp.ne.s32.totalorder %s17, %s19
      %p23 = scmp.eq.s32.totalorder %s9, 0
      %p24 = por %p22, %p23
      %p25 = scmp.ne.s32.totalorder %s17, %s19
      %p26 = scmp.eq.s32.totalorder %s14, 1
      %p27 = por %p25, %p26
      %p28 = scmp.ne.s32.totalorder %s19, %s20
      %p29 = scmp.eq.s32.totalorder %s14, 0
      %p30 = por %p28, %p29
      %p31 = scmp.ne.s32.totalorder %s19, %s20
      %p32 = scmp.eq.s32.totalorder %s15, 1
      %p33 = por %p31, %p32
      %p35 = scmp.ne.s32.totalorder %s20, %s34
      %p36 = scmp.eq.s32.totalorder %s15, 0
      %p37 = por %p35, %p36
      %s38 = ssub.s32 %s9, %s16
      %p39 = scmp.eq.s32.totalorder %s38, 0
      %s41 = sadd.s32 %s40, 1
      %s42 = scalar_select %p39, %s40, %s41
      %p45 = pneg %p39
      %p46 = scmp.eq.s32.totalorder %s9, 1
      %p47 = por %p45, %p46
      %p48 = scmp.ne.s32.totalorder %s40, %s43
      %p49 = scmp.eq.s32.totalorder %s9, 0
      %p50 = por %p48, %p49
      %p51 = scmp.ne.s32.totalorder %s40, %s43
      %p52 = scmp.eq.s32.totalorder %s14, 1
      %p53 = por %p51, %p52
      %p54 = scmp.ne.s32.totalorder %s43, %s44
      %p55 = scmp.eq.s32.totalorder %s14, 0
      %p56 = por %p54, %p55
      %p57 = scmp.ne.s32.totalorder %s43, %s44
      %p58 = scmp.eq.s32.totalorder %s15, 1
      %p59 = por %p57, %p58
      %p61 = scmp.ne.s32.totalorder %s44, %s60
      %p62 = scmp.eq.s32.totalorder %s15, 0
      %p63 = por %p61, %p62
      %s65 = sadd.s32 %s64, 1
      %p68 = scmp.eq.s32.totalorder %s9, 1
      %p69 = scmp.ne.s32.totalorder %s64, %s66
      %p70 = scmp.eq.s32.totalorder %s9, 0
      %p71 = por %p69, %p70
      %p72 = scmp.ne.s32.totalorder %s64, %s66
      %p73 = scmp.eq.s32.totalorder %s14, 1
      %p74 = por %p72, %p73
      %p75 = scmp.ne.s32.totalorder %s66, %s67
      %p76 = scmp.eq.s32.totalorder %s14, 0
      %p77 = por %p75, %p76
      %p78 = scmp.ne.s32.totalorder %s66, %s67
      %p79 = scmp.eq.s32.totalorder %s15, 1
      %p80 = por %p78, %p79
      %p82 = scmp.ne.s32.totalorder %s67, %s81
      %p83 = scmp.eq.s32.totalorder %s15, 0
      %p84 = por %p82, %p83
      %s85 = ssub.s32 %s9, %s16
      %p86 = scmp.eq.s32.totalorder %s85, 0
      %s88 = sadd.s32 %s87, 1
      %s89 = scalar_select %p86, %s87, %s88
      %p92 = pneg %p86
      %p93 = scmp.eq.s32.totalorder %s9, 1
      %p94 = por %p92, %p93
      %p95 = scmp.ne.s32.totalorder %s87, %s90
      %p96 = scmp.eq.s32.totalorder %s9, 0
      %p97 = por %p95, %p96
      %p98 = scmp.ne.s32.totalorder %s87, %s90
      %p99 = scmp.eq.s32.totalorder %s14, 1
      %p100 = por %p98, %p99
      %p101 = scmp.ne.s32.totalorder %s90, %s91
      %p102 = scmp.eq.s32.totalorder %s14, 0
      %p103 = por %p101, %p102
      %p104 = scmp.ne.s32.totalorder %s90, %s91
      %p105 = scmp.eq.s32.totalorder %s15, 1
      %p106 = por %p104, %p105
      %p108 = scmp.ne.s32.totalorder %s91, %s107
      %p109 = scmp.eq.s32.totalorder %s15, 0
      %p110 = por %p108, %p109
      %p111 = scmp.le.s32.totalorder 1, %s9
      %p112 = scmp.lt.s32.totalorder %s9, 3
      %p113 = pnand %p111, %p112
      %p114 = pneg %p113
      // Predicated region
      $region9: #{my_dsp_net_forward.4} parent=5 // pred_check
        _
      $region10: #{my_dsp_net_forward.4} parent=5 // pred_check_branch
        %116 = sbr.rel (%p113) target = $region12
      $region11: #{my_dsp_net_forward.4} parent=5 // pred_region
        %s117 = ssub.s32 %s9, 1
        // Predicated region
        $region13: #{my_dsp_net_forward.4} parent=11 // pred_check
          %p118 = pneg %p30
        $region14: #{my_dsp_net_forward.4} parent=11 // pred_check_branch
          %120 = sbr.rel (%p118) target = $region16
        $region15: #{my_dsp_net_forward.4} parent=11 // pred_region
          _
        $region16: #{my_dsp_net_forward.4} parent=11 // pred_fallthru
          _
        // Predicated region
        $region17: #{my_dsp_net_forward.4} parent=11 // pred_check
          %p121 = pneg %p77
        $region18: #{my_dsp_net_forward.4} parent=11 // pred_check_branch
          %123 = sbr.rel (%p121) target = $region20
        $region19: #{my_dsp_net_forward.4} parent=11 // pred_region
          _
        $region20: #{my_dsp_net_forward.4} parent=11 // pred_fallthru
          _
      $region12: #{my_dsp_net_forward.4} parent=5 // pred_fallthru
        _
      %p124 = scmp.lt.s32.totalorder %s9, 2
      // Predicated region
      $region21: #{my_dsp_net_forward.4} parent=5 // pred_check
        %p125 = pneg %p124
      $region22: #{my_dsp_net_forward.4} parent=5 // pred_check_branch
        %127 = sbr.rel (%p125) target = $region24
      $region23: #{my_dsp_net_forward.4} parent=5 // pred_region
        // Predicated region
        $region25: #{my_dsp_net_forward.4} parent=23 // pred_check
          %p128 = pneg %p50
        $region26: #{my_dsp_net_forward.4} parent=23 // pred_check_branch
          %130 = sbr.rel (%p128) target = $region28
        $region27: #{my_dsp_net_forward.4} parent=23 // pred_region
          %s131 = sand.u32 %s40, 1
          %s132 = sand.u32 %s40, 1
          %s133 = smul.addr %s132, 288
          %s134 = scalar_lea.vmem [#allocation2], %s133
          %s135 = smul.u32 18, %s9
          %s136 = smul.addr %s135, 4
          %s137 = scalar_lea.vmem %s1, %s136
          // Predicated region
          $region29: #{my_dsp_net_forward.4} parent=27 // pred_check
            _
          $region30: #{my_dsp_net_forward.4} parent=27 // pred_check_branch
            %139 = sbr.rel (0) target = $region32
          $region31: #{my_dsp_net_forward.4} parent=27 // pred_region
            // Predicated region
            $region33: #{my_dsp_net_forward.4} parent=31 // pred_check
              _
            $region34: #{my_dsp_net_forward.4} parent=31 // pred_check_branch
              %141 = sbr.rel (0) target = $region36
            $region35: #{my_dsp_net_forward.4} parent=31 // pred_region
              loop: start=0, step=1, limit=1
              $region37: #{my_dsp_net_forward.4} parent=35 // loop_pre_header
                _
              $region38: #{my_dsp_net_forward.4} parent=35 // loop_header
                %s143 = sphi 0, %s147
                %p144 = scmp.ge.s32.totalorder %s143, 1
                %s148 = sphi %s137, %s137
                %s149 = sphi %s134, %s134
              $region39: #{my_dsp_net_forward.4} parent=35 // loop_header_branch
                %146 = sbr.rel (%p144) target = $region43
              $region40: #{my_dsp_net_forward.4} parent=35 // loop_body
                %v150 = vld [vmem:[%s148] sm:$0xff]
                %151 = vst [vmem:[%s149] sm:$0xff] %v150
                %v152 = vld [vmem:[%s148 + $0x8] sm:$0xff]
                %153 = vst [vmem:[%s149 + $0x8] sm:$0xff] %v152
                %v154 = vld [vmem:[%s148 + $0x10] sm:$0xff]
                %155 = vst [vmem:[%s149 + $0x10] sm:$0xff] %v154
                %v156 = vld [vmem:[%s148 + $0x18] sm:$0xff]
                %157 = vst [vmem:[%s149 + $0x18] sm:$0xff] %v156
                %v158 = vld [vmem:[%s148 + $0x20] sm:$0xff]
                %159 = vst [vmem:[%s149 + $0x20] sm:$0xff] %v158
                %v160 = vld [vmem:[%s148 + $0x28] sm:$0xff]
                %161 = vst [vmem:[%s149 + $0x28] sm:$0xff] %v160
                %v162 = vld [vmem:[%s148 + $0x30] sm:$0xff]
                %163 = vst [vmem:[%s149 + $0x30] sm:$0xff] %v162
                %v164 = vld [vmem:[%s148 + $0x38] sm:$0xff]
                %165 = vst [vmem:[%s149 + $0x38] sm:$0xff] %v164
                %v166 = vld [vmem:[%s148 + $0x40] sm:$0xff]
                %167 = vst [vmem:[%s149 + $0x40] sm:$0xff] %v166
                %v168 = vld [vmem:[%s148 + $0x90] sm:$0xff]
                %169 = vst [vmem:[%s149 + $0x48] sm:$0xff] %v168
                %v170 = vld [vmem:[%s148 + $0x98] sm:$0xff]
                %171 = vst [vmem:[%s149 + $0x50] sm:$0xff] %v170
                %v172 = vld [vmem:[%s148 + $0xa0] sm:$0xff]
                %173 = vst [vmem:[%s149 + $0x58] sm:$0xff] %v172
                %v174 = vld [vmem:[%s148 + $0xa8] sm:$0xff]
                %175 = vst [vmem:[%s149 + $0x60] sm:$0xff] %v174
                %v176 = vld [vmem:[%s148 + $0xb0] sm:$0xff]
                %177 = vst [vmem:[%s149 + $0x68] sm:$0xff] %v176
                %v178 = vld [vmem:[%s148 + $0xb8] sm:$0xff]
                %179 = vst [vmem:[%s149 + $0x70] sm:$0xff] %v178
                %v180 = vld [vmem:[%s148 + $0xc0] sm:$0xff]
                %181 = vst [vmem:[%s149 + $0x78] sm:$0xff] %v180
                %v182 = vld [vmem:[%s148 + $0xc8] sm:$0xff]
                %183 = vst [vmem:[%s149 + $0x80] sm:$0xff] %v182
                %v184 = vld [vmem:[%s148 + $0xd0] sm:$0xff]
                %185 = vst [vmem:[%s149 + $0x88] sm:$0xff] %v184
                %v186 = vld [vmem:[%s148 + $0x120] sm:$0xff]
                %187 = vst [vmem:[%s149 + $0x90] sm:$0xff] %v186
                %v188 = vld [vmem:[%s148 + $0x128] sm:$0xff]
                %189 = vst [vmem:[%s149 + $0x98] sm:$0xff] %v188
                %v190 = vld [vmem:[%s148 + $0x130] sm:$0xff]
                %191 = vst [vmem:[%s149 + $0xa0] sm:$0xff] %v190
                %v192 = vld [vmem:[%s148 + $0x138] sm:$0xff]
                %193 = vst [vmem:[%s149 + $0xa8] sm:$0xff] %v192
                %v194 = vld [vmem:[%s148 + $0x140] sm:$0xff]
                %195 = vst [vmem:[%s149 + $0xb0] sm:$0xff] %v194
                %v196 = vld [vmem:[%s148 + $0x148] sm:$0xff]
                %197 = vst [vmem:[%s149 + $0xb8] sm:$0xff] %v196
                %v198 = vld [vmem:[%s148 + $0x150] sm:$0xff]
                %199 = vst [vmem:[%s149 + $0xc0] sm:$0xff] %v198
                %v200 = vld [vmem:[%s148 + $0x158] sm:$0xff]
                %201 = vst [vmem:[%s149 + $0xc8] sm:$0xff] %v200
                %v202 = vld [vmem:[%s148 + $0x160] sm:$0xff]
                %203 = vst [vmem:[%s149 + $0xd0] sm:$0xff] %v202
                %v204 = vld [vmem:[%s148 + $0x1b0] sm:$0xff]
                %205 = vst [vmem:[%s149 + $0xd8] sm:$0xff] %v204
                %v206 = vld [vmem:[%s148 + $0x1b8] sm:$0xff]
                %207 = vst [vmem:[%s149 + $0xe0] sm:$0xff] %v206
                %v208 = vld [vmem:[%s148 + $0x1c0] sm:$0xff]
                %209 = vst [vmem:[%s149 + $0xe8] sm:$0xff] %v208
                %v210 = vld [vmem:[%s148 + $0x1c8] sm:$0xff]
                %211 = vst [vmem:[%s149 + $0xf0] sm:$0xff] %v210
                %v212 = vld [vmem:[%s148 + $0x1d0] sm:$0xff]
                %213 = vst [vmem:[%s149 + $0xf8] sm:$0xff] %v212
                %v214 = vld [vmem:[%s148 + $0x1d8] sm:$0xff]
                %215 = vst [vmem:[%s149 + $0x100] sm:$0xff] %v214
                %v216 = vld [vmem:[%s148 + $0x1e0] sm:$0xff]
                %217 = vst [vmem:[%s149 + $0x108] sm:$0xff] %v216
                %v218 = vld [vmem:[%s148 + $0x1e8] sm:$0xff]
                %219 = vst [vmem:[%s149 + $0x110] sm:$0xff] %v218
                %v220 = vld [vmem:[%s148 + $0x1f0] sm:$0xff]
                %221 = vst [vmem:[%s149 + $0x118] sm:$0xff] %v220
              $region41: #{my_dsp_net_forward.4} parent=35 // loop_footer
                %s147 = sadd.s32 1, %s143
              $region42: #{my_dsp_net_forward.4} parent=35 // loop_footer_branch
                %142 = sbr.rel target = $region38
              $region43: #{my_dsp_net_forward.4} parent=35 // loop_exit
                _
            $region36: #{my_dsp_net_forward.4} parent=31 // pred_fallthru
              _
            // Predicated region
            $region44: #{my_dsp_net_forward.4} parent=31 // pred_check
              _
            $region45: #{my_dsp_net_forward.4} parent=31 // pred_check_branch
              %223 = sbr.rel target = $region47
            $region46: #{my_dsp_net_forward.4} parent=31 // pred_region
              _
            $region47: #{my_dsp_net_forward.4} parent=31 // pred_fallthru
              _
          $region32: #{my_dsp_net_forward.4} parent=27 // pred_fallthru
            _
          %224 = vnop
        $region28: #{my_dsp_net_forward.4} parent=23 // pred_fallthru
          _
      $region24: #{my_dsp_net_forward.4} parent=5 // pred_fallthru
        _
      %p225 = scmp.le.s32.totalorder 1, %s9
      %p226 = scmp.lt.s32.totalorder %s9, 3
      %p227 = pnand %p225, %p226
      %p228 = pneg %p227
      // Predicated region
      $region48: #{my_dsp_net_forward.4} parent=5 // pred_check
        _
      $region49: #{my_dsp_net_forward.4} parent=5 // pred_check_branch
        %230 = sbr.rel (%p227) target = $region51
      $region50: #{my_dsp_net_forward.4} parent=5 // pred_region
        %s231 = ssub.s32 %s9, 1
        %s232 = sand.u32 %s43, 1
        %s233 = sand.u32 %s43, 1
        %s234 = smul.addr %s233, 288
        %s235 = scalar_lea.vmem [#allocation2], %s234
        // Predicated region
        $region52: #{my_dsp_net_forward.4} parent=50 // pred_check
          %p236 = pneg %p56
        $region53: #{my_dsp_net_forward.4} parent=50 // pred_check_branch
          %238 = sbr.rel (%p236) target = $region55
        $region54: #{my_dsp_net_forward.4} parent=50 // pred_region
          _
        $region55: #{my_dsp_net_forward.4} parent=50 // pred_fallthru
          _
        %p239 = pneg %p30
        %p240 = pneg %p27
        %s241 = sand.u32 %s43, 1
        %s242 = sand.u32 %s43, 1
        %s243 = smul.addr %s242, 288
        %s244 = scalar_lea.vmem [#allocation2], %s243
        %p245 = pneg %p56
        %p246 = pneg %p53
        %p247 = pneg %p77
        %p248 = pneg %p74
        %p249 = pneg %p103
        %p250 = pneg %p100
        %s251 = sand.u32 %s90, 1
        %s252 = sand.u32 %s90, 1
        %s253 = smul.addr %s252, 432
        %s254 = scalar_lea.vmem [#allocation3], %s253
        %s255 = smul.u32 18, %s14
        %s256 = smul.u32 18, %s14
        %v258 = vld [vmem:[%s0] sm:$0xf]
        %v259 = vld [vmem:[%s0 + $0x4] sm:$0xf]
        %v260 = vld [vmem:[%s0 + $0x8] sm:$0x3]
        %v261 = vld [vmem:[%s235] sm:$0xff]
        %v262 = vld [vmem:[%s235 + $0x8] sm:$0xff]
        %v263 = vld [vmem:[%s235 + $0x10] sm:$0xff]
        %v264 = vld [vmem:[%s235 + $0x18] sm:$0xff]
        %v265 = vld [vmem:[%s235 + $0x20] sm:$0xff]
        %v266 = vld [vmem:[%s235 + $0x28] sm:$0xff]
        %v267 = vld [vmem:[%s235 + $0x30] sm:$0xff]
        %v268 = vld [vmem:[%s235 + $0x38] sm:$0xff]
        %v269 = vld [vmem:[%s235 + $0x40] sm:$0xff]
        %v270 = vld [vmem:[%s235 + $0x48] sm:$0xff]
        %v271 = vld [vmem:[%s235 + $0x50] sm:$0xff]
        %v272 = vld [vmem:[%s235 + $0x58] sm:$0xff]
        %v273 = vld [vmem:[%s235 + $0x60] sm:$0xff]
        %v274 = vld [vmem:[%s235 + $0x68] sm:$0xff]
        %v275 = vld [vmem:[%s235 + $0x70] sm:$0xff]
        %v276 = vld [vmem:[%s235 + $0x78] sm:$0xff]
        %v277 = vld [vmem:[%s235 + $0x80] sm:$0xff]
        %v278 = vld [vmem:[%s235 + $0x88] sm:$0xff]
        %v279 = vld [vmem:[%s235 + $0x90] sm:$0xff]
        %v280 = vld [vmem:[%s235 + $0x98] sm:$0xff]
        %v281 = vld [vmem:[%s235 + $0xa0] sm:$0xff]
        %v282 = vld [vmem:[%s235 + $0xa8] sm:$0xff]
        %v283 = vld [vmem:[%s235 + $0xb0] sm:$0xff]
        %v284 = vld [vmem:[%s235 + $0xb8] sm:$0xff]
        %v285 = vld [vmem:[%s235 + $0xc0] sm:$0xff]
        %v286 = vld [vmem:[%s235 + $0xc8] sm:$0xff]
        %v287 = vld [vmem:[%s235 + $0xd0] sm:$0xff]
        %v288 = vld [vmem:[%s235 + $0xd8] sm:$0xff]
        %v289 = vld [vmem:[%s235 + $0xe0] sm:$0xff]
        %v290 = vld [vmem:[%s235 + $0xe8] sm:$0xff]
        %v291 = vld [vmem:[%s235 + $0xf0] sm:$0xff]
        %v292 = vld [vmem:[%s235 + $0xf8] sm:$0xff]
        %v293 = vld [vmem:[%s235 + $0x100] sm:$0xff]
        %v294 = vld [vmem:[%s235 + $0x108] sm:$0xff]
        %v295 = vld [vmem:[%s235 + $0x110] sm:$0xff]
        %v296 = vld [vmem:[%s235 + $0x118] sm:$0xff]
        %v297 = vld [vmem:[%s2] sm:$0xff]
        %v298 = vld [vmem:[%s2 + $0x8] sm:$0xff]
        %v299 = vld [vmem:[%s2 + $0x10] sm:$0xf]
        %301 = vset.pattern.permute.xlu0 0
        %302 = vperm.xlu0 %301, %v297
        %v303 = vpop.permute.xlu0 %302
        %306 = vset.pattern.permute.xlu0 0
        %307 = vperm.xlu0 %306, %v298
        %v308 = vpop.permute.xlu0 %307
        %311 = vset.pattern.permute.xlu0 0
        %312 = vperm.xlu0 %311, %v299
        %v313 = vpop.permute.xlu0 %312
        %v318 = vunpack.c.l.b16 %v258
        %v319 = vunpack.c.l.b16 %v259
        %v320 = vunpack.c.l.b16 %v260
        %v321 = vpack.c.b16 %v319, %v318
        %v322 = vpack.c.b16 %v320, %v320
        %v359 = vunpack.c.l.b16 %v261
        %v360 = vunpack.c.h.b16 %v261
        %v361 = vunpack.c.l.b16 %v262
        %v362 = vunpack.c.h.b16 %v262
        %v363 = vunpack.c.l.b16 %v263
        %v364 = vunpack.c.h.b16 %v263
        %v365 = vunpack.c.l.b16 %v264
        %v366 = vunpack.c.h.b16 %v264
        %v367 = vunpack.c.l.b16 %v265
        %v368 = vunpack.c.h.b16 %v265
        %v369 = vunpack.c.l.b16 %v266
        %v370 = vunpack.c.h.b16 %v266
        %v371 = vunpack.c.l.b16 %v267
        %v372 = vunpack.c.h.b16 %v267
        %v373 = vunpack.c.l.b16 %v268
        %v374 = vunpack.c.h.b16 %v268
        %v375 = vunpack.c.l.b16 %v269
        %v376 = vunpack.c.h.b16 %v269
        %v377 = vunpack.c.l.b16 %v270
        %v378 = vunpack.c.h.b16 %v270
        %v379 = vunpack.c.l.b16 %v271
        %v380 = vunpack.c.h.b16 %v271
        %v381 = vunpack.c.l.b16 %v272
        %v382 = vunpack.c.h.b16 %v272
        %v383 = vunpack.c.l.b16 %v273
        %v384 = vunpack.c.h.b16 %v273
        %v385 = vunpack.c.l.b16 %v274
        %v386 = vunpack.c.h.b16 %v274
        %v387 = vunpack.c.l.b16 %v275
        %v388 = vunpack.c.h.b16 %v275
        %v389 = vunpack.c.l.b16 %v276
        %v390 = vunpack.c.h.b16 %v276
        %v391 = vunpack.c.l.b16 %v277
        %v392 = vunpack.c.h.b16 %v277
        %v393 = vunpack.c.l.b16 %v278
        %v394 = vunpack.c.h.b16 %v278
        %v395 = vunpack.c.l.b16 %v279
        %v396 = vunpack.c.h.b16 %v279
        %v397 = vunpack.c.l.b16 %v280
        %v398 = vunpack.c.h.b16 %v280
        %v399 = vunpack.c.l.b16 %v281
        %v400 = vunpack.c.h.b16 %v281
        %v401 = vunpack.c.l.b16 %v282
        %v402 = vunpack.c.h.b16 %v282
        %v403 = vunpack.c.l.b16 %v283
        %v404 = vunpack.c.h.b16 %v283
        %v405 = vunpack.c.l.b16 %v284
        %v406 = vunpack.c.h.b16 %v284
        %v407 = vunpack.c.l.b16 %v285
        %v408 = vunpack.c.h.b16 %v285
        %v409 = vunpack.c.l.b16 %v286
        %v410 = vunpack.c.h.b16 %v286
        %v411 = vunpack.c.l.b16 %v287
        %v412 = vunpack.c.h.b16 %v287
        %v413 = vunpack.c.l.b16 %v288
        %v414 = vunpack.c.h.b16 %v288
        %v415 = vunpack.c.l.b16 %v289
        %v416 = vunpack.c.h.b16 %v289
        %v417 = vunpack.c.l.b16 %v290
        %v418 = vunpack.c.h.b16 %v290
        %v419 = vunpack.c.l.b16 %v291
        %v420 = vunpack.c.h.b16 %v291
        %v421 = vunpack.c.l.b16 %v292
        %v422 = vunpack.c.h.b16 %v292
        %v423 = vunpack.c.l.b16 %v293
        %v424 = vunpack.c.h.b16 %v293
        %v425 = vunpack.c.l.b16 %v294
        %v426 = vunpack.c.h.b16 %v294
        %v427 = vunpack.c.l.b16 %v295
        %v428 = vunpack.c.h.b16 %v295
        %v429 = vunpack.c.l.b16 %v296
        %v430 = vunpack.c.h.b16 %v296
        %v431 = vpack.c.b16 %v377, %v359
        %v432 = vpack.c.b16 %v378, %v360
        %v433 = vpack.c.b16 %v379, %v361
        %v434 = vpack.c.b16 %v380, %v362
        %v435 = vpack.c.b16 %v381, %v363
        %v436 = vpack.c.b16 %v382, %v364
        %v437 = vpack.c.b16 %v383, %v365
        %v438 = vpack.c.b16 %v384, %v366
        %v439 = vpack.c.b16 %v385, %v367
        %v440 = vpack.c.b16 %v386, %v368
        %v441 = vpack.c.b16 %v387, %v369
        %v442 = vpack.c.b16 %v388, %v370
        %v443 = vpack.c.b16 %v389, %v371
        %v444 = vpack.c.b16 %v390, %v372
        %v445 = vpack.c.b16 %v391, %v373
        %v446 = vpack.c.b16 %v392, %v374
        %v447 = vpack.c.b16 %v393, %v375
        %v448 = vpack.c.b16 %v394, %v376
        %v449 = vpack.c.b16 %v413, %v395
        %v450 = vpack.c.b16 %v414, %v396
        %v451 = vpack.c.b16 %v415, %v397
        %v452 = vpack.c.b16 %v416, %v398
        %v453 = vpack.c.b16 %v417, %v399
        %v454 = vpack.c.b16 %v418, %v400
        %v455 = vpack.c.b16 %v419, %v401
        %v456 = vpack.c.b16 %v420, %v402
        %v457 = vpack.c.b16 %v421, %v403
        %v458 = vpack.c.b16 %v422, %v404
        %v459 = vpack.c.b16 %v423, %v405
        %v460 = vpack.c.b16 %v424, %v406
        %v461 = vpack.c.b16 %v425, %v407
        %v462 = vpack.c.b16 %v426, %v408
        %v463 = vpack.c.b16 %v427, %v409
        %v464 = vpack.c.b16 %v428, %v410
        %v465 = vpack.c.b16 %v429, %v411
        %v466 = vpack.c.b16 %v430, %v412
        %vm503 = vcmask 261120
        %v505 = vsel %vm503, %v321, 0
        %v508 = vsel %vm503, %v322, 0
        %510 = vmatprep.subr.bf16.mxu0 %v432
        %511 = vmatpush1.bf16.msra.mxu0 %v431
        %512 = vmatprep.subr.bf16.mxu0 %v450
        %513 = vmatpush1.bf16.msra.mxu0 %v449
        %514 = vmatprep.subr.bf16.mxu0 0
        %515 = vmatpush1.bf16.msra.mxu0 0
        %516 = vmatprep.subr.bf16.mxu0 0
        %517 = vmatpush1.bf16.msra.mxu0 0
        %518 = vmatprep.subr.bf16.mxu0 0
        %519 = vmatpush1.bf16.msra.mxu0 0
        %520 = vmatprep.subr.bf16.mxu0 0
        %521 = vmatpush1.bf16.msra.mxu0 0
        %522 = vmatprep.subr.bf16.mxu0 0
        %523 = vmatpush1.bf16.msra.mxu0 0
        %524 = vmatprep.subr.bf16.mxu0 0
        %525 = vmatpush1.bf16.msra.mxu0 0
        %526 = vmatprep.subr.bf16.mxu0 0
        %527 = vmatpush1.bf16.msra.mxu0 0
        %528 = vmatprep.subr.bf16.mxu0 0
        %529 = vmatpush1.bf16.msra.mxu0 0
        %530 = vmatprep.subr.bf16.mxu0 0
        %531 = vmatpush1.bf16.msra.mxu0 0
        %532 = vmatprep.subr.bf16.mxu0 0
        %533 = vmatpush1.bf16.msra.mxu0 0
        %534 = vmatprep.subr.bf16.mxu0 0
        %535 = vmatpush1.bf16.msra.mxu0 0
        %536 = vmatprep.subr.bf16.mxu0 0
        %537 = vmatpush1.bf16.msra.mxu0 0
        %538 = vmatprep.subr.bf16.mxu0 0
        %539 = vmatpush1.bf16.msra.mxu0 0
        %540 = vmatprep.subr.bf16.mxu0 0
        %541 = vmatpush1.bf16.msra.mxu0 0
        %542 = vmatprep.mubr.bf16.mxu0 0
        %543 = vmatmul.mubr.bf16.gmra.mrb[0].mxu0 %v505
        %v544 = vpop.f32.mrb[0].mxu0
        %v545 = vadd.f32 %v303, %v544
        %v546 = vpop.f32.mrb[0].mxu0
        %v547 = vadd.f32 %v303, %v546
        %v548 = vpop.f32.mrb[0].mxu0
        %v549 = vadd.f32 %v308, %v548
        %v550 = vpop.f32.mrb[0].mxu0
        %v551 = vadd.f32 %v308, %v550
        %552 = vmatprep.mubr.bf16.mxu0 0
        %553 = vmatmul.mubr.bf16.gmra.mrb[0].mxu0 %v508
        %v554 = vpop.f32.mrb[0].mxu0
        %v555 = vadd.f32 %v313, %v554
        %v556 = vpop.f32.mrb[0].mxu0
        %v557 = vadd.f32 %v313, %v556
        %v558 = vpop.f32.mrb[0].mxu0
        %v559 = vpop.f32.mrb[0].mxu0
        %560 = vdwg.mxu0
        %561 = vmatprep.subr.bf16.mxu0 %v434
        %562 = vmatpush1.bf16.msra.mxu0 %v433
        %563 = vmatprep.subr.bf16.mxu0 %v452
        %564 = vmatpush1.bf16.msra.mxu0 %v451
        %565 = vmatprep.subr.bf16.mxu0 0
        %566 = vmatpush1.bf16.msra.mxu0 0
        %567 = vmatprep.subr.bf16.mxu0 0
        %568 = vmatpush1.bf16.msra.mxu0 0
        %569 = vmatprep.subr.bf16.mxu0 0
        %570 = vmatpush1.bf16.msra.mxu0 0
        %571 = vmatprep.subr.bf16.mxu0 0
        %572 = vmatpush1.bf16.msra.mxu0 0
        %573 = vmatprep.subr.bf16.mxu0 0
        %574 = vmatpush1.bf16.msra.mxu0 0
        %575 = vmatprep.subr.bf16.mxu0 0
        %576 = vmatpush1.bf16.msra.mxu0 0
        %577 = vmatprep.subr.bf16.mxu0 0
        %578 = vmatpush1.bf16.msra.mxu0 0
        %579 = vmatprep.subr.bf16.mxu0 0
        %580 = vmatpush1.bf16.msra.mxu0 0
        %581 = vmatprep.subr.bf16.mxu0 0
        %582 = vmatpush1.bf16.msra.mxu0 0
        %583 = vmatprep.subr.bf16.mxu0 0
        %584 = vmatpush1.bf16.msra.mxu0 0
        %585 = vmatprep.subr.bf16.mxu0 0
        %586 = vmatpush1.bf16.msra.mxu0 0
        %587 = vmatprep.subr.bf16.mxu0 0
        %588 = vmatpush1.bf16.msra.mxu0 0
        %589 = vmatprep.subr.bf16.mxu0 0
        %590 = vmatpush1.bf16.msra.mxu0 0
        %591 = vmatprep.subr.bf16.mxu0 0
        %592 = vmatpush1.bf16.msra.mxu0 0
        %593 = vmatprep.mubr.bf16.mxu0 0
        %594 = vmatmul.mubr.bf16.gmra.mrb[0].mxu0 %v505
        %v595 = vpop.f32.mrb[0].mxu0
        %v596 = vadd.f32 %v303, %v595
        %v597 = vpop.f32.mrb[0].mxu0
        %v598 = vadd.f32 %v303, %v597
        %v599 = vpop.f32.mrb[0].mxu0
        %v600 = vadd.f32 %v308, %v599
        %v601 = vpop.f32.mrb[0].mxu0
        %v602 = vadd.f32 %v308, %v601
        %603 = vmatprep.mubr.bf16.mxu0 0
        %604 = vmatmul.mubr.bf16.gmra.mrb[0].mxu0 %v508
        %v605 = vpop.f32.mrb[0].mxu0
        %v606 = vadd.f32 %v313, %v605
        %v607 = vpop.f32.mrb[0].mxu0
        %v608 = vadd.f32 %v313, %v607
        %v609 = vpop.f32.mrb[0].mxu0
        %v610 = vpop.f32.mrb[0].mxu0
        %611 = vdwg.mxu0
        %612 = vmatprep.subr.bf16.mxu0 %v436
        %613 = vmatpush1.bf16.msra.mxu0 %v435
        %614 = vmatprep.subr.bf16.mxu0 %v454
        %615 = vmatpush1.bf16.msra.mxu0 %v453
        %616 = vmatprep.subr.bf16.mxu0 0
        %617 = vmatpush1.bf16.msra.mxu0 0
        %618 = vmatprep.subr.bf16.mxu0 0
        %619 = vmatpush1.bf16.msra.mxu0 0
        %620 = vmatprep.subr.bf16.mxu0 0
        %621 = vmatpush1.bf16.msra.mxu0 0
        %622 = vmatprep.subr.bf16.mxu0 0
        %623 = vmatpush1.bf16.msra.mxu0 0
        %624 = vmatprep.subr.bf16.mxu0 0
        %625 = vmatpush1.bf16.msra.mxu0 0
        %626 = vmatprep.subr.bf16.mxu0 0
        %627 = vmatpush1.bf16.msra.mxu0 0
        %628 = vmatprep.subr.bf16.mxu0 0
        %629 = vmatpush1.bf16.msra.mxu0 0
        %630 = vmatprep.subr.bf16.mxu0 0
        %631 = vmatpush1.bf16.msra.mxu0 0
        %632 = vmatprep.subr.bf16.mxu0 0
        %633 = vmatpush1.bf16.msra.mxu0 0
        %634 = vmatprep.subr.bf16.mxu0 0
        %635 = vmatpush1.bf16.msra.mxu0 0
        %636 = vmatprep.subr.bf16.mxu0 0
        %637 = vmatpush1.bf16.msra.mxu0 0
        %638 = vmatprep.subr.bf16.mxu0 0
        %639 = vmatpush1.bf16.msra.mxu0 0
        %640 = vmatprep.subr.bf16.mxu0 0
        %641 = vmatpush1.bf16.msra.mxu0 0
        %642 = vmatprep.subr.bf16.mxu0 0
        %643 = vmatpush1.bf16.msra.mxu0 0
        %644 = vmatprep.mubr.bf16.mxu0 0
        %645 = vmatmul.mubr.bf16.gmra.mrb[0].mxu0 %v505
        %v646 = vpop.f32.mrb[0].mxu0
        %v647 = vadd.f32 %v303, %v646
        %v648 = vpop.f32.mrb[0].mxu0
        %v649 = vadd.f32 %v303, %v648
        %v650 = vpop.f32.mrb[0].mxu0
        %v651 = vadd.f32 %v308, %v650
        %v652 = vpop.f32.mrb[0].mxu0
        %v653 = vadd.f32 %v308, %v652
        %654 = vmatprep.mubr.bf16.mxu0 0
        %655 = vmatmul.mubr.bf16.gmra.mrb[0].mxu0 %v508
        %v656 = vpop.f32.mrb[0].mxu0
        %v657 = vadd.f32 %v313, %v656
        %v658 = vpop.f32.mrb[0].mxu0
        %v659 = vadd.f32 %v313, %v658
        %v660 = vpop.f32.mrb[0].mxu0
        %v661 = vpop.f32.mrb[0].mxu0
        %662 = vdwg.mxu0
        %663 = vmatprep.subr.bf16.mxu0 %v438
        %664 = vmatpush1.bf16.msra.mxu0 %v437
        %665 = vmatprep.subr.bf16.mxu0 %v456
        %666 = vmatpush1.bf16.msra.mxu0 %v455
        %667 = vmatprep.subr.bf16.mxu0 0
        %668 = vmatpush1.bf16.msra.mxu0 0
        %669 = vmatprep.subr.bf16.mxu0 0
        %670 = vmatpush1.bf16.msra.mxu0 0
        %671 = vmatprep.subr.bf16.mxu0 0
        %672 = vmatpush1.bf16.msra.mxu0 0
        %673 = vmatprep.subr.bf16.mxu0 0
        %674 = vmatpush1.bf16.msra.mxu0 0
        %675 = vmatprep.subr.bf16.mxu0 0
        %676 = vmatpush1.bf16.msra.mxu0 0
        %677 = vmatprep.subr.bf16.mxu0 0
        %678 = vmatpush1.bf16.msra.mxu0 0
        %679 = vmatprep.subr.bf16.mxu0 0
        %680 = vmatpush1.bf16.msra.mxu0 0
        %681 = vmatprep.subr.bf16.mxu0 0
        %682 = vmatpush1.bf16.msra.mxu0 0
        %683 = vmatprep.subr.bf16.mxu0 0
        %684 = vmatpush1.bf16.msra.mxu0 0
        %685 = vmatprep.subr.bf16.mxu0 0
        %686 = vmatpush1.bf16.msra.mxu0 0
        %687 = vmatprep.subr.bf16.mxu0 0
        %688 = vmatpush1.bf16.msra.mxu0 0
        %689 = vmatprep.subr.bf16.mxu0 0
        %690 = vmatpush1.bf16.msra.mxu0 0
        %691 = vmatprep.subr.bf16.mxu0 0
        %692 = vmatpush1.bf16.msra.mxu0 0
        %693 = vmatprep.subr.bf16.mxu0 0
        %694 = vmatpush1.bf16.msra.mxu0 0
        %695 = vmatprep.mubr.bf16.mxu0 0
        %696 = vmatmul.mubr.bf16.gmra.mrb[0].mxu0 %v505
        %v697 = vpop.f32.mrb[0].mxu0
        %v698 = vadd.f32 %v303, %v697
        %v699 = vpop.f32.mrb[0].mxu0
        %v700 = vadd.f32 %v303, %v699
        %v701 = vpop.f32.mrb[0].mxu0
        %v702 = vadd.f32 %v308, %v701
        %v703 = vpop.f32.mrb[0].mxu0
        %v704 = vadd.f32 %v308, %v703
        %705 = vmatprep.mubr.bf16.mxu0 0
        %706 = vmatmul.mubr.bf16.gmra.mrb[0].mxu0 %v508
        %v707 = vpop.f32.mrb[0].mxu0
        %v708 = vadd.f32 %v313, %v707
        %v709 = vpop.f32.mrb[0].mxu0
        %v710 = vadd.f32 %v313, %v709
        %v711 = vpop.f32.mrb[0].mxu0
        %v712 = vpop.f32.mrb[0].mxu0
        %713 = vdwg.mxu0
        %714 = vmatprep.subr.bf16.mxu0 %v440
        %715 = vmatpush1.bf16.msra.mxu0 %v439
        %716 = vmatprep.subr.bf16.mxu0 %v458
        %717 = vmatpush1.bf16.msra.mxu0 %v457
        %718 = vmatprep.subr.bf16.mxu0 0
        %719 = vmatpush1.bf16.msra.mxu0 0
        %720 = vmatprep.subr.bf16.mxu0 0
        %721 = vmatpush1.bf16.msra.mxu0 0
        %722 = vmatprep.subr.bf16.mxu0 0
        %723 = vmatpush1.bf16.msra.mxu0 0
        %724 = vmatprep.subr.bf16.mxu0 0
        %725 = vmatpush1.bf16.msra.mxu0 0
        %726 = vmatprep.subr.bf16.mxu0 0
        %727 = vmatpush1.bf16.msra.mxu0 0
        %728 = vmatprep.subr.bf16.mxu0 0
        %729 = vmatpush1.bf16.msra.mxu0 0
        %730 = vmatprep.subr.bf16.mxu0 0
        %731 = vmatpush1.bf16.msra.mxu0 0
        %732 = vmatprep.subr.bf16.mxu0 0
        %733 = vmatpush1.bf16.msra.mxu0 0
        %734 = vmatprep.subr.bf16.mxu0 0
        %735 = vmatpush1.bf16.msra.mxu0 0
        %736 = vmatprep.subr.bf16.mxu0 0
        %737 = vmatpush1.bf16.msra.mxu0 0
        %738 = vmatprep.subr.bf16.mxu0 0
        %739 = vmatpush1.bf16.msra.mxu0 0
        %740 = vmatprep.subr.bf16.mxu0 0
        %741 = vmatpush1.bf16.msra.mxu0 0
        %742 = vmatprep.subr.bf16.mxu0 0
        %743 = vmatpush1.bf16.msra.mxu0 0
        %744 = vmatprep.subr.bf16.mxu0 0
        %745 = vmatpush1.bf16.msra.mxu0 0
        %746 = vmatprep.mubr.bf16.mxu0 0
        %747 = vmatmul.mubr.bf16.gmra.mrb[0].mxu0 %v505
        %v748 = vpop.f32.mrb[0].mxu0
        %v749 = vadd.f32 %v303, %v748
        %v750 = vpop.f32.mrb[0].mxu0
        %v751 = vadd.f32 %v303, %v750
        %v752 = vpop.f32.mrb[0].mxu0
        %v753 = vadd.f32 %v308, %v752
        %v754 = vpop.f32.mrb[0].mxu0
        %v755 = vadd.f32 %v308, %v754
        %756 = vmatprep.mubr.bf16.mxu0 0
        %757 = vmatmul.mubr.bf16.gmra.mrb[0].mxu0 %v508
        %v758 = vpop.f32.mrb[0].mxu0
        %v759 = vadd.f32 %v313, %v758
        %v760 = vpop.f32.mrb[0].mxu0
        %v761 = vadd.f32 %v313, %v760
        %v762 = vpop.f32.mrb[0].mxu0
        %v763 = vpop.f32.mrb[0].mxu0
        %764 = vdwg.mxu0
        %765 = vmatprep.subr.bf16.mxu0 %v442
        %766 = vmatpush1.bf16.msra.mxu0 %v441
        %767 = vmatprep.subr.bf16.mxu0 %v460
        %768 = vmatpush1.bf16.msra.mxu0 %v459
        %769 = vmatprep.subr.bf16.mxu0 0
        %770 = vmatpush1.bf16.msra.mxu0 0
        %771 = vmatprep.subr.bf16.mxu0 0
        %772 = vmatpush1.bf16.msra.mxu0 0
        %773 = vmatprep.subr.bf16.mxu0 0
        %774 = vmatpush1.bf16.msra.mxu0 0
        %775 = vmatprep.subr.bf16.mxu0 0
        %776 = vmatpush1.bf16.msra.mxu0 0
        %777 = vmatprep.subr.bf16.mxu0 0
        %778 = vmatpush1.bf16.msra.mxu0 0
        %779 = vmatprep.subr.bf16.mxu0 0
        %780 = vmatpush1.bf16.msra.mxu0 0
        %781 = vmatprep.subr.bf16.mxu0 0
        %782 = vmatpush1.bf16.msra.mxu0 0
        %783 = vmatprep.subr.bf16.mxu0 0
        %784 = vmatpush1.bf16.msra.mxu0 0
        %785 = vmatprep.subr.bf16.mxu0 0
        %786 = vmatpush1.bf16.msra.mxu0 0
        %787 = vmatprep.subr.bf16.mxu0 0
        %788 = vmatpush1.bf16.msra.mxu0 0
        %789 = vmatprep.subr.bf16.mxu0 0
        %790 = vmatpush1.bf16.msra.mxu0 0
        %791 = vmatprep.subr.bf16.mxu0 0
        %792 = vmatpush1.bf16.msra.mxu0 0
        %793 = vmatprep.subr.bf16.mxu0 0
        %794 = vmatpush1.bf16.msra.mxu0 0
        %795 = vmatprep.subr.bf16.mxu0 0
        %796 = vmatpush1.bf16.msra.mxu0 0
        %797 = vmatprep.mubr.bf16.mxu0 0
        %798 = vmatmul.mubr.bf16.gmra.mrb[0].mxu0 %v505
        %v799 = vpop.f32.mrb[0].mxu0
        %v800 = vadd.f32 %v303, %v799
        %v801 = vpop.f32.mrb[0].mxu0
        %v802 = vadd.f32 %v303, %v801
        %v803 = vpop.f32.mrb[0].mxu0
        %v804 = vadd.f32 %v308, %v803
        %v805 = vpop.f32.mrb[0].mxu0
        %v806 = vadd.f32 %v308, %v805
        %807 = vmatprep.mubr.bf16.mxu0 0
        %808 = vmatmul.mubr.bf16.gmra.mrb[0].mxu0 %v508
        %v809 = vpop.f32.mrb[0].mxu0
        %v810 = vadd.f32 %v313, %v809
        %v811 = vpop.f32.mrb[0].mxu0
        %v812 = vadd.f32 %v313, %v811
        %v813 = vpop.f32.mrb[0].mxu0
        %v814 = vpop.f32.mrb[0].mxu0
        %815 = vdwg.mxu0
        %816 = vmatprep.subr.bf16.mxu0 %v444
        %817 = vmatpush1.bf16.msra.mxu0 %v443
        %818 = vmatprep.subr.bf16.mxu0 %v462
        %819 = vmatpush1.bf16.msra.mxu0 %v461
        %820 = vmatprep.subr.bf16.mxu0 0
        %821 = vmatpush1.bf16.msra.mxu0 0
        %822 = vmatprep.subr.bf16.mxu0 0
        %823 = vmatpush1.bf16.msra.mxu0 0
        %824 = vmatprep.subr.bf16.mxu0 0
        %825 = vmatpush1.bf16.msra.mxu0 0
        %826 = vmatprep.subr.bf16.mxu0 0
        %827 = vmatpush1.bf16.msra.mxu0 0
        %828 = vmatprep.subr.bf16.mxu0 0
        %829 = vmatpush1.bf16.msra.mxu0 0
        %830 = vmatprep.subr.bf16.mxu0 0
        %831 = vmatpush1.bf16.msra.mxu0 0
        %832 = vmatprep.subr.bf16.mxu0 0
        %833 = vmatpush1.bf16.msra.mxu0 0
        %834 = vmatprep.subr.bf16.mxu0 0
        %835 = vmatpush1.bf16.msra.mxu0 0
        %836 = vmatprep.subr.bf16.mxu0 0
        %837 = vmatpush1.bf16.msra.mxu0 0
        %838 = vmatprep.subr.bf16.mxu0 0
        %839 = vmatpush1.bf16.msra.mxu0 0
        %840 = vmatprep.subr.bf16.mxu0 0
        %841 = vmatpush1.bf16.msra.mxu0 0
        %842 = vmatprep.subr.bf16.mxu0 0
        %843 = vmatpush1.bf16.msra.mxu0 0
        %844 = vmatprep.subr.bf16.mxu0 0
        %845 = vmatpush1.bf16.msra.mxu0 0
        %846 = vmatprep.subr.bf16.mxu0 0
        %847 = vmatpush1.bf16.msra.mxu0 0
        %848 = vmatprep.mubr.bf16.mxu0 0
        %849 = vmatmul.mubr.bf16.gmra.mrb[0].mxu0 %v505
        %v850 = vpop.f32.mrb[0].mxu0
        %v851 = vadd.f32 %v303, %v850
        %v852 = vpop.f32.mrb[0].mxu0
        %v853 = vadd.f32 %v303, %v852
        %v854 = vpop.f32.mrb[0].mxu0
        %v855 = vadd.f32 %v308, %v854
        %v856 = vpop.f32.mrb[0].mxu0
        %v857 = vadd.f32 %v308, %v856
        %858 = vmatprep.mubr.bf16.mxu0 0
        %859 = vmatmul.mubr.bf16.gmra.mrb[0].mxu0 %v508
        %v860 = vpop.f32.mrb[0].mxu0
        %v861 = vadd.f32 %v313, %v860
        %v862 = vpop.f32.mrb[0].mxu0
        %v863 = vadd.f32 %v313, %v862
        %v864 = vpop.f32.mrb[0].mxu0
        %v865 = vpop.f32.mrb[0].mxu0
        %866 = vdwg.mxu0
        %867 = vmatprep.subr.bf16.mxu0 %v446
        %868 = vmatpush1.bf16.msra.mxu0 %v445
        %869 = vmatprep.subr.bf16.mxu0 %v464
        %870 = vmatpush1.bf16.msra.mxu0 %v463
        %871 = vmatprep.subr.bf16.mxu0 0
        %872 = vmatpush1.bf16.msra.mxu0 0
        %873 = vmatprep.subr.bf16.mxu0 0
        %874 = vmatpush1.bf16.msra.mxu0 0
        %875 = vmatprep.subr.bf16.mxu0 0
        %876 = vmatpush1.bf16.msra.mxu0 0
        %877 = vmatprep.subr.bf16.mxu0 0
        %878 = vmatpush1.bf16.msra.mxu0 0
        %879 = vmatprep.subr.bf16.mxu0 0
        %880 = vmatpush1.bf16.msra.mxu0 0
        %881 = vmatprep.subr.bf16.mxu0 0
        %882 = vmatpush1.bf16.msra.mxu0 0
        %883 = vmatprep.subr.bf16.mxu0 0
        %884 = vmatpush1.bf16.msra.mxu0 0
        %885 = vmatprep.subr.bf16.mxu0 0
        %886 = vmatpush1.bf16.msra.mxu0 0
        %887 = vmatprep.subr.bf16.mxu0 0
        %888 = vmatpush1.bf16.msra.mxu0 0
        %889 = vmatprep.subr.bf16.mxu0 0
        %890 = vmatpush1.bf16.msra.mxu0 0
        %891 = vmatprep.subr.bf16.mxu0 0
        %892 = vmatpush1.bf16.msra.mxu0 0
        %893 = vmatprep.subr.bf16.mxu0 0
        %894 = vmatpush1.bf16.msra.mxu0 0
        %895 = vmatprep.subr.bf16.mxu0 0
        %896 = vmatpush1.bf16.msra.mxu0 0
        %897 = vmatprep.subr.bf16.mxu0 0
        %898 = vmatpush1.bf16.msra.mxu0 0
        %899 = vmatprep.mubr.bf16.mxu0 0
        %900 = vmatmul.mubr.bf16.gmra.mrb[0].mxu0 %v505
        %v901 = vpop.f32.mrb[0].mxu0
        %v902 = vadd.f32 %v303, %v901
        %v903 = vpop.f32.mrb[0].mxu0
        %v904 = vadd.f32 %v303, %v903
        %v905 = vpop.f32.mrb[0].mxu0
        %v906 = vadd.f32 %v308, %v905
        %v907 = vpop.f32.mrb[0].mxu0
        %v908 = vadd.f32 %v308, %v907
        %909 = vmatprep.mubr.bf16.mxu0 0
        %910 = vmatmul.mubr.bf16.gmra.mrb[0].mxu0 %v508
        %v911 = vpop.f32.mrb[0].mxu0
        %v912 = vadd.f32 %v313, %v911
        %v913 = vpop.f32.mrb[0].mxu0
        %v914 = vadd.f32 %v313, %v913
        %v915 = vpop.f32.mrb[0].mxu0
        %v916 = vpop.f32.mrb[0].mxu0
        %917 = vdwg.mxu0
        %918 = vmatprep.subr.bf16.mxu0 %v448
        %919 = vmatpush1.bf16.msra.mxu0 %v447
        %920 = vmatprep.subr.bf16.mxu0 %v466
        %921 = vmatpush1.bf16.msra.mxu0 %v465
        %922 = vmatprep.subr.bf16.mxu0 0
        %923 = vmatpush1.bf16.msra.mxu0 0
        %924 = vmatprep.subr.bf16.mxu0 0
        %925 = vmatpush1.bf16.msra.mxu0 0
        %926 = vmatprep.subr.bf16.mxu0 0
        %927 = vmatpush1.bf16.msra.mxu0 0
        %928 = vmatprep.subr.bf16.mxu0 0
        %929 = vmatpush1.bf16.msra.mxu0 0
        %930 = vmatprep.subr.bf16.mxu0 0
        %931 = vmatpush1.bf16.msra.mxu0 0
        %932 = vmatprep.subr.bf16.mxu0 0
        %933 = vmatpush1.bf16.msra.mxu0 0
        %934 = vmatprep.subr.bf16.mxu0 0
        %935 = vmatpush1.bf16.msra.mxu0 0
        %936 = vmatprep.subr.bf16.mxu0 0
        %937 = vmatpush1.bf16.msra.mxu0 0
        %938 = vmatprep.subr.bf16.mxu0 0
        %939 = vmatpush1.bf16.msra.mxu0 0
        %940 = vmatprep.subr.bf16.mxu0 0
        %941 = vmatpush1.bf16.msra.mxu0 0
        %942 = vmatprep.subr.bf16.mxu0 0
        %943 = vmatpush1.bf16.msra.mxu0 0
        %944 = vmatprep.subr.bf16.mxu0 0
        %945 = vmatpush1.bf16.msra.mxu0 0
        %946 = vmatprep.subr.bf16.mxu0 0
        %947 = vmatpush1.bf16.msra.mxu0 0
        %948 = vmatprep.subr.bf16.mxu0 0
        %949 = vmatpush1.bf16.msra.mxu0 0
        %950 = vmatprep.mubr.bf16.mxu0 0
        %951 = vmatmul.mubr.bf16.gmra.mrb[0].mxu0 %v505
        %v952 = vpop.f32.mrb[0].mxu0
        %v953 = vadd.f32 %v303, %v952
        %v954 = vpop.f32.mrb[0].mxu0
        %v955 = vadd.f32 %v303, %v954
        %v956 = vpop.f32.mrb[0].mxu0
        %v957 = vadd.f32 %v308, %v956
        %v958 = vpop.f32.mrb[0].mxu0
        %v959 = vadd.f32 %v308, %v958
        %960 = vmatprep.mubr.bf16.mxu0 0
        %961 = vmatmul.mubr.bf16.gmra.mrb[0].mxu0 %v508
        %v962 = vpop.f32.mrb[0].mxu0
        %v963 = vadd.f32 %v313, %v962
        %v964 = vpop.f32.mrb[0].mxu0
        %v965 = vadd.f32 %v313, %v964
        %v966 = vpop.f32.mrb[0].mxu0
        %v967 = vpop.f32.mrb[0].mxu0
        %968 = vdwg.mxu0
        %v969 = vmax.f32 %v545, 0.0
        %v970 = vmax.f32 %v547, 0.0
        %v971 = vmax.f32 %v596, 0.0
        %v972 = vmax.f32 %v598, 0.0
        %v973 = vmax.f32 %v647, 0.0
        %v974 = vmax.f32 %v649, 0.0
        %v975 = vmax.f32 %v698, 0.0
        %v976 = vmax.f32 %v700, 0.0
        %v977 = vmax.f32 %v749, 0.0
        %v978 = vmax.f32 %v751, 0.0
        %v979 = vmax.f32 %v800, 0.0
        %v980 = vmax.f32 %v802, 0.0
        %v981 = vmax.f32 %v851, 0.0
        %v982 = vmax.f32 %v853, 0.0
        %v983 = vmax.f32 %v902, 0.0
        %v984 = vmax.f32 %v904, 0.0
        %v985 = vmax.f32 %v953, 0.0
        %v986 = vmax.f32 %v955, 0.0
        %v987 = vmax.f32 %v549, 0.0
        %v988 = vmax.f32 %v551, 0.0
        %v989 = vmax.f32 %v600, 0.0
        %v990 = vmax.f32 %v602, 0.0
        %v991 = vmax.f32 %v651, 0.0
        %v992 = vmax.f32 %v653, 0.0
        %v993 = vmax.f32 %v702, 0.0
        %v994 = vmax.f32 %v704, 0.0
        %v995 = vmax.f32 %v753, 0.0
        %v996 = vmax.f32 %v755, 0.0
        %v997 = vmax.f32 %v804, 0.0
        %v998 = vmax.f32 %v806, 0.0
        %v999 = vmax.f32 %v855, 0.0
        %v1000 = vmax.f32 %v857, 0.0
        %v1001 = vmax.f32 %v906, 0.0
        %v1002 = vmax.f32 %v908, 0.0
        %v1003 = vmax.f32 %v957, 0.0
        %v1004 = vmax.f32 %v959, 0.0
        %v1005 = vmax.f32 %v555, 0.0
        %v1006 = vmax.f32 %v557, 0.0
        %v1007 = vmax.f32 %v606, 0.0
        %v1008 = vmax.f32 %v608, 0.0
        %v1009 = vmax.f32 %v657, 0.0
        %v1010 = vmax.f32 %v659, 0.0
        %v1011 = vmax.f32 %v708, 0.0
        %v1012 = vmax.f32 %v710, 0.0
        %v1013 = vmax.f32 %v759, 0.0
        %v1014 = vmax.f32 %v761, 0.0
        %v1015 = vmax.f32 %v810, 0.0
        %v1016 = vmax.f32 %v812, 0.0
        %v1017 = vmax.f32 %v861, 0.0
        %v1018 = vmax.f32 %v863, 0.0
        %v1019 = vmax.f32 %v912, 0.0
        %v1020 = vmax.f32 %v914, 0.0
        %v1021 = vmax.f32 %v963, 0.0
        %v1022 = vmax.f32 %v965, 0.0
        %1023 = vst [vmem:[%s254] sm:$0xff] %v969
        %1024 = vst [vmem:[%s254 + $0x8] sm:$0xff] %v970
        %1025 = vst [vmem:[%s254 + $0x10] sm:$0xff] %v971
        %1026 = vst [vmem:[%s254 + $0x18] sm:$0xff] %v972
        %1027 = vst [vmem:[%s254 + $0x20] sm:$0xff] %v973
        %1028 = vst [vmem:[%s254 + $0x28] sm:$0xff] %v974
        %1029 = vst [vmem:[%s254 + $0x30] sm:$0xff] %v975
        %1030 = vst [vmem:[%s254 + $0x38] sm:$0xff] %v976
        %1031 = vst [vmem:[%s254 + $0x40] sm:$0xff] %v977
        %1032 = vst [vmem:[%s254 + $0x48] sm:$0xff] %v978
        %1033 = vst [vmem:[%s254 + $0x50] sm:$0xff] %v979
        %1034 = vst [vmem:[%s254 + $0x58] sm:$0xff] %v980
        %1035 = vst [vmem:[%s254 + $0x60] sm:$0xff] %v981
        %1036 = vst [vmem:[%s254 + $0x68] sm:$0xff] %v982
        %1037 = vst [vmem:[%s254 + $0x70] sm:$0xff] %v983
        %1038 = vst [vmem:[%s254 + $0x78] sm:$0xff] %v984
        %1039 = vst [vmem:[%s254 + $0x80] sm:$0xff] %v985
        %1040 = vst [vmem:[%s254 + $0x88] sm:$0xff] %v986
        %1041 = vst [vmem:[%s254 + $0x90] sm:$0xff] %v987
        %1042 = vst [vmem:[%s254 + $0x98] sm:$0xff] %v988
        %1043 = vst [vmem:[%s254 + $0xa0] sm:$0xff] %v989
        %1044 = vst [vmem:[%s254 + $0xa8] sm:$0xff] %v990
        %1045 = vst [vmem:[%s254 + $0xb0] sm:$0xff] %v991
        %1046 = vst [vmem:[%s254 + $0xb8] sm:$0xff] %v992
        %1047 = vst [vmem:[%s254 + $0xc0] sm:$0xff] %v993
        %1048 = vst [vmem:[%s254 + $0xc8] sm:$0xff] %v994
        %1049 = vst [vmem:[%s254 + $0xd0] sm:$0xff] %v995
        %1050 = vst [vmem:[%s254 + $0xd8] sm:$0xff] %v996
        %1051 = vst [vmem:[%s254 + $0xe0] sm:$0xff] %v997
        %1052 = vst [vmem:[%s254 + $0xe8] sm:$0xff] %v998
        %1053 = vst [vmem:[%s254 + $0xf0] sm:$0xff] %v999
        %1054 = vst [vmem:[%s254 + $0xf8] sm:$0xff] %v1000
        %1055 = vst [vmem:[%s254 + $0x100] sm:$0xff] %v1001
        %1056 = vst [vmem:[%s254 + $0x108] sm:$0xff] %v1002
        %1057 = vst [vmem:[%s254 + $0x110] sm:$0xff] %v1003
        %1058 = vst [vmem:[%s254 + $0x118] sm:$0xff] %v1004
        %1059 = vst [vmem:[%s254 + $0x120] sm:$0xf] %v1005
        %1060 = vst [vmem:[%s254 + $0x128] sm:$0xf] %v1006
        %1061 = vst [vmem:[%s254 + $0x130] sm:$0xf] %v1007
        %1062 = vst [vmem:[%s254 + $0x138] sm:$0xf] %v1008
        %1063 = vst [vmem:[%s254 + $0x140] sm:$0xf] %v1009
        %1064 = vst [vmem:[%s254 + $0x148] sm:$0xf] %v1010
        %1065 = vst [vmem:[%s254 + $0x150] sm:$0xf] %v1011
        %1066 = vst [vmem:[%s254 + $0x158] sm:$0xf] %v1012
        %1067 = vst [vmem:[%s254 + $0x160] sm:$0xf] %v1013
        %1068 = vst [vmem:[%s254 + $0x168] sm:$0xf] %v1014
        %1069 = vst [vmem:[%s254 + $0x170] sm:$0xf] %v1015
        %1070 = vst [vmem:[%s254 + $0x178] sm:$0xf] %v1016
        %1071 = vst [vmem:[%s254 + $0x180] sm:$0xf] %v1017
        %1072 = vst [vmem:[%s254 + $0x188] sm:$0xf] %v1018
        %1073 = vst [vmem:[%s254 + $0x190] sm:$0xf] %v1019
        %1074 = vst [vmem:[%s254 + $0x198] sm:$0xf] %v1020
        %1075 = vst [vmem:[%s254 + $0x1a0] sm:$0xf] %v1021
        %1076 = vst [vmem:[%s254 + $0x1a8] sm:$0xf] %v1022
        %s1077 = sand.u32 %s90, 1
        %s1078 = sand.u32 %s90, 1
        %s1079 = smul.addr %s1078, 432
        %s1080 = scalar_lea.vmem [#allocation3], %s1079
        // Predicated region
        $region56: #{my_dsp_net_forward.4} parent=50 // pred_check
          %p1081 = pneg %p100
        $region57: #{my_dsp_net_forward.4} parent=50 // pred_check_branch
          %1083 = sbr.rel (%p1081) target = $region59
        $region58: #{my_dsp_net_forward.4} parent=50 // pred_region
          %s1084 = smul.u32 18, %s14
          %s1085 = smul.addr %s1084, 8
          %s1086 = scalar_lea.vmem %s3, %s1085
          // Predicated region
          $region60: #{my_dsp_net_forward.4} parent=58 // pred_check
            _
          $region61: #{my_dsp_net_forward.4} parent=58 // pred_check_branch
            %1088 = sbr.rel (0) target = $region63
          $region62: #{my_dsp_net_forward.4} parent=58 // pred_region
            // Predicated region
            $region64: #{my_dsp_net_forward.4} parent=62 // pred_check
              _
            $region65: #{my_dsp_net_forward.4} parent=62 // pred_check_branch
              %1090 = sbr.rel (0) target = $region67
            $region66: #{my_dsp_net_forward.4} parent=62 // pred_region
              loop: start=0, step=1, limit=1
              $region68: #{my_dsp_net_forward.4} parent=66 // loop_pre_header
                _
              $region69: #{my_dsp_net_forward.4} parent=66 // loop_header
                %s1092 = sphi 0, %s1096
                %p1093 = scmp.ge.s32.totalorder %s1092, 1
                %s1097 = sphi %s1080, %s1080
                %s1098 = sphi %s1086, %s1086
              $region70: #{my_dsp_net_forward.4} parent=66 // loop_header_branch
                %1095 = sbr.rel (%p1093) target = $region74
              $region71: #{my_dsp_net_forward.4} parent=66 // loop_body
                %v1099 = vld [vmem:[%s1097] sm:$0xff]
                %1100 = vst [vmem:[%s1098] sm:$0xff] %v1099
                %v1101 = vld [vmem:[%s1097 + $0x8] sm:$0xff]
                %1102 = vst [vmem:[%s1098 + $0x8] sm:$0xff] %v1101
                %v1103 = vld [vmem:[%s1097 + $0x10] sm:$0xff]
                %1104 = vst [vmem:[%s1098 + $0x10] sm:$0xff] %v1103
                %v1105 = vld [vmem:[%s1097 + $0x18] sm:$0xff]
                %1106 = vst [vmem:[%s1098 + $0x18] sm:$0xff] %v1105
                %v1107 = vld [vmem:[%s1097 + $0x20] sm:$0xff]
                %1108 = vst [vmem:[%s1098 + $0x20] sm:$0xff] %v1107
                %v1109 = vld [vmem:[%s1097 + $0x28] sm:$0xff]
                %1110 = vst [vmem:[%s1098 + $0x28] sm:$0xff] %v1109
                %v1111 = vld [vmem:[%s1097 + $0x30] sm:$0xff]
                %1112 = vst [vmem:[%s1098 + $0x30] sm:$0xff] %v1111
                %v1113 = vld [vmem:[%s1097 + $0x38] sm:$0xff]
                %1114 = vst [vmem:[%s1098 + $0x38] sm:$0xff] %v1113
                %v1115 = vld [vmem:[%s1097 + $0x40] sm:$0xff]
                %1116 = vst [vmem:[%s1098 + $0x40] sm:$0xff] %v1115
                %v1117 = vld [vmem:[%s1097 + $0x48] sm:$0xff]
                %1118 = vst [vmem:[%s1098 + $0x48] sm:$0xff] %v1117
                %v1119 = vld [vmem:[%s1097 + $0x50] sm:$0xff]
                %1120 = vst [vmem:[%s1098 + $0x50] sm:$0xff] %v1119
                %v1121 = vld [vmem:[%s1097 + $0x58] sm:$0xff]
                %1122 = vst [vmem:[%s1098 + $0x58] sm:$0xff] %v1121
                %v1123 = vld [vmem:[%s1097 + $0x60] sm:$0xff]
                %1124 = vst [vmem:[%s1098 + $0x60] sm:$0xff] %v1123
                %v1125 = vld [vmem:[%s1097 + $0x68] sm:$0xff]
                %1126 = vst [vmem:[%s1098 + $0x68] sm:$0xff] %v1125
                %v1127 = vld [vmem:[%s1097 + $0x70] sm:$0xff]
                %1128 = vst [vmem:[%s1098 + $0x70] sm:$0xff] %v1127
                %v1129 = vld [vmem:[%s1097 + $0x78] sm:$0xff]
                %1130 = vst [vmem:[%s1098 + $0x78] sm:$0xff] %v1129
                %v1131 = vld [vmem:[%s1097 + $0x80] sm:$0xff]
                %1132 = vst [vmem:[%s1098 + $0x80] sm:$0xff] %v1131
                %v1133 = vld [vmem:[%s1097 + $0x88] sm:$0xff]
                %1134 = vst [vmem:[%s1098 + $0x88] sm:$0xff] %v1133
                %v1135 = vld [vmem:[%s1097 + $0x90] sm:$0xff]
                %1136 = vst [vmem:[%s1098 + $0x120] sm:$0xff] %v1135
                %v1137 = vld [vmem:[%s1097 + $0x98] sm:$0xff]
                %1138 = vst [vmem:[%s1098 + $0x128] sm:$0xff] %v1137
                %v1139 = vld [vmem:[%s1097 + $0xa0] sm:$0xff]
                %1140 = vst [vmem:[%s1098 + $0x130] sm:$0xff] %v1139
                %v1141 = vld [vmem:[%s1097 + $0xa8] sm:$0xff]
                %1142 = vst [vmem:[%s1098 + $0x138] sm:$0xff] %v1141
                %v1143 = vld [vmem:[%s1097 + $0xb0] sm:$0xff]
                %1144 = vst [vmem:[%s1098 + $0x140] sm:$0xff] %v1143
                %v1145 = vld [vmem:[%s1097 + $0xb8] sm:$0xff]
                %1146 = vst [vmem:[%s1098 + $0x148] sm:$0xff] %v1145
                %v1147 = vld [vmem:[%s1097 + $0xc0] sm:$0xff]
                %1148 = vst [vmem:[%s1098 + $0x150] sm:$0xff] %v1147
                %v1149 = vld [vmem:[%s1097 + $0xc8] sm:$0xff]
                %1150 = vst [vmem:[%s1098 + $0x158] sm:$0xff] %v1149
                %v1151 = vld [vmem:[%s1097 + $0xd0] sm:$0xff]
                %1152 = vst [vmem:[%s1098 + $0x160] sm:$0xff] %v1151
                %v1153 = vld [vmem:[%s1097 + $0xd8] sm:$0xff]
                %1154 = vst [vmem:[%s1098 + $0x168] sm:$0xff] %v1153
                %v1155 = vld [vmem:[%s1097 + $0xe0] sm:$0xff]
                %1156 = vst [vmem:[%s1098 + $0x170] sm:$0xff] %v1155
                %v1157 = vld [vmem:[%s1097 + $0xe8] sm:$0xff]
                %1158 = vst [vmem:[%s1098 + $0x178] sm:$0xff] %v1157
                %v1159 = vld [vmem:[%s1097 + $0xf0] sm:$0xff]
                %1160 = vst [vmem:[%s1098 + $0x180] sm:$0xff] %v1159
                %v1161 = vld [vmem:[%s1097 + $0xf8] sm:$0xff]
                %1162 = vst [vmem:[%s1098 + $0x188] sm:$0xff] %v1161
                %v1163 = vld [vmem:[%s1097 + $0x100] sm:$0xff]
                %1164 = vst [vmem:[%s1098 + $0x190] sm:$0xff] %v1163
                %v1165 = vld [vmem:[%s1097 + $0x108] sm:$0xff]
                %1166 = vst [vmem:[%s1098 + $0x198] sm:$0xff] %v1165
                %v1167 = vld [vmem:[%s1097 + $0x110] sm:$0xff]
                %1168 = vst [vmem:[%s1098 + $0x1a0] sm:$0xff] %v1167
                %v1169 = vld [vmem:[%s1097 + $0x118] sm:$0xff]
                %1170 = vst [vmem:[%s1098 + $0x1a8] sm:$0xff] %v1169
                %v1171 = vld [vmem:[%s1097 + $0x120] sm:$0xff]
                %1172 = vst [vmem:[%s1098 + $0x240] sm:$0xff] %v1171
                %v1173 = vld [vmem:[%s1097 + $0x128] sm:$0xff]
                %1174 = vst [vmem:[%s1098 + $0x248] sm:$0xff] %v1173
                %v1175 = vld [vmem:[%s1097 + $0x130] sm:$0xff]
                %1176 = vst [vmem:[%s1098 + $0x250] sm:$0xff] %v1175
                %v1177 = vld [vmem:[%s1097 + $0x138] sm:$0xff]
                %1178 = vst [vmem:[%s1098 + $0x258] sm:$0xff] %v1177
                %v1179 = vld [vmem:[%s1097 + $0x140] sm:$0xff]
                %1180 = vst [vmem:[%s1098 + $0x260] sm:$0xff] %v1179
                %v1181 = vld [vmem:[%s1097 + $0x148] sm:$0xff]
                %1182 = vst [vmem:[%s1098 + $0x268] sm:$0xff] %v1181
                %v1183 = vld [vmem:[%s1097 + $0x150] sm:$0xff]
                %1184 = vst [vmem:[%s1098 + $0x270] sm:$0xff] %v1183
                %v1185 = vld [vmem:[%s1097 + $0x158] sm:$0xff]
                %1186 = vst [vmem:[%s1098 + $0x278] sm:$0xff] %v1185
                %v1187 = vld [vmem:[%s1097 + $0x160] sm:$0xff]
                %1188 = vst [vmem:[%s1098 + $0x280] sm:$0xff] %v1187
                %v1189 = vld [vmem:[%s1097 + $0x168] sm:$0xff]
                %1190 = vst [vmem:[%s1098 + $0x288] sm:$0xff] %v1189
                %v1191 = vld [vmem:[%s1097 + $0x170] sm:$0xff]
                %1192 = vst [vmem:[%s1098 + $0x290] sm:$0xff] %v1191
                %v1193 = vld [vmem:[%s1097 + $0x178] sm:$0xff]
                %1194 = vst [vmem:[%s1098 + $0x298] sm:$0xff] %v1193
                %v1195 = vld [vmem:[%s1097 + $0x180] sm:$0xff]
                %1196 = vst [vmem:[%s1098 + $0x2a0] sm:$0xff] %v1195
                %v1197 = vld [vmem:[%s1097 + $0x188] sm:$0xff]
                %1198 = vst [vmem:[%s1098 + $0x2a8] sm:$0xff] %v1197
                %v1199 = vld [vmem:[%s1097 + $0x190] sm:$0xff]
                %1200 = vst [vmem:[%s1098 + $0x2b0] sm:$0xff] %v1199
                %v1201 = vld [vmem:[%s1097 + $0x198] sm:$0xff]
                %1202 = vst [vmem:[%s1098 + $0x2b8] sm:$0xff] %v1201
                %v1203 = vld [vmem:[%s1097 + $0x1a0] sm:$0xff]
                %1204 = vst [vmem:[%s1098 + $0x2c0] sm:$0xff] %v1203
                %v1205 = vld [vmem:[%s1097 + $0x1a8] sm:$0xff]
                %1206 = vst [vmem:[%s1098 + $0x2c8] sm:$0xff] %v1205
              $region72: #{my_dsp_net_forward.4} parent=66 // loop_footer
                %s1096 = sadd.s32 1, %s1092
              $region73: #{my_dsp_net_forward.4} parent=66 // loop_footer_branch
                %1091 = sbr.rel target = $region69
              $region74: #{my_dsp_net_forward.4} parent=66 // loop_exit
                _
            $region67: #{my_dsp_net_forward.4} parent=62 // pred_fallthru
              _
            // Predicated region
            $region75: #{my_dsp_net_forward.4} parent=62 // pred_check
              _
            $region76: #{my_dsp_net_forward.4} parent=62 // pred_check_branch
              %1208 = sbr.rel target = $region78
            $region77: #{my_dsp_net_forward.4} parent=62 // pred_region
              _
            $region78: #{my_dsp_net_forward.4} parent=62 // pred_fallthru
              _
          $region63: #{my_dsp_net_forward.4} parent=58 // pred_fallthru
            _
          %1209 = vnop
        $region59: #{my_dsp_net_forward.4} parent=50 // pred_fallthru
          _
      $region51: #{my_dsp_net_forward.4} parent=5 // pred_fallthru
        _
      %p1210 = scmp.le.s32.totalorder 2, %s9
      // Predicated region
      $region79: #{my_dsp_net_forward.4} parent=5 // pred_check
        %p1211 = pneg %p1210
      $region80: #{my_dsp_net_forward.4} parent=5 // pred_check_branch
        %1213 = sbr.rel (%p1211) target = $region82
      $region81: #{my_dsp_net_forward.4} parent=5 // pred_region
        %s1214 = ssub.s32 %s9, 2
        // Predicated region
        $region83: #{my_dsp_net_forward.4} parent=81 // pred_check
          %p1215 = pneg %p106
        $region84: #{my_dsp_net_forward.4} parent=81 // pred_check_branch
          %1217 = sbr.rel (%p1215) target = $region86
        $region85: #{my_dsp_net_forward.4} parent=81 // pred_region
          %s1218 = sand.u32 %s91, 1
          %s1219 = sand.u32 %s91, 1
          %s1220 = smul.addr %s1219, 432
          %s1221 = scalar_lea.vmem [#allocation3], %s1220
        $region86: #{my_dsp_net_forward.4} parent=81 // pred_fallthru
          _
      $region82: #{my_dsp_net_forward.4} parent=5 // pred_fallthru
        _
    $region6: #{my_dsp_net_forward.4} parent=1 // loop_footer
      %s13 = sadd.s32 1, %s9
    $region7: #{my_dsp_net_forward.4} parent=1 // loop_footer_branch
      %8 = sbr.rel target = $region3
    $region8: #{my_dsp_net_forward.4} parent=1 // loop_exit
      _

// kernel: my_dsp_net_forward.5
$region0: #{my_dsp_net_forward.5}
  #allocation0 [shape = 'u32[]', space=smem, size = 0x4, offset = 0x4, fixed_abs, tag = 'smem constant byte address 0x4 - core index']
  #allocation1 [shape = 'u32[144,128]{1,0:T(1,128)}', space=vmem, size = 0x12000, scoped, tag = 'internal scratch']
  %s0 = inlined_call_operand.vmem [shape: bf16[40,224], index: 0, kind: input, shape index: {}]
  %s1 = inlined_call_operand.vmem [shape: bf16[224,648], index: 1, kind: input, shape index: {}]
  %s2 = inlined_call_operand.vmem [shape: f32[40,1], index: 2, kind: input, shape index: {}]
  %s3 = inlined_call_operand.vmem [shape: f32[40,648], index: 3, kind: output, shape index: {}]
  %s4 = sld [smem:[#allocation0]]
  $region22: #{my_dsp_net_forward.5} parent=0
    _
  %s6 = ssub.s32 1, %s4
  %s7 = scalar_select 0, %s6, %s4
  // Predicated region
  $region2: #{my_dsp_net_forward.5} parent=0 // pred_check
    _
  $region3: #{my_dsp_net_forward.5} parent=0 // pred_check_branch
    %9 = sbr.rel (0) target = $region5
  $region4: #{my_dsp_net_forward.5} parent=0 // pred_region
    _
  $region5: #{my_dsp_net_forward.5} parent=0 // pred_fallthru
    _
  // Predicated region
  $region6: #{my_dsp_net_forward.5} parent=0 // pred_check
    _
  $region7: #{my_dsp_net_forward.5} parent=0 // pred_check_branch
    %11 = sbr.rel (0) target = $region9
  $region8: #{my_dsp_net_forward.5} parent=0 // pred_region
    _
  $region9: #{my_dsp_net_forward.5} parent=0 // pred_fallthru
    _
  // Predicated region
  $region10: #{my_dsp_net_forward.5} parent=0 // pred_check
    _
  $region11: #{my_dsp_net_forward.5} parent=0 // pred_check_branch
    %13 = sbr.rel (0) target = $region13
  $region12: #{my_dsp_net_forward.5} parent=0 // pred_region
    _
  $region13: #{my_dsp_net_forward.5} parent=0 // pred_fallthru
    _
  %v15 = vld [vmem:[%s0] sm:$0xff]
  %v16 = vld [vmem:[%s0 + $0x8] sm:$0xff]
  %v17 = vld [vmem:[%s0 + $0x10] sm:$0xff]
  %v18 = vld [vmem:[%s0 + $0x18] sm:$0xff]
  %v19 = vld [vmem:[%s0 + $0x20] sm:$0xff]
  %v20 = vld [vmem:[%s1] sm:$0xff]
  %v21 = vld [vmem:[%s1 + $0x8] sm:$0xff]
  %v22 = vld [vmem:[%s1 + $0x10] sm:$0xff]
  %v23 = vld [vmem:[%s1 + $0x18] sm:$0xff]
  %v24 = vld [vmem:[%s1 + $0x20] sm:$0xff]
  %v25 = vld [vmem:[%s1 + $0x28] sm:$0xff]
  %v26 = vld [vmem:[%s1 + $0x30] sm:$0xff]
  %v27 = vld [vmem:[%s1 + $0x38] sm:$0xff]
  %v28 = vld [vmem:[%s1 + $0x40] sm:$0xff]
  %v29 = vld [vmem:[%s1 + $0x48] sm:$0xff]
  %v30 = vld [vmem:[%s1 + $0x50] sm:$0xff]
  %v31 = vld [vmem:[%s1 + $0x58] sm:$0xff]
  %v32 = vld [vmem:[%s1 + $0x60] sm:$0xff]
  %v33 = vld [vmem:[%s1 + $0x68] sm:$0xff]
  %v34 = vld [vmem:[%s1 + $0x70] sm:$0xff]
  %v35 = vld [vmem:[%s1 + $0x78] sm:$0xff]
  %v36 = vld [vmem:[%s1 + $0x80] sm:$0xff]
  %v37 = vld [vmem:[%s1 + $0x88] sm:$0xff]
  %v38 = vld [vmem:[%s1 + $0x90] sm:$0xff]
  %v39 = vld [vmem:[%s1 + $0x98] sm:$0xff]
  %v40 = vld [vmem:[%s1 + $0xa0] sm:$0xff]
  %v41 = vld [vmem:[%s1 + $0xa8] sm:$0xff]
  %v42 = vld [vmem:[%s1 + $0xb0] sm:$0xff]
  %v43 = vld [vmem:[%s1 + $0xb8] sm:$0xff]
  %v44 = vld [vmem:[%s1 + $0xc0] sm:$0xff]
  %v45 = vld [vmem:[%s1 + $0xc8] sm:$0xff]
  %v46 = vld [vmem:[%s1 + $0xd0] sm:$0xff]
  %v47 = vld [vmem:[%s1 + $0xd8] sm:$0xff]
  %v48 = vld [vmem:[%s1 + $0xe0] sm:$0xff]
  %v49 = vld [vmem:[%s1 + $0xe8] sm:$0xff]
  %v50 = vld [vmem:[%s1 + $0xf0] sm:$0xff]
  %v51 = vld [vmem:[%s1 + $0xf8] sm:$0xff]
  %v52 = vld [vmem:[%s1 + $0x100] sm:$0xff]
  %v53 = vld [vmem:[%s1 + $0x108] sm:$0xff]
  %v54 = vld [vmem:[%s1 + $0x110] sm:$0xff]
  %v55 = vld [vmem:[%s1 + $0x118] sm:$0xff]
  %v56 = vld [vmem:[%s1 + $0x120] sm:$0xff]
  %v57 = vld [vmem:[%s1 + $0x128] sm:$0xff]
  %v58 = vld [vmem:[%s1 + $0x130] sm:$0xff]
  %v59 = vld [vmem:[%s1 + $0x138] sm:$0xff]
  %v60 = vld [vmem:[%s1 + $0x140] sm:$0xff]
  %v61 = vld [vmem:[%s1 + $0x148] sm:$0xff]
  %v62 = vld [vmem:[%s1 + $0x150] sm:$0xff]
  %v63 = vld [vmem:[%s1 + $0x158] sm:$0xff]
  %v64 = vld [vmem:[%s1 + $0x160] sm:$0xff]
  %v65 = vld [vmem:[%s1 + $0x168] sm:$0xff]
  %v66 = vld [vmem:[%s1 + $0x170] sm:$0xff]
  %v67 = vld [vmem:[%s1 + $0x178] sm:$0xff]
  %v68 = vld [vmem:[%s1 + $0x180] sm:$0xff]
  %v69 = vld [vmem:[%s1 + $0x188] sm:$0xff]
  %v70 = vld [vmem:[%s1 + $0x190] sm:$0xff]
  %v71 = vld [vmem:[%s1 + $0x198] sm:$0xff]
  %v72 = vld [vmem:[%s1 + $0x1a0] sm:$0xff]
  %v73 = vld [vmem:[%s1 + $0x1a8] sm:$0xff]
  %v74 = vld [vmem:[%s1 + $0x1b0] sm:$0xff]
  %v75 = vld [vmem:[%s1 + $0x1b8] sm:$0xff]
  %v76 = vld [vmem:[%s1 + $0x1c0] sm:$0xff]
  %v77 = vld [vmem:[%s1 + $0x1c8] sm:$0xff]
  %v78 = vld [vmem:[%s1 + $0x1d0] sm:$0xff]
  %v79 = vld [vmem:[%s1 + $0x1d8] sm:$0xff]
  %v80 = vld [vmem:[%s1 + $0x1e0] sm:$0xff]
  %v81 = vld [vmem:[%s1 + $0x1e8] sm:$0xff]
  %v82 = vld [vmem:[%s1 + $0x1f0] sm:$0xff]
  %v83 = vld [vmem:[%s1 + $0x1f8] sm:$0xff]
  %v84 = vld [vmem:[%s1 + $0x200] sm:$0xff]
  %v85 = vld [vmem:[%s1 + $0x208] sm:$0xff]
  %v86 = vld [vmem:[%s1 + $0x210] sm:$0xff]
  %v87 = vld [vmem:[%s1 + $0x218] sm:$0xff]
  %v88 = vld [vmem:[%s1 + $0x220] sm:$0xff]
  %v89 = vld [vmem:[%s1 + $0x228] sm:$0xff]
  %v90 = vld [vmem:[%s1 + $0x230] sm:$0xff]
  %v91 = vld [vmem:[%s1 + $0x238] sm:$0xff]
  %v92 = vld [vmem:[%s1 + $0x240] sm:$0xff]
  %v93 = vld [vmem:[%s1 + $0x248] sm:$0xff]
  %v94 = vld [vmem:[%s1 + $0x250] sm:$0xff]
  %v95 = vld [vmem:[%s1 + $0x258] sm:$0xff]
  %v96 = vld [vmem:[%s1 + $0x260] sm:$0xff]
  %v97 = vld [vmem:[%s1 + $0x268] sm:$0xff]
  %v98 = vld [vmem:[%s1 + $0x270] sm:$0xff]
  %v99 = vld [vmem:[%s1 + $0x278] sm:$0xff]
  %v100 = vld [vmem:[%s1 + $0x280] sm:$0xff]
  %v101 = vld [vmem:[%s1 + $0x288] sm:$0xff]
  %v102 = vld [vmem:[%s1 + $0x290] sm:$0xff]
  %v103 = vld [vmem:[%s1 + $0x298] sm:$0xff]
  %v104 = vld [vmem:[%s2] sm:$0xff]
  %v105 = vld [vmem:[%s2 + $0x8] sm:$0xff]
  %v106 = vld [vmem:[%s2 + $0x10] sm:$0xff]
  %v107 = vld [vmem:[%s2 + $0x18] sm:$0xff]
  %v108 = vld [vmem:[%s2 + $0x20] sm:$0xff]
  %110 = vset.pattern.permute.xlu0 0
  %111 = vperm.xlu0 %110, %v104
  %v112 = vpop.permute.xlu0 %111
  %115 = vset.pattern.permute.xlu0 0
  %116 = vperm.xlu0 %115, %v105
  %v117 = vpop.permute.xlu0 %116
  %120 = vset.pattern.permute.xlu0 0
  %121 = vperm.xlu0 %120, %v106
  %v122 = vpop.permute.xlu0 %121
  %125 = vset.pattern.permute.xlu0 0
  %126 = vperm.xlu0 %125, %v107
  %v127 = vpop.permute.xlu0 %126
  %130 = vset.pattern.permute.xlu0 0
  %131 = vperm.xlu0 %130, %v108
  %v132 = vpop.permute.xlu0 %131
  %v139 = vunpack.c.l.b16 %v15
  %v140 = vunpack.c.h.b16 %v15
  %v141 = vunpack.c.l.b16 %v16
  %v142 = vunpack.c.h.b16 %v16
  %v143 = vunpack.c.l.b16 %v17
  %v144 = vunpack.c.h.b16 %v17
  %v145 = vunpack.c.l.b16 %v18
  %v146 = vunpack.c.h.b16 %v18
  %v147 = vunpack.c.l.b16 %v19
  %v148 = vunpack.c.h.b16 %v19
  %v149 = vpack.c.b16 %v141, %v139
  %v150 = vpack.c.b16 %v142, %v140
  %v151 = vpack.c.b16 %v145, %v143
  %v152 = vpack.c.b16 %v146, %v144
  %v153 = vpack.c.b16 %v147, %v147
  %v154 = vpack.c.b16 %v148, %v148
  %v242 = vunpack.c.l.b16 %v20
  %v243 = vunpack.c.h.b16 %v20
  %v244 = vunpack.c.l.b16 %v21
  %v245 = vunpack.c.h.b16 %v21
  %v246 = vunpack.c.l.b16 %v22
  %v247 = vunpack.c.h.b16 %v22
  %v248 = vunpack.c.l.b16 %v23
  %v249 = vunpack.c.h.b16 %v23
  %v250 = vunpack.c.l.b16 %v24
  %v251 = vunpack.c.h.b16 %v24
  %v252 = vunpack.c.l.b16 %v25
  %v253 = vunpack.c.h.b16 %v25
  %v254 = vunpack.c.l.b16 %v26
  %v255 = vunpack.c.h.b16 %v26
  %v256 = vunpack.c.l.b16 %v27
  %v257 = vunpack.c.h.b16 %v27
  %v258 = vunpack.c.l.b16 %v28
  %v259 = vunpack.c.h.b16 %v28
  %v260 = vunpack.c.l.b16 %v29
  %v261 = vunpack.c.h.b16 %v29
  %v262 = vunpack.c.l.b16 %v30
  %v263 = vunpack.c.h.b16 %v30
  %v264 = vunpack.c.l.b16 %v31
  %v265 = vunpack.c.h.b16 %v31
  %v266 = vunpack.c.l.b16 %v32
  %v267 = vunpack.c.h.b16 %v32
  %v268 = vunpack.c.l.b16 %v33
  %v269 = vunpack.c.h.b16 %v33
  %v270 = vunpack.c.l.b16 %v34
  %v271 = vunpack.c.h.b16 %v34
  %v272 = vunpack.c.l.b16 %v35
  %v273 = vunpack.c.h.b16 %v35
  %v274 = vunpack.c.l.b16 %v36
  %v275 = vunpack.c.h.b16 %v36
  %v276 = vunpack.c.l.b16 %v37
  %v277 = vunpack.c.h.b16 %v37
  %v278 = vunpack.c.l.b16 %v38
  %v279 = vunpack.c.h.b16 %v38
  %v280 = vunpack.c.l.b16 %v39
  %v281 = vunpack.c.h.b16 %v39
  %v282 = vunpack.c.l.b16 %v40
  %v283 = vunpack.c.h.b16 %v40
  %v284 = vunpack.c.l.b16 %v41
  %v285 = vunpack.c.h.b16 %v41
  %v286 = vunpack.c.l.b16 %v42
  %v287 = vunpack.c.h.b16 %v42
  %v288 = vunpack.c.l.b16 %v43
  %v289 = vunpack.c.h.b16 %v43
  %v290 = vunpack.c.l.b16 %v44
  %v291 = vunpack.c.h.b16 %v44
  %v292 = vunpack.c.l.b16 %v45
  %v293 = vunpack.c.h.b16 %v45
  %v294 = vunpack.c.l.b16 %v46
  %v295 = vunpack.c.h.b16 %v46
  %v296 = vunpack.c.l.b16 %v47
  %v297 = vunpack.c.h.b16 %v47
  %v298 = vunpack.c.l.b16 %v48
  %v299 = vunpack.c.h.b16 %v48
  %v300 = vunpack.c.l.b16 %v49
  %v301 = vunpack.c.h.b16 %v49
  %v302 = vunpack.c.l.b16 %v50
  %v303 = vunpack.c.h.b16 %v50
  %v304 = vunpack.c.l.b16 %v51
  %v305 = vunpack.c.h.b16 %v51
  %v306 = vunpack.c.l.b16 %v52
  %v307 = vunpack.c.h.b16 %v52
  %v308 = vunpack.c.l.b16 %v53
  %v309 = vunpack.c.h.b16 %v53
  %v310 = vunpack.c.l.b16 %v54
  %v311 = vunpack.c.h.b16 %v54
  %v312 = vunpack.c.l.b16 %v55
  %v313 = vunpack.c.h.b16 %v55
  %v314 = vunpack.c.l.b16 %v56
  %v315 = vunpack.c.h.b16 %v56
  %v316 = vunpack.c.l.b16 %v57
  %v317 = vunpack.c.h.b16 %v57
  %v318 = vunpack.c.l.b16 %v58
  %v319 = vunpack.c.h.b16 %v58
  %v320 = vunpack.c.l.b16 %v59
  %v321 = vunpack.c.h.b16 %v59
  %v322 = vunpack.c.l.b16 %v60
  %v323 = vunpack.c.h.b16 %v60
  %v324 = vunpack.c.l.b16 %v61
  %v325 = vunpack.c.h.b16 %v61
  %v326 = vunpack.c.l.b16 %v62
  %v327 = vunpack.c.h.b16 %v62
  %v328 = vunpack.c.l.b16 %v63
  %v329 = vunpack.c.h.b16 %v63
  %v330 = vunpack.c.l.b16 %v64
  %v331 = vunpack.c.h.b16 %v64
  %v332 = vunpack.c.l.b16 %v65
  %v333 = vunpack.c.h.b16 %v65
  %v334 = vunpack.c.l.b16 %v66
  %v335 = vunpack.c.h.b16 %v66
  %v336 = vunpack.c.l.b16 %v67
  %v337 = vunpack.c.h.b16 %v67
  %v338 = vunpack.c.l.b16 %v68
  %v339 = vunpack.c.h.b16 %v68
  %v340 = vunpack.c.l.b16 %v69
  %v341 = vunpack.c.h.b16 %v69
  %v342 = vunpack.c.l.b16 %v70
  %v343 = vunpack.c.h.b16 %v70
  %v344 = vunpack.c.l.b16 %v71
  %v345 = vunpack.c.h.b16 %v71
  %v346 = vunpack.c.l.b16 %v72
  %v347 = vunpack.c.h.b16 %v72
  %v348 = vunpack.c.l.b16 %v73
  %v349 = vunpack.c.h.b16 %v73
  %v350 = vunpack.c.l.b16 %v74
  %v351 = vunpack.c.h.b16 %v74
  %v352 = vunpack.c.l.b16 %v75
  %v353 = vunpack.c.h.b16 %v75
  %v354 = vunpack.c.l.b16 %v76
  %v355 = vunpack.c.h.b16 %v76
  %v356 = vunpack.c.l.b16 %v77
  %v357 = vunpack.c.h.b16 %v77
  %v358 = vunpack.c.l.b16 %v78
  %v359 = vunpack.c.h.b16 %v78
  %v360 = vunpack.c.l.b16 %v79
  %v361 = vunpack.c.h.b16 %v79
  %v362 = vunpack.c.l.b16 %v80
  %v363 = vunpack.c.h.b16 %v80
  %v364 = vunpack.c.l.b16 %v81
  %v365 = vunpack.c.h.b16 %v81
  %v366 = vunpack.c.l.b16 %v82
  %v367 = vunpack.c.h.b16 %v82
  %v368 = vunpack.c.l.b16 %v83
  %v369 = vunpack.c.h.b16 %v83
  %v370 = vunpack.c.l.b16 %v84
  %v371 = vunpack.c.h.b16 %v84
  %v372 = vunpack.c.l.b16 %v85
  %v373 = vunpack.c.h.b16 %v85
  %v374 = vunpack.c.l.b16 %v86
  %v375 = vunpack.c.h.b16 %v86
  %v376 = vunpack.c.l.b16 %v87
  %v377 = vunpack.c.h.b16 %v87
  %v378 = vunpack.c.l.b16 %v88
  %v379 = vunpack.c.h.b16 %v88
  %v380 = vunpack.c.l.b16 %v89
  %v381 = vunpack.c.h.b16 %v89
  %v382 = vunpack.c.l.b16 %v90
  %v383 = vunpack.c.h.b16 %v90
  %v384 = vunpack.c.l.b16 %v91
  %v385 = vunpack.c.h.b16 %v91
  %v386 = vunpack.c.l.b16 %v92
  %v387 = vunpack.c.h.b16 %v92
  %v388 = vunpack.c.l.b16 %v93
  %v389 = vunpack.c.h.b16 %v93
  %v390 = vunpack.c.l.b16 %v94
  %v391 = vunpack.c.h.b16 %v94
  %v392 = vunpack.c.l.b16 %v95
  %v393 = vunpack.c.h.b16 %v95
  %v394 = vunpack.c.l.b16 %v96
  %v395 = vunpack.c.h.b16 %v96
  %v396 = vunpack.c.l.b16 %v97
  %v397 = vunpack.c.h.b16 %v97
  %v398 = vunpack.c.l.b16 %v98
  %v399 = vunpack.c.h.b16 %v98
  %v400 = vunpack.c.l.b16 %v99
  %v401 = vunpack.c.h.b16 %v99
  %v402 = vunpack.c.l.b16 %v100
  %v403 = vunpack.c.h.b16 %v100
  %v404 = vunpack.c.l.b16 %v101
  %v405 = vunpack.c.h.b16 %v101
  %v406 = vunpack.c.l.b16 %v102
  %v407 = vunpack.c.h.b16 %v102
  %v408 = vunpack.c.l.b16 %v103
  %v409 = vunpack.c.h.b16 %v103
  %v410 = vpack.c.b16 %v248, %v242
  %v411 = vpack.c.b16 %v249, %v243
  %v412 = vpack.c.b16 %v250, %v244
  %v413 = vpack.c.b16 %v251, %v245
  %v414 = vpack.c.b16 %v252, %v246
  %v415 = vpack.c.b16 %v253, %v247
  %v416 = vpack.c.b16 %v260, %v254
  %v417 = vpack.c.b16 %v261, %v255
  %v418 = vpack.c.b16 %v262, %v256
  %v419 = vpack.c.b16 %v263, %v257
  %v420 = vpack.c.b16 %v264, %v258
  %v421 = vpack.c.b16 %v265, %v259
  %v422 = vpack.c.b16 %v272, %v266
  %v423 = vpack.c.b16 %v273, %v267
  %v424 = vpack.c.b16 %v274, %v268
  %v425 = vpack.c.b16 %v275, %v269
  %v426 = vpack.c.b16 %v276, %v270
  %v427 = vpack.c.b16 %v277, %v271
  %v428 = vpack.c.b16 %v284, %v278
  %v429 = vpack.c.b16 %v285, %v279
  %v430 = vpack.c.b16 %v286, %v280
  %v431 = vpack.c.b16 %v287, %v281
  %v432 = vpack.c.b16 %v288, %v282
  %v433 = vpack.c.b16 %v289, %v283
  %v434 = vpack.c.b16 %v296, %v290
  %v435 = vpack.c.b16 %v297, %v291
  %v436 = vpack.c.b16 %v298, %v292
  %v437 = vpack.c.b16 %v299, %v293
  %v438 = vpack.c.b16 %v300, %v294
  %v439 = vpack.c.b16 %v301, %v295
  %v440 = vpack.c.b16 %v308, %v302
  %v441 = vpack.c.b16 %v309, %v303
  %v442 = vpack.c.b16 %v310, %v304
  %v443 = vpack.c.b16 %v311, %v305
  %v444 = vpack.c.b16 %v312, %v306
  %v445 = vpack.c.b16 %v313, %v307
  %v446 = vpack.c.b16 %v320, %v314
  %v447 = vpack.c.b16 %v321, %v315
  %v448 = vpack.c.b16 %v322, %v316
  %v449 = vpack.c.b16 %v323, %v317
  %v450 = vpack.c.b16 %v324, %v318
  %v451 = vpack.c.b16 %v325, %v319
  %v452 = vpack.c.b16 %v332, %v326
  %v453 = vpack.c.b16 %v333, %v327
  %v454 = vpack.c.b16 %v334, %v328
  %v455 = vpack.c.b16 %v335, %v329
  %v456 = vpack.c.b16 %v336, %v330
  %v457 = vpack.c.b16 %v337, %v331
  %v458 = vpack.c.b16 %v344, %v338
  %v459 = vpack.c.b16 %v345, %v339
  %v460 = vpack.c.b16 %v346, %v340
  %v461 = vpack.c.b16 %v347, %v341
  %v462 = vpack.c.b16 %v348, %v342
  %v463 = vpack.c.b16 %v349, %v343
  %v464 = vpack.c.b16 %v356, %v350
  %v465 = vpack.c.b16 %v357, %v351
  %v466 = vpack.c.b16 %v358, %v352
  %v467 = vpack.c.b16 %v359, %v353
  %v468 = vpack.c.b16 %v360, %v354
  %v469 = vpack.c.b16 %v361, %v355
  %v470 = vpack.c.b16 %v368, %v362
  %v471 = vpack.c.b16 %v369, %v363
  %v472 = vpack.c.b16 %v370, %v364
  %v473 = vpack.c.b16 %v371, %v365
  %v474 = vpack.c.b16 %v372, %v366
  %v475 = vpack.c.b16 %v373, %v367
  %v476 = vpack.c.b16 %v380, %v374
  %v477 = vpack.c.b16 %v381, %v375
  %v478 = vpack.c.b16 %v382, %v376
  %v479 = vpack.c.b16 %v383, %v377
  %v480 = vpack.c.b16 %v384, %v378
  %v481 = vpack.c.b16 %v385, %v379
  %v482 = vpack.c.b16 %v392, %v386
  %v483 = vpack.c.b16 %v393, %v387
  %v484 = vpack.c.b16 %v394, %v388
  %v485 = vpack.c.b16 %v395, %v389
  %v486 = vpack.c.b16 %v396, %v390
  %v487 = vpack.c.b16 %v397, %v391
  %v488 = vpack.c.b16 %v404, %v398
  %v489 = vpack.c.b16 %v405, %v399
  %v490 = vpack.c.b16 %v406, %v400
  %v491 = vpack.c.b16 %v407, %v401
  %v492 = vpack.c.b16 %v408, %v402
  %v493 = vpack.c.b16 %v409, %v403
  %vm578 = vcmask 785408
  %v580 = vsel %vm578, %v150, 0
  %v583 = vsel %vm578, %v152, 0
  %v586 = vsel %vm578, %v154, 0
  %588 = vmatprep.subr.bf16.mxu0 %v411
  %589 = vmatpush1.bf16.msra.mxu0 %v410
  %590 = vmatprep.subr.bf16.mxu0 %v417
  %591 = vmatpush1.bf16.msra.mxu0 %v416
  %592 = vmatprep.subr.bf16.mxu0 %v423
  %593 = vmatpush1.bf16.msra.mxu0 %v422
  %594 = vmatprep.subr.bf16.mxu0 %v429
  %595 = vmatpush1.bf16.msra.mxu0 %v428
  %596 = vmatprep.subr.bf16.mxu0 %v435
  %597 = vmatpush1.bf16.msra.mxu0 %v434
  %598 = vmatprep.subr.bf16.mxu0 %v441
  %599 = vmatpush1.bf16.msra.mxu0 %v440
  %600 = vmatprep.subr.bf16.mxu0 %v447
  %601 = vmatpush1.bf16.msra.mxu0 %v446
  %602 = vmatprep.subr.bf16.mxu0 %v453
  %603 = vmatpush1.bf16.msra.mxu0 %v452
  %604 = vmatprep.subr.bf16.mxu0 %v459
  %605 = vmatpush1.bf16.msra.mxu0 %v458
  %606 = vmatprep.subr.bf16.mxu0 %v465
  %607 = vmatpush1.bf16.msra.mxu0 %v464
  %608 = vmatprep.subr.bf16.mxu0 %v471
  %609 = vmatpush1.bf16.msra.mxu0 %v470
  %610 = vmatprep.subr.bf16.mxu0 %v477
  %611 = vmatpush1.bf16.msra.mxu0 %v476
  %612 = vmatprep.subr.bf16.mxu0 %v483
  %613 = vmatpush1.bf16.msra.mxu0 %v482
  %614 = vmatprep.subr.bf16.mxu0 %v489
  %615 = vmatpush1.bf16.msra.mxu0 %v488
  %616 = vmatprep.subr.bf16.mxu0 0
  %617 = vmatpush1.bf16.msra.mxu0 0
  %618 = vmatprep.subr.bf16.mxu0 0
  %619 = vmatpush1.bf16.msra.mxu0 0
  %620 = vmatprep.mubr.bf16.mxu0 %v580
  %621 = vmatmul.mubr.bf16.gmra.mrb[0].mxu0 %v149
  %v622 = vpop.f32.mrb[0].mxu0
  %v623 = vadd.f32 %v112, %v622
  %v624 = vpop.f32.mrb[0].mxu0
  %v625 = vadd.f32 %v112, %v624
  %v626 = vpop.f32.mrb[0].mxu0
  %v627 = vadd.f32 %v117, %v626
  %v628 = vpop.f32.mrb[0].mxu0
  %v629 = vadd.f32 %v117, %v628
  %630 = vmatprep.mubr.bf16.mxu0 %v583
  %631 = vmatmul.mubr.bf16.gmra.mrb[0].mxu0 %v151
  %v632 = vpop.f32.mrb[0].mxu0
  %v633 = vadd.f32 %v122, %v632
  %v634 = vpop.f32.mrb[0].mxu0
  %v635 = vadd.f32 %v122, %v634
  %v636 = vpop.f32.mrb[0].mxu0
  %v637 = vadd.f32 %v127, %v636
  %v638 = vpop.f32.mrb[0].mxu0
  %v639 = vadd.f32 %v127, %v638
  %640 = vmatprep.mubr.bf16.mxu0 %v586
  %641 = vmatmul.mubr.bf16.gmra.mrb[0].mxu0 %v153
  %v642 = vpop.f32.mrb[0].mxu0
  %v643 = vadd.f32 %v132, %v642
  %v644 = vpop.f32.mrb[0].mxu0
  %v645 = vadd.f32 %v132, %v644
  %v646 = vpop.f32.mrb[0].mxu0
  %v647 = vpop.f32.mrb[0].mxu0
  %648 = vdwg.mxu0
  %649 = vmatprep.subr.bf16.mxu0 %v413
  %650 = vmatpush1.bf16.msra.mxu0 %v412
  %651 = vmatprep.subr.bf16.mxu0 %v419
  %652 = vmatpush1.bf16.msra.mxu0 %v418
  %653 = vmatprep.subr.bf16.mxu0 %v425
  %654 = vmatpush1.bf16.msra.mxu0 %v424
  %655 = vmatprep.subr.bf16.mxu0 %v431
  %656 = vmatpush1.bf16.msra.mxu0 %v430
  %657 = vmatprep.subr.bf16.mxu0 %v437
  %658 = vmatpush1.bf16.msra.mxu0 %v436
  %659 = vmatprep.subr.bf16.mxu0 %v443
  %660 = vmatpush1.bf16.msra.mxu0 %v442
  %661 = vmatprep.subr.bf16.mxu0 %v449
  %662 = vmatpush1.bf16.msra.mxu0 %v448
  %663 = vmatprep.subr.bf16.mxu0 %v455
  %664 = vmatpush1.bf16.msra.mxu0 %v454
  %665 = vmatprep.subr.bf16.mxu0 %v461
  %666 = vmatpush1.bf16.msra.mxu0 %v460
  %667 = vmatprep.subr.bf16.mxu0 %v467
  %668 = vmatpush1.bf16.msra.mxu0 %v466
  %669 = vmatprep.subr.bf16.mxu0 %v473
  %670 = vmatpush1.bf16.msra.mxu0 %v472
  %671 = vmatprep.subr.bf16.mxu0 %v479
  %672 = vmatpush1.bf16.msra.mxu0 %v478
  %673 = vmatprep.subr.bf16.mxu0 %v485
  %674 = vmatpush1.bf16.msra.mxu0 %v484
  %675 = vmatprep.subr.bf16.mxu0 %v491
  %676 = vmatpush1.bf16.msra.mxu0 %v490
  %677 = vmatprep.subr.bf16.mxu0 0
  %678 = vmatpush1.bf16.msra.mxu0 0
  %679 = vmatprep.subr.bf16.mxu0 0
  %680 = vmatpush1.bf16.msra.mxu0 0
  %681 = vmatprep.mubr.bf16.mxu0 %v580
  %682 = vmatmul.mubr.bf16.gmra.mrb[0].mxu0 %v149
  %v683 = vpop.f32.mrb[0].mxu0
  %v684 = vadd.f32 %v112, %v683
  %v685 = vpop.f32.mrb[0].mxu0
  %v686 = vadd.f32 %v112, %v685
  %v687 = vpop.f32.mrb[0].mxu0
  %v688 = vadd.f32 %v117, %v687
  %v689 = vpop.f32.mrb[0].mxu0
  %v690 = vadd.f32 %v117, %v689
  %691 = vmatprep.mubr.bf16.mxu0 %v583
  %692 = vmatmul.mubr.bf16.gmra.mrb[0].mxu0 %v151
  %v693 = vpop.f32.mrb[0].mxu0
  %v694 = vadd.f32 %v122, %v693
  %v695 = vpop.f32.mrb[0].mxu0
  %v696 = vadd.f32 %v122, %v695
  %v697 = vpop.f32.mrb[0].mxu0
  %v698 = vadd.f32 %v127, %v697
  %v699 = vpop.f32.mrb[0].mxu0
  %v700 = vadd.f32 %v127, %v699
  %701 = vmatprep.mubr.bf16.mxu0 %v586
  %702 = vmatmul.mubr.bf16.gmra.mrb[0].mxu0 %v153
  %v703 = vpop.f32.mrb[0].mxu0
  %v704 = vadd.f32 %v132, %v703
  %v705 = vpop.f32.mrb[0].mxu0
  %v706 = vadd.f32 %v132, %v705
  %v707 = vpop.f32.mrb[0].mxu0
  %v708 = vpop.f32.mrb[0].mxu0
  %709 = vdwg.mxu0
  %710 = vmatprep.subr.bf16.mxu0 %v415
  %711 = vmatpush1.bf16.msra.mxu0 %v414
  %712 = vmatprep.subr.bf16.mxu0 %v421
  %713 = vmatpush1.bf16.msra.mxu0 %v420
  %714 = vmatprep.subr.bf16.mxu0 %v427
  %715 = vmatpush1.bf16.msra.mxu0 %v426
  %716 = vmatprep.subr.bf16.mxu0 %v433
  %717 = vmatpush1.bf16.msra.mxu0 %v432
  %718 = vmatprep.subr.bf16.mxu0 %v439
  %719 = vmatpush1.bf16.msra.mxu0 %v438
  %720 = vmatprep.subr.bf16.mxu0 %v445
  %721 = vmatpush1.bf16.msra.mxu0 %v444
  %722 = vmatprep.subr.bf16.mxu0 %v451
  %723 = vmatpush1.bf16.msra.mxu0 %v450
  %724 = vmatprep.subr.bf16.mxu0 %v457
  %725 = vmatpush1.bf16.msra.mxu0 %v456
  %726 = vmatprep.subr.bf16.mxu0 %v463
  %727 = vmatpush1.bf16.msra.mxu0 %v462
  %728 = vmatprep.subr.bf16.mxu0 %v469
  %729 = vmatpush1.bf16.msra.mxu0 %v468
  %730 = vmatprep.subr.bf16.mxu0 %v475
  %731 = vmatpush1.bf16.msra.mxu0 %v474
  %732 = vmatprep.subr.bf16.mxu0 %v481
  %733 = vmatpush1.bf16.msra.mxu0 %v480
  %734 = vmatprep.subr.bf16.mxu0 %v487
  %735 = vmatpush1.bf16.msra.mxu0 %v486
  %736 = vmatprep.subr.bf16.mxu0 %v493
  %737 = vmatpush1.bf16.msra.mxu0 %v492
  %738 = vmatprep.subr.bf16.mxu0 0
  %739 = vmatpush1.bf16.msra.mxu0 0
  %740 = vmatprep.subr.bf16.mxu0 0
  %741 = vmatpush1.bf16.msra.mxu0 0
  %742 = vmatprep.mubr.bf16.mxu0 %v580
  %743 = vmatmul.mubr.bf16.gmra.mrb[0].mxu0 %v149
  %v744 = vpop.f32.mrb[0].mxu0
  %v745 = vadd.f32 %v112, %v744
  %v746 = vpop.f32.mrb[0].mxu0
  %v747 = vadd.f32 %v112, %v746
  %v748 = vpop.f32.mrb[0].mxu0
  %v749 = vadd.f32 %v117, %v748
  %v750 = vpop.f32.mrb[0].mxu0
  %v751 = vadd.f32 %v117, %v750
  %752 = vmatprep.mubr.bf16.mxu0 %v583
  %753 = vmatmul.mubr.bf16.gmra.mrb[0].mxu0 %v151
  %v754 = vpop.f32.mrb[0].mxu0
  %v755 = vadd.f32 %v122, %v754
  %v756 = vpop.f32.mrb[0].mxu0
  %v757 = vadd.f32 %v122, %v756
  %v758 = vpop.f32.mrb[0].mxu0
  %v759 = vadd.f32 %v127, %v758
  %v760 = vpop.f32.mrb[0].mxu0
  %v761 = vadd.f32 %v127, %v760
  %762 = vmatprep.mubr.bf16.mxu0 %v586
  %763 = vmatmul.mubr.bf16.gmra.mrb[0].mxu0 %v153
  %v764 = vpop.f32.mrb[0].mxu0
  %v765 = vadd.f32 %v132, %v764
  %v766 = vpop.f32.mrb[0].mxu0
  %v767 = vadd.f32 %v132, %v766
  %v768 = vpop.f32.mrb[0].mxu0
  %v769 = vpop.f32.mrb[0].mxu0
  %770 = vdwg.mxu0
  %v771 = vmax.f32 %v623, 0.0
  %v772 = vmax.f32 %v625, 0.0
  %v773 = vmax.f32 %v684, 0.0
  %v774 = vmax.f32 %v686, 0.0
  %v775 = vmax.f32 %v745, 0.0
  %v776 = vmax.f32 %v747, 0.0
  %v777 = vmax.f32 %v627, 0.0
  %v778 = vmax.f32 %v629, 0.0
  %v779 = vmax.f32 %v688, 0.0
  %v780 = vmax.f32 %v690, 0.0
  %v781 = vmax.f32 %v749, 0.0
  %v782 = vmax.f32 %v751, 0.0
  %v783 = vmax.f32 %v633, 0.0
  %v784 = vmax.f32 %v635, 0.0
  %v785 = vmax.f32 %v694, 0.0
  %v786 = vmax.f32 %v696, 0.0
  %v787 = vmax.f32 %v755, 0.0
  %v788 = vmax.f32 %v757, 0.0
  %v789 = vmax.f32 %v637, 0.0
  %v790 = vmax.f32 %v639, 0.0
  %v791 = vmax.f32 %v698, 0.0
  %v792 = vmax.f32 %v700, 0.0
  %v793 = vmax.f32 %v759, 0.0
  %v794 = vmax.f32 %v761, 0.0
  %v795 = vmax.f32 %v643, 0.0
  %v796 = vmax.f32 %v645, 0.0
  %v797 = vmax.f32 %v704, 0.0
  %v798 = vmax.f32 %v706, 0.0
  %v799 = vmax.f32 %v765, 0.0
  %v800 = vmax.f32 %v767, 0.0
  %801 = vst [vmem:[%s3] sm:$0xff] %v771
  %802 = vst [vmem:[%s3 + $0x8] sm:$0xff] %v772
  %803 = vst [vmem:[%s3 + $0x10] sm:$0xff] %v773
  %804 = vst [vmem:[%s3 + $0x18] sm:$0xff] %v774
  %805 = vst [vmem:[%s3 + $0x20] sm:$0xff] %v775
  %vm806 = vcmask 64512
  %807 = vst.msk [vmem:[%s3 + $0x28] sm:$0xff] %vm806, %v776
  %808 = vst [vmem:[%s3 + $0x30] sm:$0xff] %v777
  %809 = vst [vmem:[%s3 + $0x38] sm:$0xff] %v778
  %810 = vst [vmem:[%s3 + $0x40] sm:$0xff] %v779
  %811 = vst [vmem:[%s3 + $0x48] sm:$0xff] %v780
  %812 = vst [vmem:[%s3 + $0x50] sm:$0xff] %v781
  %813 = vst.msk [vmem:[%s3 + $0x58] sm:$0xff] %vm806, %v782
  %814 = vst [vmem:[%s3 + $0x60] sm:$0xff] %v783
  %815 = vst [vmem:[%s3 + $0x68] sm:$0xff] %v784
  %816 = vst [vmem:[%s3 + $0x70] sm:$0xff] %v785
  %817 = vst [vmem:[%s3 + $0x78] sm:$0xff] %v786
  %818 = vst [vmem:[%s3 + $0x80] sm:$0xff] %v787
  %819 = vst.msk [vmem:[%s3 + $0x88] sm:$0xff] %vm806, %v788
  %820 = vst [vmem:[%s3 + $0x90] sm:$0xff] %v789
  %821 = vst [vmem:[%s3 + $0x98] sm:$0xff] %v790
  %822 = vst [vmem:[%s3 + $0xa0] sm:$0xff] %v791
  %823 = vst [vmem:[%s3 + $0xa8] sm:$0xff] %v792
  %824 = vst [vmem:[%s3 + $0xb0] sm:$0xff] %v793
  %825 = vst.msk [vmem:[%s3 + $0xb8] sm:$0xff] %vm806, %v794
  %826 = vst [vmem:[%s3 + $0xc0] sm:$0xff] %v795
  %827 = vst [vmem:[%s3 + $0xc8] sm:$0xff] %v796
  %828 = vst [vmem:[%s3 + $0xd0] sm:$0xff] %v797
  %829 = vst [vmem:[%s3 + $0xd8] sm:$0xff] %v798
  %830 = vst [vmem:[%s3 + $0xe0] sm:$0xff] %v799
  %831 = vst.msk [vmem:[%s3 + $0xe8] sm:$0xff] %vm806, %v800
  // Predicated region
  $region14: #{my_dsp_net_forward.5} parent=0 // pred_check
    _
  $region15: #{my_dsp_net_forward.5} parent=0 // pred_check_branch
    %833 = sbr.rel (0) target = $region17
  $region16: #{my_dsp_net_forward.5} parent=0 // pred_region
    _
  $region17: #{my_dsp_net_forward.5} parent=0 // pred_fallthru
    _
  // Predicated region
  $region18: #{my_dsp_net_forward.5} parent=0 // pred_check
    _
  $region19: #{my_dsp_net_forward.5} parent=0 // pred_check_branch
    %835 = sbr.rel (0) target = $region21
  $region20: #{my_dsp_net_forward.5} parent=0 // pred_region
    _
  $region21: #{my_dsp_net_forward.5} parent=0 // pred_fallthru
    _

// kernel: my_dsp_net_forward.6
$region0: #{my_dsp_net_forward.6}
  #allocation0 [shape = 'u32[]', space=smem, size = 0x4, offset = 0x4, fixed_abs, tag = 'smem constant byte address 0x4 - core index']
  #allocation1 [shape = 'u32[144,128]{1,0:T(1,128)}', space=vmem, size = 0x12000, scoped, tag = 'internal scratch']
  %s0 = inlined_call_operand.vmem [shape: bf16[20,368], index: 0, kind: input, shape index: {}]
  %s1 = inlined_call_operand.vmem [shape: bf16[368,128], index: 1, kind: input, shape index: {}]
  %s2 = inlined_call_operand.vmem [shape: f32[20,1], index: 2, kind: input, shape index: {}]
  %s3 = inlined_call_operand.vmem [shape: f32[20,128], index: 3, kind: output, shape index: {}]
  %s4 = sld [smem:[#allocation0]]
  $region22: #{my_dsp_net_forward.6} parent=0
    _
  %s6 = ssub.s32 1, %s4
  %s7 = scalar_select 0, %s6, %s4
  // Predicated region
  $region2: #{my_dsp_net_forward.6} parent=0 // pred_check
    _
  $region3: #{my_dsp_net_forward.6} parent=0 // pred_check_branch
    %9 = sbr.rel (0) target = $region5
  $region4: #{my_dsp_net_forward.6} parent=0 // pred_region
    _
  $region5: #{my_dsp_net_forward.6} parent=0 // pred_fallthru
    _
  // Predicated region
  $region6: #{my_dsp_net_forward.6} parent=0 // pred_check
    _
  $region7: #{my_dsp_net_forward.6} parent=0 // pred_check_branch
    %11 = sbr.rel (0) target = $region9
  $region8: #{my_dsp_net_forward.6} parent=0 // pred_region
    _
  $region9: #{my_dsp_net_forward.6} parent=0 // pred_fallthru
    _
  // Predicated region
  $region10: #{my_dsp_net_forward.6} parent=0 // pred_check
    _
  $region11: #{my_dsp_net_forward.6} parent=0 // pred_check_branch
    %13 = sbr.rel (0) target = $region13
  $region12: #{my_dsp_net_forward.6} parent=0 // pred_region
    _
  $region13: #{my_dsp_net_forward.6} parent=0 // pred_fallthru
    _
  %v15 = vld [vmem:[%s0] sm:$0xff]
  %v16 = vld [vmem:[%s0 + $0x8] sm:$0xf]
  %v17 = vld [vmem:[%s0 + $0xc] sm:$0xff]
  %v18 = vld [vmem:[%s0 + $0x14] sm:$0xf]
  %v19 = vld [vmem:[%s0 + $0x18] sm:$0x33]
  %v20 = vld [vmem:[%s0 + $0x20] sm:$0x3]
  %v21 = vld [vmem:[%s1] sm:$0xf]
  %v22 = vld [vmem:[%s1 + $0x4] sm:$0xf]
  %v23 = vld [vmem:[%s1 + $0x8] sm:$0xf]
  %v24 = vld [vmem:[%s1 + $0xc] sm:$0xf]
  %v25 = vld [vmem:[%s1 + $0x10] sm:$0xf]
  %v26 = vld [vmem:[%s1 + $0x14] sm:$0xf]
  %v27 = vld [vmem:[%s1 + $0x18] sm:$0xf]
  %v28 = vld [vmem:[%s1 + $0x1c] sm:$0xf]
  %v29 = vld [vmem:[%s1 + $0x20] sm:$0xf]
  %v30 = vld [vmem:[%s1 + $0x24] sm:$0xf]
  %v31 = vld [vmem:[%s1 + $0x28] sm:$0xf]
  %v32 = vld [vmem:[%s1 + $0x2c] sm:$0xf]
  %v33 = vld [vmem:[%s1 + $0x30] sm:$0xf]
  %v34 = vld [vmem:[%s1 + $0x34] sm:$0xf]
  %v35 = vld [vmem:[%s1 + $0x38] sm:$0xf]
  %v36 = vld [vmem:[%s1 + $0x3c] sm:$0xf]
  %v37 = vld [vmem:[%s1 + $0x40] sm:$0xf]
  %v38 = vld [vmem:[%s1 + $0x44] sm:$0xf]
  %v39 = vld [vmem:[%s1 + $0x48] sm:$0xf]
  %v40 = vld [vmem:[%s1 + $0x4c] sm:$0xf]
  %v41 = vld [vmem:[%s1 + $0x50] sm:$0xf]
  %v42 = vld [vmem:[%s1 + $0x54] sm:$0xf]
  %v43 = vld [vmem:[%s1 + $0x58] sm:$0xf]
  %v44 = vld [vmem:[%s1 + $0x5c] sm:$0xf]
  %v45 = vld [vmem:[%s1 + $0x60] sm:$0xf]
  %v46 = vld [vmem:[%s1 + $0x64] sm:$0xf]
  %v47 = vld [vmem:[%s1 + $0x68] sm:$0xf]
  %v48 = vld [vmem:[%s1 + $0x6c] sm:$0xf]
  %v49 = vld [vmem:[%s1 + $0x70] sm:$0xf]
  %v50 = vld [vmem:[%s1 + $0x74] sm:$0xf]
  %v51 = vld [vmem:[%s1 + $0x78] sm:$0xf]
  %v52 = vld [vmem:[%s1 + $0x7c] sm:$0xf]
  %v53 = vld [vmem:[%s1 + $0x80] sm:$0xf]
  %v54 = vld [vmem:[%s1 + $0x84] sm:$0xf]
  %v55 = vld [vmem:[%s1 + $0x88] sm:$0xf]
  %v56 = vld [vmem:[%s1 + $0x8c] sm:$0xf]
  %v57 = vld [vmem:[%s1 + $0x90] sm:$0xf]
  %v58 = vld [vmem:[%s1 + $0x94] sm:$0xf]
  %v59 = vld [vmem:[%s1 + $0x98] sm:$0xf]
  %v60 = vld [vmem:[%s1 + $0x9c] sm:$0xf]
  %v61 = vld [vmem:[%s1 + $0xa0] sm:$0xf]
  %v62 = vld [vmem:[%s1 + $0xa4] sm:$0xf]
  %v63 = vld [vmem:[%s1 + $0xa8] sm:$0xf]
  %v64 = vld [vmem:[%s1 + $0xac] sm:$0xf]
  %v65 = vld [vmem:[%s1 + $0xb0] sm:$0xf]
  %v66 = vld [vmem:[%s1 + $0xb4] sm:$0xf]
  %v67 = vld [vmem:[%s2] sm:$0xff]
  %v68 = vld [vmem:[%s2 + $0x8] sm:$0xff]
  %v69 = vld [vmem:[%s2 + $0x10] sm:$0xf]
  %71 = vset.pattern.permute.xlu0 0
  %72 = vperm.xlu0 %71, %v67
  %v73 = vpop.permute.xlu0 %72
  %76 = vset.pattern.permute.xlu0 0
  %77 = vperm.xlu0 %76, %v68
  %v78 = vpop.permute.xlu0 %77
  %81 = vset.pattern.permute.xlu0 0
  %82 = vperm.xlu0 %81, %v69
  %v83 = vpop.permute.xlu0 %82
  %v91 = vunpack.c.l.b16 %v15
  %v92 = vunpack.c.h.b16 %v15
  %v93 = vunpack.c.l.b16 %v16
  %v94 = vunpack.c.l.b16 %v17
  %v95 = vunpack.c.h.b16 %v17
  %v96 = vunpack.c.l.b16 %v18
  %v97 = vunpack.c.l.b16 %v19
  %v98 = vunpack.c.h.b16 %v19
  %v99 = vunpack.c.l.b16 %v20
  %v100 = vpack.c.b16 %v94, %v91
  %v101 = vpack.c.b16 %v95, %v92
  %v102 = vpack.c.b16 %v96, %v93
  %v103 = vpack.c.b16 %v97, %v97
  %v104 = vpack.c.b16 %v98, %v98
  %v105 = vpack.c.b16 %v99, %v99
  %v156 = vunpack.c.l.b16 %v21
  %v157 = vunpack.c.l.b16 %v22
  %v158 = vunpack.c.l.b16 %v23
  %v159 = vunpack.c.l.b16 %v24
  %v160 = vunpack.c.l.b16 %v25
  %v161 = vunpack.c.l.b16 %v26
  %v162 = vunpack.c.l.b16 %v27
  %v163 = vunpack.c.l.b16 %v28
  %v164 = vunpack.c.l.b16 %v29
  %v165 = vunpack.c.l.b16 %v30
  %v166 = vunpack.c.l.b16 %v31
  %v167 = vunpack.c.l.b16 %v32
  %v168 = vunpack.c.l.b16 %v33
  %v169 = vunpack.c.l.b16 %v34
  %v170 = vunpack.c.l.b16 %v35
  %v171 = vunpack.c.l.b16 %v36
  %v172 = vunpack.c.l.b16 %v37
  %v173 = vunpack.c.l.b16 %v38
  %v174 = vunpack.c.l.b16 %v39
  %v175 = vunpack.c.l.b16 %v40
  %v176 = vunpack.c.l.b16 %v41
  %v177 = vunpack.c.l.b16 %v42
  %v178 = vunpack.c.l.b16 %v43
  %v179 = vunpack.c.l.b16 %v44
  %v180 = vunpack.c.l.b16 %v45
  %v181 = vunpack.c.l.b16 %v46
  %v182 = vunpack.c.l.b16 %v47
  %v183 = vunpack.c.l.b16 %v48
  %v184 = vunpack.c.l.b16 %v49
  %v185 = vunpack.c.l.b16 %v50
  %v186 = vunpack.c.l.b16 %v51
  %v187 = vunpack.c.l.b16 %v52
  %v188 = vunpack.c.l.b16 %v53
  %v189 = vunpack.c.l.b16 %v54
  %v190 = vunpack.c.l.b16 %v55
  %v191 = vunpack.c.l.b16 %v56
  %v192 = vunpack.c.l.b16 %v57
  %v193 = vunpack.c.l.b16 %v58
  %v194 = vunpack.c.l.b16 %v59
  %v195 = vunpack.c.l.b16 %v60
  %v196 = vunpack.c.l.b16 %v61
  %v197 = vunpack.c.l.b16 %v62
  %v198 = vunpack.c.l.b16 %v63
  %v199 = vunpack.c.l.b16 %v64
  %v200 = vunpack.c.l.b16 %v65
  %v201 = vunpack.c.l.b16 %v66
  %v202 = vpack.c.b16 %v157, %v156
  %v203 = vpack.c.b16 %v159, %v158
  %v204 = vpack.c.b16 %v161, %v160
  %v205 = vpack.c.b16 %v163, %v162
  %v206 = vpack.c.b16 %v165, %v164
  %v207 = vpack.c.b16 %v167, %v166
  %v208 = vpack.c.b16 %v169, %v168
  %v209 = vpack.c.b16 %v171, %v170
  %v210 = vpack.c.b16 %v173, %v172
  %v211 = vpack.c.b16 %v175, %v174
  %v212 = vpack.c.b16 %v177, %v176
  %v213 = vpack.c.b16 %v179, %v178
  %v214 = vpack.c.b16 %v181, %v180
  %v215 = vpack.c.b16 %v183, %v182
  %v216 = vpack.c.b16 %v185, %v184
  %v217 = vpack.c.b16 %v187, %v186
  %v218 = vpack.c.b16 %v189, %v188
  %v219 = vpack.c.b16 %v191, %v190
  %v220 = vpack.c.b16 %v193, %v192
  %v221 = vpack.c.b16 %v195, %v194
  %v222 = vpack.c.b16 %v197, %v196
  %v223 = vpack.c.b16 %v199, %v198
  %v224 = vpack.c.b16 %v201, %v200
  %vm248 = vcmask 916480
  %v250 = vsel %vm248, %v102, 0
  %v253 = vsel %vm248, %v105, 0
  %255 = vmatprep.subr.bf16.mxu0 0
  %256 = vmatpush1.bf16.msra.mxu0 %v202
  %257 = vmatprep.subr.bf16.mxu0 0
  %258 = vmatpush1.bf16.msra.mxu0 %v203
  %259 = vmatprep.subr.bf16.mxu0 0
  %260 = vmatpush1.bf16.msra.mxu0 %v204
  %261 = vmatprep.subr.bf16.mxu0 0
  %262 = vmatpush1.bf16.msra.mxu0 %v205
  %263 = vmatprep.subr.bf16.mxu0 0
  %264 = vmatpush1.bf16.msra.mxu0 %v206
  %265 = vmatprep.subr.bf16.mxu0 0
  %266 = vmatpush1.bf16.msra.mxu0 %v207
  %267 = vmatprep.subr.bf16.mxu0 0
  %268 = vmatpush1.bf16.msra.mxu0 %v208
  %269 = vmatprep.subr.bf16.mxu0 0
  %270 = vmatpush1.bf16.msra.mxu0 %v209
  %271 = vmatprep.subr.bf16.mxu0 0
  %272 = vmatpush1.bf16.msra.mxu0 %v210
  %273 = vmatprep.subr.bf16.mxu0 0
  %274 = vmatpush1.bf16.msra.mxu0 %v211
  %275 = vmatprep.subr.bf16.mxu0 0
  %276 = vmatpush1.bf16.msra.mxu0 %v212
  %277 = vmatprep.subr.bf16.mxu0 0
  %278 = vmatpush1.bf16.msra.mxu0 %v213
  %279 = vmatprep.subr.bf16.mxu0 0
  %280 = vmatpush1.bf16.msra.mxu0 %v214
  %281 = vmatprep.subr.bf16.mxu0 0
  %282 = vmatpush1.bf16.msra.mxu0 %v215
  %283 = vmatprep.subr.bf16.mxu0 0
  %284 = vmatpush1.bf16.msra.mxu0 %v216
  %285 = vmatprep.subr.bf16.mxu0 0
  %286 = vmatpush1.bf16.msra.mxu0 %v217
  %287 = vmatprep.mubr.bf16.mxu0 %v101
  %288 = vmatmul.mubr.bf16.gmra.mrb[0].mxu0 %v100
  %v289 = vpop.f32.mrb[0].mxu0
  %v290 = vadd.f32 %v73, %v289
  %v291 = vpop.f32.mrb[0].mxu0
  %v292 = vpop.f32.mrb[0].mxu0
  %v293 = vadd.f32 %v78, %v292
  %v294 = vpop.f32.mrb[0].mxu0
  %295 = vmatprep.mubr.bf16.mxu0 %v104
  %296 = vmatmul.mubr.bf16.gmra.mrb[0].mxu0 %v103
  %v297 = vpop.f32.mrb[0].mxu0
  %v298 = vadd.f32 %v83, %v297
  %v299 = vpop.f32.mrb[0].mxu0
  %v300 = vpop.f32.mrb[0].mxu0
  %v301 = vpop.f32.mrb[0].mxu0
  %302 = vdwg.mxu0
  %303 = vmatprep.subr.bf16.mxu0 0
  %304 = vmatpush1.bf16.msra.mxu0 %v218
  %305 = vmatprep.subr.bf16.mxu0 0
  %306 = vmatpush1.bf16.msra.mxu0 %v219
  %307 = vmatprep.subr.bf16.mxu0 0
  %308 = vmatpush1.bf16.msra.mxu0 %v220
  %309 = vmatprep.subr.bf16.mxu0 0
  %310 = vmatpush1.bf16.msra.mxu0 %v221
  %311 = vmatprep.subr.bf16.mxu0 0
  %312 = vmatpush1.bf16.msra.mxu0 %v222
  %313 = vmatprep.subr.bf16.mxu0 0
  %314 = vmatpush1.bf16.msra.mxu0 %v223
  %315 = vmatprep.subr.bf16.mxu0 0
  %316 = vmatpush1.bf16.msra.mxu0 %v224
  %317 = vmatprep.subr.bf16.mxu0 0
  %318 = vmatpush1.bf16.msra.mxu0 0
  %319 = vmatprep.subr.bf16.mxu0 0
  %320 = vmatpush1.bf16.msra.mxu0 0
  %321 = vmatprep.subr.bf16.mxu0 0
  %322 = vmatpush1.bf16.msra.mxu0 0
  %323 = vmatprep.subr.bf16.mxu0 0
  %324 = vmatpush1.bf16.msra.mxu0 0
  %325 = vmatprep.subr.bf16.mxu0 0
  %326 = vmatpush1.bf16.msra.mxu0 0
  %327 = vmatprep.subr.bf16.mxu0 0
  %328 = vmatpush1.bf16.msra.mxu0 0
  %329 = vmatprep.subr.bf16.mxu0 0
  %330 = vmatpush1.bf16.msra.mxu0 0
  %331 = vmatprep.subr.bf16.mxu0 0
  %332 = vmatpush1.bf16.msra.mxu0 0
  %333 = vmatprep.subr.bf16.mxu0 0
  %334 = vmatpush1.bf16.msra.mxu0 0
  %335 = vmatprep.mubr.bf16.mxu0 0
  %336 = vmatmul.mubr.bf16.gmra.mrb[0].mxu0 %v250
  %v337 = vpop.f32.mrb[0].mxu0
  %v338 = vadd.f32 %v290, %v337
  %v339 = vpop.f32.mrb[0].mxu0
  %v340 = vpop.f32.mrb[0].mxu0
  %v341 = vadd.f32 %v293, %v340
  %v342 = vpop.f32.mrb[0].mxu0
  %343 = vmatprep.mubr.bf16.mxu0 0
  %344 = vmatmul.mubr.bf16.gmra.mrb[0].mxu0 %v253
  %v345 = vpop.f32.mrb[0].mxu0
  %v346 = vadd.f32 %v298, %v345
  %v347 = vpop.f32.mrb[0].mxu0
  %v348 = vpop.f32.mrb[0].mxu0
  %v349 = vpop.f32.mrb[0].mxu0
  %350 = vdwg.mxu0
  %v351 = vmax.f32 %v338, 0.0
  %v352 = vmax.f32 %v341, 0.0
  %v353 = vmax.f32 %v346, 0.0
  %354 = vst [vmem:[%s3] sm:$0xff] %v351
  %355 = vst [vmem:[%s3 + $0x8] sm:$0xff] %v352
  %356 = vst [vmem:[%s3 + $0x10] sm:$0xf] %v353
  // Predicated region
  $region14: #{my_dsp_net_forward.6} parent=0 // pred_check
    _
  $region15: #{my_dsp_net_forward.6} parent=0 // pred_check_branch
    %358 = sbr.rel (0) target = $region17
  $region16: #{my_dsp_net_forward.6} parent=0 // pred_region
    _
  $region17: #{my_dsp_net_forward.6} parent=0 // pred_fallthru
    _
  // Predicated region
  $region18: #{my_dsp_net_forward.6} parent=0 // pred_check
    _
  $region19: #{my_dsp_net_forward.6} parent=0 // pred_check_branch
    %360 = sbr.rel (0) target = $region21
  $region20: #{my_dsp_net_forward.6} parent=0 // pred_region
    _
  $region21: #{my_dsp_net_forward.6} parent=0 // pred_fallthru
    _

// kernel: my_dsp_net_forward.7
$region0: #{my_dsp_net_forward.7}
  #allocation0 [shape = 'u32[]', space=smem, size = 0x4, offset = 0x4, fixed_abs, tag = 'smem constant byte address 0x4 - core index']
  #allocation1 [shape = 'u32[144,128]{1,0:T(1,128)}', space=vmem, size = 0x12000, scoped, tag = 'internal scratch']
  %s0 = inlined_call_operand.vmem [shape: bf16[8,1280], index: 0, kind: input, shape index: {}]
  %s1 = inlined_call_operand.vmem [shape: bf16[1280,3], index: 1, kind: input, shape index: {}]
  %s2 = inlined_call_operand.vmem [shape: f32[1,3], index: 2, kind: input, shape index: {}]
  %s3 = inlined_call_operand.vmem [shape: f32[8,3], index: 3, kind: output, shape index: {}]
  %s4 = sld [smem:[#allocation0]]
  $region22: #{my_dsp_net_forward.7} parent=0
    _
  %s6 = ssub.s32 1, %s4
  %s7 = scalar_select 0, %s6, %s4
  // Predicated region
  $region2: #{my_dsp_net_forward.7} parent=0 // pred_check
    _
  $region3: #{my_dsp_net_forward.7} parent=0 // pred_check_branch
    %9 = sbr.rel (0) target = $region5
  $region4: #{my_dsp_net_forward.7} parent=0 // pred_region
    _
  $region5: #{my_dsp_net_forward.7} parent=0 // pred_fallthru
    _
  // Predicated region
  $region6: #{my_dsp_net_forward.7} parent=0 // pred_check
    _
  $region7: #{my_dsp_net_forward.7} parent=0 // pred_check_branch
    %11 = sbr.rel (0) target = $region9
  $region8: #{my_dsp_net_forward.7} parent=0 // pred_region
    _
  $region9: #{my_dsp_net_forward.7} parent=0 // pred_fallthru
    _
  // Predicated region
  $region10: #{my_dsp_net_forward.7} parent=0 // pred_check
    _
  $region11: #{my_dsp_net_forward.7} parent=0 // pred_check_branch
    %13 = sbr.rel (0) target = $region13
  $region12: #{my_dsp_net_forward.7} parent=0 // pred_region
    _
  $region13: #{my_dsp_net_forward.7} parent=0 // pred_fallthru
    _
  %v15 = vld [vmem:[%s0] sm:$0xff]
  %v16 = vld [vmem:[%s0 + $0x8] sm:$0xff]
  %v17 = vld [vmem:[%s0 + $0x10] sm:$0xff]
  %v18 = vld [vmem:[%s0 + $0x18] sm:$0xff]
  %v19 = vld [vmem:[%s0 + $0x20] sm:$0xff]
  %v20 = vld [vmem:[%s1] sm:$0xf]
  %v21 = vld [vmem:[%s1 + $0x4] sm:$0xf]
  %v22 = vld [vmem:[%s1 + $0x8] sm:$0xf]
  %v23 = vld [vmem:[%s1 + $0xc] sm:$0xf]
  %v24 = vld [vmem:[%s1 + $0x10] sm:$0xf]
  %v25 = vld [vmem:[%s1 + $0x14] sm:$0xf]
  %v26 = vld [vmem:[%s1 + $0x18] sm:$0xf]
  %v27 = vld [vmem:[%s1 + $0x1c] sm:$0xf]
  %v28 = vld [vmem:[%s1 + $0x20] sm:$0xf]
  %v29 = vld [vmem:[%s1 + $0x24] sm:$0xf]
  %v30 = vld [vmem:[%s1 + $0x28] sm:$0xf]
  %v31 = vld [vmem:[%s1 + $0x2c] sm:$0xf]
  %v32 = vld [vmem:[%s1 + $0x30] sm:$0xf]
  %v33 = vld [vmem:[%s1 + $0x34] sm:$0xf]
  %v34 = vld [vmem:[%s1 + $0x38] sm:$0xf]
  %v35 = vld [vmem:[%s1 + $0x3c] sm:$0xf]
  %v36 = vld [vmem:[%s1 + $0x40] sm:$0xf]
  %v37 = vld [vmem:[%s1 + $0x44] sm:$0xf]
  %v38 = vld [vmem:[%s1 + $0x48] sm:$0xf]
  %v39 = vld [vmem:[%s1 + $0x4c] sm:$0xf]
  %v40 = vld [vmem:[%s1 + $0x50] sm:$0xf]
  %v41 = vld [vmem:[%s1 + $0x54] sm:$0xf]
  %v42 = vld [vmem:[%s1 + $0x58] sm:$0xf]
  %v43 = vld [vmem:[%s1 + $0x5c] sm:$0xf]
  %v44 = vld [vmem:[%s1 + $0x60] sm:$0xf]
  %v45 = vld [vmem:[%s1 + $0x64] sm:$0xf]
  %v46 = vld [vmem:[%s1 + $0x68] sm:$0xf]
  %v47 = vld [vmem:[%s1 + $0x6c] sm:$0xf]
  %v48 = vld [vmem:[%s1 + $0x70] sm:$0xf]
  %v49 = vld [vmem:[%s1 + $0x74] sm:$0xf]
  %v50 = vld [vmem:[%s1 + $0x78] sm:$0xf]
  %v51 = vld [vmem:[%s1 + $0x7c] sm:$0xf]
  %v52 = vld [vmem:[%s1 + $0x80] sm:$0xf]
  %v53 = vld [vmem:[%s1 + $0x84] sm:$0xf]
  %v54 = vld [vmem:[%s1 + $0x88] sm:$0xf]
  %v55 = vld [vmem:[%s1 + $0x8c] sm:$0xf]
  %v56 = vld [vmem:[%s1 + $0x90] sm:$0xf]
  %v57 = vld [vmem:[%s1 + $0x94] sm:$0xf]
  %v58 = vld [vmem:[%s1 + $0x98] sm:$0xf]
  %v59 = vld [vmem:[%s1 + $0x9c] sm:$0xf]
  %v60 = vld [vmem:[%s1 + $0xa0] sm:$0xf]
  %v61 = vld [vmem:[%s1 + $0xa4] sm:$0xf]
  %v62 = vld [vmem:[%s1 + $0xa8] sm:$0xf]
  %v63 = vld [vmem:[%s1 + $0xac] sm:$0xf]
  %v64 = vld [vmem:[%s1 + $0xb0] sm:$0xf]
  %v65 = vld [vmem:[%s1 + $0xb4] sm:$0xf]
  %v66 = vld [vmem:[%s1 + $0xb8] sm:$0xf]
  %v67 = vld [vmem:[%s1 + $0xbc] sm:$0xf]
  %v68 = vld [vmem:[%s1 + $0xc0] sm:$0xf]
  %v69 = vld [vmem:[%s1 + $0xc4] sm:$0xf]
  %v70 = vld [vmem:[%s1 + $0xc8] sm:$0xf]
  %v71 = vld [vmem:[%s1 + $0xcc] sm:$0xf]
  %v72 = vld [vmem:[%s1 + $0xd0] sm:$0xf]
  %v73 = vld [vmem:[%s1 + $0xd4] sm:$0xf]
  %v74 = vld [vmem:[%s1 + $0xd8] sm:$0xf]
  %v75 = vld [vmem:[%s1 + $0xdc] sm:$0xf]
  %v76 = vld [vmem:[%s1 + $0xe0] sm:$0xf]
  %v77 = vld [vmem:[%s1 + $0xe4] sm:$0xf]
  %v78 = vld [vmem:[%s1 + $0xe8] sm:$0xf]
  %v79 = vld [vmem:[%s1 + $0xec] sm:$0xf]
  %v80 = vld [vmem:[%s1 + $0xf0] sm:$0xf]
  %v81 = vld [vmem:[%s1 + $0xf4] sm:$0xf]
  %v82 = vld [vmem:[%s1 + $0xf8] sm:$0xf]
  %v83 = vld [vmem:[%s1 + $0xfc] sm:$0xf]
  %v84 = vld [vmem:[%s1 + $0x100] sm:$0xf]
  %v85 = vld [vmem:[%s1 + $0x104] sm:$0xf]
  %v86 = vld [vmem:[%s1 + $0x108] sm:$0xf]
  %v87 = vld [vmem:[%s1 + $0x10c] sm:$0xf]
  %v88 = vld [vmem:[%s1 + $0x110] sm:$0xf]
  %v89 = vld [vmem:[%s1 + $0x114] sm:$0xf]
  %v90 = vld [vmem:[%s1 + $0x118] sm:$0xf]
  %v91 = vld [vmem:[%s1 + $0x11c] sm:$0xf]
  %v92 = vld [vmem:[%s1 + $0x120] sm:$0xf]
  %v93 = vld [vmem:[%s1 + $0x124] sm:$0xf]
  %v94 = vld [vmem:[%s1 + $0x128] sm:$0xf]
  %v95 = vld [vmem:[%s1 + $0x12c] sm:$0xf]
  %v96 = vld [vmem:[%s1 + $0x130] sm:$0xf]
  %v97 = vld [vmem:[%s1 + $0x134] sm:$0xf]
  %v98 = vld [vmem:[%s1 + $0x138] sm:$0xf]
  %v99 = vld [vmem:[%s1 + $0x13c] sm:$0xf]
  %v100 = vld [vmem:[%s1 + $0x140] sm:$0xf]
  %v101 = vld [vmem:[%s1 + $0x144] sm:$0xf]
  %v102 = vld [vmem:[%s1 + $0x148] sm:$0xf]
  %v103 = vld [vmem:[%s1 + $0x14c] sm:$0xf]
  %v104 = vld [vmem:[%s1 + $0x150] sm:$0xf]
  %v105 = vld [vmem:[%s1 + $0x154] sm:$0xf]
  %v106 = vld [vmem:[%s1 + $0x158] sm:$0xf]
  %v107 = vld [vmem:[%s1 + $0x15c] sm:$0xf]
  %v108 = vld [vmem:[%s1 + $0x160] sm:$0xf]
  %v109 = vld [vmem:[%s1 + $0x164] sm:$0xf]
  %v110 = vld [vmem:[%s1 + $0x168] sm:$0xf]
  %v111 = vld [vmem:[%s1 + $0x16c] sm:$0xf]
  %v112 = vld [vmem:[%s1 + $0x170] sm:$0xf]
  %v113 = vld [vmem:[%s1 + $0x174] sm:$0xf]
  %v114 = vld [vmem:[%s1 + $0x178] sm:$0xf]
  %v115 = vld [vmem:[%s1 + $0x17c] sm:$0xf]
  %v116 = vld [vmem:[%s1 + $0x180] sm:$0xf]
  %v117 = vld [vmem:[%s1 + $0x184] sm:$0xf]
  %v118 = vld [vmem:[%s1 + $0x188] sm:$0xf]
  %v119 = vld [vmem:[%s1 + $0x18c] sm:$0xf]
  %v120 = vld [vmem:[%s1 + $0x190] sm:$0xf]
  %v121 = vld [vmem:[%s1 + $0x194] sm:$0xf]
  %v122 = vld [vmem:[%s1 + $0x198] sm:$0xf]
  %v123 = vld [vmem:[%s1 + $0x19c] sm:$0xf]
  %v124 = vld [vmem:[%s1 + $0x1a0] sm:$0xf]
  %v125 = vld [vmem:[%s1 + $0x1a4] sm:$0xf]
  %v126 = vld [vmem:[%s1 + $0x1a8] sm:$0xf]
  %v127 = vld [vmem:[%s1 + $0x1ac] sm:$0xf]
  %v128 = vld [vmem:[%s1 + $0x1b0] sm:$0xf]
  %v129 = vld [vmem:[%s1 + $0x1b4] sm:$0xf]
  %v130 = vld [vmem:[%s1 + $0x1b8] sm:$0xf]
  %v131 = vld [vmem:[%s1 + $0x1bc] sm:$0xf]
  %v132 = vld [vmem:[%s1 + $0x1c0] sm:$0xf]
  %v133 = vld [vmem:[%s1 + $0x1c4] sm:$0xf]
  %v134 = vld [vmem:[%s1 + $0x1c8] sm:$0xf]
  %v135 = vld [vmem:[%s1 + $0x1cc] sm:$0xf]
  %v136 = vld [vmem:[%s1 + $0x1d0] sm:$0xf]
  %v137 = vld [vmem:[%s1 + $0x1d4] sm:$0xf]
  %v138 = vld [vmem:[%s1 + $0x1d8] sm:$0xf]
  %v139 = vld [vmem:[%s1 + $0x1dc] sm:$0xf]
  %v140 = vld [vmem:[%s1 + $0x1e0] sm:$0xf]
  %v141 = vld [vmem:[%s1 + $0x1e4] sm:$0xf]
  %v142 = vld [vmem:[%s1 + $0x1e8] sm:$0xf]
  %v143 = vld [vmem:[%s1 + $0x1ec] sm:$0xf]
  %v144 = vld [vmem:[%s1 + $0x1f0] sm:$0xf]
  %v145 = vld [vmem:[%s1 + $0x1f4] sm:$0xf]
  %v146 = vld [vmem:[%s1 + $0x1f8] sm:$0xf]
  %v147 = vld [vmem:[%s1 + $0x1fc] sm:$0xf]
  %v148 = vld [vmem:[%s1 + $0x200] sm:$0xf]
  %v149 = vld [vmem:[%s1 + $0x204] sm:$0xf]
  %v150 = vld [vmem:[%s1 + $0x208] sm:$0xf]
  %v151 = vld [vmem:[%s1 + $0x20c] sm:$0xf]
  %v152 = vld [vmem:[%s1 + $0x210] sm:$0xf]
  %v153 = vld [vmem:[%s1 + $0x214] sm:$0xf]
  %v154 = vld [vmem:[%s1 + $0x218] sm:$0xf]
  %v155 = vld [vmem:[%s1 + $0x21c] sm:$0xf]
  %v156 = vld [vmem:[%s1 + $0x220] sm:$0xf]
  %v157 = vld [vmem:[%s1 + $0x224] sm:$0xf]
  %v158 = vld [vmem:[%s1 + $0x228] sm:$0xf]
  %v159 = vld [vmem:[%s1 + $0x22c] sm:$0xf]
  %v160 = vld [vmem:[%s1 + $0x230] sm:$0xf]
  %v161 = vld [vmem:[%s1 + $0x234] sm:$0xf]
  %v162 = vld [vmem:[%s1 + $0x238] sm:$0xf]
  %v163 = vld [vmem:[%s1 + $0x23c] sm:$0xf]
  %v164 = vld [vmem:[%s1 + $0x240] sm:$0xf]
  %v165 = vld [vmem:[%s1 + $0x244] sm:$0xf]
  %v166 = vld [vmem:[%s1 + $0x248] sm:$0xf]
  %v167 = vld [vmem:[%s1 + $0x24c] sm:$0xf]
  %v168 = vld [vmem:[%s1 + $0x250] sm:$0xf]
  %v169 = vld [vmem:[%s1 + $0x254] sm:$0xf]
  %v170 = vld [vmem:[%s1 + $0x258] sm:$0xf]
  %v171 = vld [vmem:[%s1 + $0x25c] sm:$0xf]
  %v172 = vld [vmem:[%s1 + $0x260] sm:$0xf]
  %v173 = vld [vmem:[%s1 + $0x264] sm:$0xf]
  %v174 = vld [vmem:[%s1 + $0x268] sm:$0xf]
  %v175 = vld [vmem:[%s1 + $0x26c] sm:$0xf]
  %v176 = vld [vmem:[%s1 + $0x270] sm:$0xf]
  %v177 = vld [vmem:[%s1 + $0x274] sm:$0xf]
  %v178 = vld [vmem:[%s1 + $0x278] sm:$0xf]
  %v179 = vld [vmem:[%s1 + $0x27c] sm:$0xf]
  %v180 = vld [vmem:[%s2] sm:$0x1]
  %v182 = vlaneseq
  %v183 = vshrl.u32 %v182, 7
  %v184 = vsub.s32 0, %v183
  %v185 = vrot.slane %v180, %v184
  %v192 = vunpack.c.l.b16 %v15
  %v193 = vunpack.c.h.b16 %v15
  %v194 = vunpack.c.l.b16 %v16
  %v195 = vunpack.c.h.b16 %v16
  %v196 = vunpack.c.l.b16 %v17
  %v197 = vunpack.c.h.b16 %v17
  %v198 = vunpack.c.l.b16 %v18
  %v199 = vunpack.c.h.b16 %v18
  %v200 = vunpack.c.l.b16 %v19
  %v201 = vunpack.c.h.b16 %v19
  %v202 = vpack.c.b16 %v192, %v192
  %v203 = vpack.c.b16 %v193, %v193
  %v204 = vpack.c.b16 %v194, %v194
  %v205 = vpack.c.b16 %v195, %v195
  %v206 = vpack.c.b16 %v196, %v196
  %v207 = vpack.c.b16 %v197, %v197
  %v208 = vpack.c.b16 %v198, %v198
  %v209 = vpack.c.b16 %v199, %v199
  %v210 = vpack.c.b16 %v200, %v200
  %v211 = vpack.c.b16 %v201, %v201
  %v382 = vunpack.c.l.b16 %v20
  %v383 = vunpack.c.l.b16 %v21
  %v384 = vunpack.c.l.b16 %v22
  %v385 = vunpack.c.l.b16 %v23
  %v386 = vunpack.c.l.b16 %v24
  %v387 = vunpack.c.l.b16 %v25
  %v388 = vunpack.c.l.b16 %v26
  %v389 = vunpack.c.l.b16 %v27
  %v390 = vunpack.c.l.b16 %v28
  %v391 = vunpack.c.l.b16 %v29
  %v392 = vunpack.c.l.b16 %v30
  %v393 = vunpack.c.l.b16 %v31
  %v394 = vunpack.c.l.b16 %v32
  %v395 = vunpack.c.l.b16 %v33
  %v396 = vunpack.c.l.b16 %v34
  %v397 = vunpack.c.l.b16 %v35
  %v398 = vunpack.c.l.b16 %v36
  %v399 = vunpack.c.l.b16 %v37
  %v400 = vunpack.c.l.b16 %v38
  %v401 = vunpack.c.l.b16 %v39
  %v402 = vunpack.c.l.b16 %v40
  %v403 = vunpack.c.l.b16 %v41
  %v404 = vunpack.c.l.b16 %v42
  %v405 = vunpack.c.l.b16 %v43
  %v406 = vunpack.c.l.b16 %v44
  %v407 = vunpack.c.l.b16 %v45
  %v408 = vunpack.c.l.b16 %v46
  %v409 = vunpack.c.l.b16 %v47
  %v410 = vunpack.c.l.b16 %v48
  %v411 = vunpack.c.l.b16 %v49
  %v412 = vunpack.c.l.b16 %v50
  %v413 = vunpack.c.l.b16 %v51
  %v414 = vunpack.c.l.b16 %v52
  %v415 = vunpack.c.l.b16 %v53
  %v416 = vunpack.c.l.b16 %v54
  %v417 = vunpack.c.l.b16 %v55
  %v418 = vunpack.c.l.b16 %v56
  %v419 = vunpack.c.l.b16 %v57
  %v420 = vunpack.c.l.b16 %v58
  %v421 = vunpack.c.l.b16 %v59
  %v422 = vunpack.c.l.b16 %v60
  %v423 = vunpack.c.l.b16 %v61
  %v424 = vunpack.c.l.b16 %v62
  %v425 = vunpack.c.l.b16 %v63
  %v426 = vunpack.c.l.b16 %v64
  %v427 = vunpack.c.l.b16 %v65
  %v428 = vunpack.c.l.b16 %v66
  %v429 = vunpack.c.l.b16 %v67
  %v430 = vunpack.c.l.b16 %v68
  %v431 = vunpack.c.l.b16 %v69
  %v432 = vunpack.c.l.b16 %v70
  %v433 = vunpack.c.l.b16 %v71
  %v434 = vunpack.c.l.b16 %v72
  %v435 = vunpack.c.l.b16 %v73
  %v436 = vunpack.c.l.b16 %v74
  %v437 = vunpack.c.l.b16 %v75
  %v438 = vunpack.c.l.b16 %v76
  %v439 = vunpack.c.l.b16 %v77
  %v440 = vunpack.c.l.b16 %v78
  %v441 = vunpack.c.l.b16 %v79
  %v442 = vunpack.c.l.b16 %v80
  %v443 = vunpack.c.l.b16 %v81
  %v444 = vunpack.c.l.b16 %v82
  %v445 = vunpack.c.l.b16 %v83
  %v446 = vunpack.c.l.b16 %v84
  %v447 = vunpack.c.l.b16 %v85
  %v448 = vunpack.c.l.b16 %v86
  %v449 = vunpack.c.l.b16 %v87
  %v450 = vunpack.c.l.b16 %v88
  %v451 = vunpack.c.l.b16 %v89
  %v452 = vunpack.c.l.b16 %v90
  %v453 = vunpack.c.l.b16 %v91
  %v454 = vunpack.c.l.b16 %v92
  %v455 = vunpack.c.l.b16 %v93
  %v456 = vunpack.c.l.b16 %v94
  %v457 = vunpack.c.l.b16 %v95
  %v458 = vunpack.c.l.b16 %v96
  %v459 = vunpack.c.l.b16 %v97
  %v460 = vunpack.c.l.b16 %v98
  %v461 = vunpack.c.l.b16 %v99
  %v462 = vunpack.c.l.b16 %v100
  %v463 = vunpack.c.l.b16 %v101
  %v464 = vunpack.c.l.b16 %v102
  %v465 = vunpack.c.l.b16 %v103
  %v466 = vunpack.c.l.b16 %v104
  %v467 = vunpack.c.l.b16 %v105
  %v468 = vunpack.c.l.b16 %v106
  %v469 = vunpack.c.l.b16 %v107
  %v470 = vunpack.c.l.b16 %v108
  %v471 = vunpack.c.l.b16 %v109
  %v472 = vunpack.c.l.b16 %v110
  %v473 = vunpack.c.l.b16 %v111
  %v474 = vunpack.c.l.b16 %v112
  %v475 = vunpack.c.l.b16 %v113
  %v476 = vunpack.c.l.b16 %v114
  %v477 = vunpack.c.l.b16 %v115
  %v478 = vunpack.c.l.b16 %v116
  %v479 = vunpack.c.l.b16 %v117
  %v480 = vunpack.c.l.b16 %v118
  %v481 = vunpack.c.l.b16 %v119
  %v482 = vunpack.c.l.b16 %v120
  %v483 = vunpack.c.l.b16 %v121
  %v484 = vunpack.c.l.b16 %v122
  %v485 = vunpack.c.l.b16 %v123
  %v486 = vunpack.c.l.b16 %v124
  %v487 = vunpack.c.l.b16 %v125
  %v488 = vunpack.c.l.b16 %v126
  %v489 = vunpack.c.l.b16 %v127
  %v490 = vunpack.c.l.b16 %v128
  %v491 = vunpack.c.l.b16 %v129
  %v492 = vunpack.c.l.b16 %v130
  %v493 = vunpack.c.l.b16 %v131
  %v494 = vunpack.c.l.b16 %v132
  %v495 = vunpack.c.l.b16 %v133
  %v496 = vunpack.c.l.b16 %v134
  %v497 = vunpack.c.l.b16 %v135
  %v498 = vunpack.c.l.b16 %v136
  %v499 = vunpack.c.l.b16 %v137
  %v500 = vunpack.c.l.b16 %v138
  %v501 = vunpack.c.l.b16 %v139
  %v502 = vunpack.c.l.b16 %v140
  %v503 = vunpack.c.l.b16 %v141
  %v504 = vunpack.c.l.b16 %v142
  %v505 = vunpack.c.l.b16 %v143
  %v506 = vunpack.c.l.b16 %v144
  %v507 = vunpack.c.l.b16 %v145
  %v508 = vunpack.c.l.b16 %v146
  %v509 = vunpack.c.l.b16 %v147
  %v510 = vunpack.c.l.b16 %v148
  %v511 = vunpack.c.l.b16 %v149
  %v512 = vunpack.c.l.b16 %v150
  %v513 = vunpack.c.l.b16 %v151
  %v514 = vunpack.c.l.b16 %v152
  %v515 = vunpack.c.l.b16 %v153
  %v516 = vunpack.c.l.b16 %v154
  %v517 = vunpack.c.l.b16 %v155
  %v518 = vunpack.c.l.b16 %v156
  %v519 = vunpack.c.l.b16 %v157
  %v520 = vunpack.c.l.b16 %v158
  %v521 = vunpack.c.l.b16 %v159
  %v522 = vunpack.c.l.b16 %v160
  %v523 = vunpack.c.l.b16 %v161
  %v524 = vunpack.c.l.b16 %v162
  %v525 = vunpack.c.l.b16 %v163
  %v526 = vunpack.c.l.b16 %v164
  %v527 = vunpack.c.l.b16 %v165
  %v528 = vunpack.c.l.b16 %v166
  %v529 = vunpack.c.l.b16 %v167
  %v530 = vunpack.c.l.b16 %v168
  %v531 = vunpack.c.l.b16 %v169
  %v532 = vunpack.c.l.b16 %v170
  %v533 = vunpack.c.l.b16 %v171
  %v534 = vunpack.c.l.b16 %v172
  %v535 = vunpack.c.l.b16 %v173
  %v536 = vunpack.c.l.b16 %v174
  %v537 = vunpack.c.l.b16 %v175
  %v538 = vunpack.c.l.b16 %v176
  %v539 = vunpack.c.l.b16 %v177
  %v540 = vunpack.c.l.b16 %v178
  %v541 = vunpack.c.l.b16 %v179
  %v542 = vpack.c.b16 %v383, %v382
  %v543 = vpack.c.b16 %v385, %v384
  %v544 = vpack.c.b16 %v387, %v386
  %v545 = vpack.c.b16 %v389, %v388
  %v546 = vpack.c.b16 %v391, %v390
  %v547 = vpack.c.b16 %v393, %v392
  %v548 = vpack.c.b16 %v395, %v394
  %v549 = vpack.c.b16 %v397, %v396
  %v550 = vpack.c.b16 %v399, %v398
  %v551 = vpack.c.b16 %v401, %v400
  %v552 = vpack.c.b16 %v403, %v402
  %v553 = vpack.c.b16 %v405, %v404
  %v554 = vpack.c.b16 %v407, %v406
  %v555 = vpack.c.b16 %v409, %v408
  %v556 = vpack.c.b16 %v411, %v410
  %v557 = vpack.c.b16 %v413, %v412
  %v558 = vpack.c.b16 %v415, %v414
  %v559 = vpack.c.b16 %v417, %v416
  %v560 = vpack.c.b16 %v419, %v418
  %v561 = vpack.c.b16 %v421, %v420
  %v562 = vpack.c.b16 %v423, %v422
  %v563 = vpack.c.b16 %v425, %v424
  %v564 = vpack.c.b16 %v427, %v426
  %v565 = vpack.c.b16 %v429, %v428
  %v566 = vpack.c.b16 %v431, %v430
  %v567 = vpack.c.b16 %v433, %v432
  %v568 = vpack.c.b16 %v435, %v434
  %v569 = vpack.c.b16 %v437, %v436
  %v570 = vpack.c.b16 %v439, %v438
  %v571 = vpack.c.b16 %v441, %v440
  %v572 = vpack.c.b16 %v443, %v442
  %v573 = vpack.c.b16 %v445, %v444
  %v574 = vpack.c.b16 %v447, %v446
  %v575 = vpack.c.b16 %v449, %v448
  %v576 = vpack.c.b16 %v451, %v450
  %v577 = vpack.c.b16 %v453, %v452
  %v578 = vpack.c.b16 %v455, %v454
  %v579 = vpack.c.b16 %v457, %v456
  %v580 = vpack.c.b16 %v459, %v458
  %v581 = vpack.c.b16 %v461, %v460
  %v582 = vpack.c.b16 %v463, %v462
  %v583 = vpack.c.b16 %v465, %v464
  %v584 = vpack.c.b16 %v467, %v466
  %v585 = vpack.c.b16 %v469, %v468
  %v586 = vpack.c.b16 %v471, %v470
  %v587 = vpack.c.b16 %v473, %v472
  %v588 = vpack.c.b16 %v475, %v474
  %v589 = vpack.c.b16 %v477, %v476
  %v590 = vpack.c.b16 %v479, %v478
  %v591 = vpack.c.b16 %v481, %v480
  %v592 = vpack.c.b16 %v483, %v482
  %v593 = vpack.c.b16 %v485, %v484
  %v594 = vpack.c.b16 %v487, %v486
  %v595 = vpack.c.b16 %v489, %v488
  %v596 = vpack.c.b16 %v491, %v490
  %v597 = vpack.c.b16 %v493, %v492
  %v598 = vpack.c.b16 %v495, %v494
  %v599 = vpack.c.b16 %v497, %v496
  %v600 = vpack.c.b16 %v499, %v498
  %v601 = vpack.c.b16 %v501, %v500
  %v602 = vpack.c.b16 %v503, %v502
  %v603 = vpack.c.b16 %v505, %v504
  %v604 = vpack.c.b16 %v507, %v506
  %v605 = vpack.c.b16 %v509, %v508
  %v606 = vpack.c.b16 %v511, %v510
  %v607 = vpack.c.b16 %v513, %v512
  %v608 = vpack.c.b16 %v515, %v514
  %v609 = vpack.c.b16 %v517, %v516
  %v610 = vpack.c.b16 %v519, %v518
  %v611 = vpack.c.b16 %v521, %v520
  %v612 = vpack.c.b16 %v523, %v522
  %v613 = vpack.c.b16 %v525, %v524
  %v614 = vpack.c.b16 %v527, %v526
  %v615 = vpack.c.b16 %v529, %v528
  %v616 = vpack.c.b16 %v531, %v530
  %v617 = vpack.c.b16 %v533, %v532
  %v618 = vpack.c.b16 %v535, %v534
  %v619 = vpack.c.b16 %v537, %v536
  %v620 = vpack.c.b16 %v539, %v538
  %v621 = vpack.c.b16 %v541, %v540
  %702 = vmatprep.subr.bf16.mxu0 0
  %703 = vmatpush1.bf16.msra.mxu0 %v542
  %704 = vmatprep.subr.bf16.mxu0 0
  %705 = vmatpush1.bf16.msra.mxu0 %v543
  %706 = vmatprep.subr.bf16.mxu0 0
  %707 = vmatpush1.bf16.msra.mxu0 %v544
  %708 = vmatprep.subr.bf16.mxu0 0
  %709 = vmatpush1.bf16.msra.mxu0 %v545
  %710 = vmatprep.subr.bf16.mxu0 0
  %711 = vmatpush1.bf16.msra.mxu0 %v546
  %712 = vmatprep.subr.bf16.mxu0 0
  %713 = vmatpush1.bf16.msra.mxu0 %v547
  %714 = vmatprep.subr.bf16.mxu0 0
  %715 = vmatpush1.bf16.msra.mxu0 %v548
  %716 = vmatprep.subr.bf16.mxu0 0
  %717 = vmatpush1.bf16.msra.mxu0 %v549
  %718 = vmatprep.subr.bf16.mxu0 0
  %719 = vmatpush1.bf16.msra.mxu0 %v550
  %720 = vmatprep.subr.bf16.mxu0 0
  %721 = vmatpush1.bf16.msra.mxu0 %v551
  %722 = vmatprep.subr.bf16.mxu0 0
  %723 = vmatpush1.bf16.msra.mxu0 %v552
  %724 = vmatprep.subr.bf16.mxu0 0
  %725 = vmatpush1.bf16.msra.mxu0 %v553
  %726 = vmatprep.subr.bf16.mxu0 0
  %727 = vmatpush1.bf16.msra.mxu0 %v554
  %728 = vmatprep.subr.bf16.mxu0 0
  %729 = vmatpush1.bf16.msra.mxu0 %v555
  %730 = vmatprep.subr.bf16.mxu0 0
  %731 = vmatpush1.bf16.msra.mxu0 %v556
  %732 = vmatprep.subr.bf16.mxu0 0
  %733 = vmatpush1.bf16.msra.mxu0 %v557
  %734 = vmatprep.mubr.bf16.mxu0 %v203
  %735 = vmatmul.mubr.bf16.gmra.mrb[0].mxu0 %v202
  %v736 = vpop.f32.mrb[0].mxu0
  %v737 = vadd.f32 %v185, %v736
  %v738 = vpop.f32.mrb[0].mxu0
  %v739 = vpop.f32.mrb[0].mxu0
  %v740 = vpop.f32.mrb[0].mxu0
  %741 = vdwg.mxu0
  %742 = vmatprep.subr.bf16.mxu0 0
  %743 = vmatpush1.bf16.msra.mxu0 %v558
  %744 = vmatprep.subr.bf16.mxu0 0
  %745 = vmatpush1.bf16.msra.mxu0 %v559
  %746 = vmatprep.subr.bf16.mxu0 0
  %747 = vmatpush1.bf16.msra.mxu0 %v560
  %748 = vmatprep.subr.bf16.mxu0 0
  %749 = vmatpush1.bf16.msra.mxu0 %v561
  %750 = vmatprep.subr.bf16.mxu0 0
  %751 = vmatpush1.bf16.msra.mxu0 %v562
  %752 = vmatprep.subr.bf16.mxu0 0
  %753 = vmatpush1.bf16.msra.mxu0 %v563
  %754 = vmatprep.subr.bf16.mxu0 0
  %755 = vmatpush1.bf16.msra.mxu0 %v564
  %756 = vmatprep.subr.bf16.mxu0 0
  %757 = vmatpush1.bf16.msra.mxu0 %v565
  %758 = vmatprep.subr.bf16.mxu0 0
  %759 = vmatpush1.bf16.msra.mxu0 %v566
  %760 = vmatprep.subr.bf16.mxu0 0
  %761 = vmatpush1.bf16.msra.mxu0 %v567
  %762 = vmatprep.subr.bf16.mxu0 0
  %763 = vmatpush1.bf16.msra.mxu0 %v568
  %764 = vmatprep.subr.bf16.mxu0 0
  %765 = vmatpush1.bf16.msra.mxu0 %v569
  %766 = vmatprep.subr.bf16.mxu0 0
  %767 = vmatpush1.bf16.msra.mxu0 %v570
  %768 = vmatprep.subr.bf16.mxu0 0
  %769 = vmatpush1.bf16.msra.mxu0 %v571
  %770 = vmatprep.subr.bf16.mxu0 0
  %771 = vmatpush1.bf16.msra.mxu0 %v572
  %772 = vmatprep.subr.bf16.mxu0 0
  %773 = vmatpush1.bf16.msra.mxu0 %v573
  %774 = vmatprep.mubr.bf16.mxu0 %v205
  %775 = vmatmul.mubr.bf16.gmra.mrb[0].mxu0 %v204
  %v776 = vpop.f32.mrb[0].mxu0
  %v777 = vadd.f32 %v737, %v776
  %v778 = vpop.f32.mrb[0].mxu0
  %v779 = vpop.f32.mrb[0].mxu0
  %v780 = vpop.f32.mrb[0].mxu0
  %781 = vdwg.mxu0
  %782 = vmatprep.subr.bf16.mxu0 0
  %783 = vmatpush1.bf16.msra.mxu0 %v574
  %784 = vmatprep.subr.bf16.mxu0 0
  %785 = vmatpush1.bf16.msra.mxu0 %v575
  %786 = vmatprep.subr.bf16.mxu0 0
  %787 = vmatpush1.bf16.msra.mxu0 %v576
  %788 = vmatprep.subr.bf16.mxu0 0
  %789 = vmatpush1.bf16.msra.mxu0 %v577
  %790 = vmatprep.subr.bf16.mxu0 0
  %791 = vmatpush1.bf16.msra.mxu0 %v578
  %792 = vmatprep.subr.bf16.mxu0 0
  %793 = vmatpush1.bf16.msra.mxu0 %v579
  %794 = vmatprep.subr.bf16.mxu0 0
  %795 = vmatpush1.bf16.msra.mxu0 %v580
  %796 = vmatprep.subr.bf16.mxu0 0
  %797 = vmatpush1.bf16.msra.mxu0 %v581
  %798 = vmatprep.subr.bf16.mxu0 0
  %799 = vmatpush1.bf16.msra.mxu0 %v582
  %800 = vmatprep.subr.bf16.mxu0 0
  %801 = vmatpush1.bf16.msra.mxu0 %v583
  %802 = vmatprep.subr.bf16.mxu0 0
  %803 = vmatpush1.bf16.msra.mxu0 %v584
  %804 = vmatprep.subr.bf16.mxu0 0
  %805 = vmatpush1.bf16.msra.mxu0 %v585
  %806 = vmatprep.subr.bf16.mxu0 0
  %807 = vmatpush1.bf16.msra.mxu0 %v586
  %808 = vmatprep.subr.bf16.mxu0 0
  %809 = vmatpush1.bf16.msra.mxu0 %v587
  %810 = vmatprep.subr.bf16.mxu0 0
  %811 = vmatpush1.bf16.msra.mxu0 %v588
  %812 = vmatprep.subr.bf16.mxu0 0
  %813 = vmatpush1.bf16.msra.mxu0 %v589
  %814 = vmatprep.mubr.bf16.mxu0 %v207
  %815 = vmatmul.mubr.bf16.gmra.mrb[0].mxu0 %v206
  %v816 = vpop.f32.mrb[0].mxu0
  %v817 = vadd.f32 %v777, %v816
  %v818 = vpop.f32.mrb[0].mxu0
  %v819 = vpop.f32.mrb[0].mxu0
  %v820 = vpop.f32.mrb[0].mxu0
  %821 = vdwg.mxu0
  %822 = vmatprep.subr.bf16.mxu0 0
  %823 = vmatpush1.bf16.msra.mxu0 %v590
  %824 = vmatprep.subr.bf16.mxu0 0
  %825 = vmatpush1.bf16.msra.mxu0 %v591
  %826 = vmatprep.subr.bf16.mxu0 0
  %827 = vmatpush1.bf16.msra.mxu0 %v592
  %828 = vmatprep.subr.bf16.mxu0 0
  %829 = vmatpush1.bf16.msra.mxu0 %v593
  %830 = vmatprep.subr.bf16.mxu0 0
  %831 = vmatpush1.bf16.msra.mxu0 %v594
  %832 = vmatprep.subr.bf16.mxu0 0
  %833 = vmatpush1.bf16.msra.mxu0 %v595
  %834 = vmatprep.subr.bf16.mxu0 0
  %835 = vmatpush1.bf16.msra.mxu0 %v596
  %836 = vmatprep.subr.bf16.mxu0 0
  %837 = vmatpush1.bf16.msra.mxu0 %v597
  %838 = vmatprep.subr.bf16.mxu0 0
  %839 = vmatpush1.bf16.msra.mxu0 %v598
  %840 = vmatprep.subr.bf16.mxu0 0
  %841 = vmatpush1.bf16.msra.mxu0 %v599
  %842 = vmatprep.subr.bf16.mxu0 0
  %843 = vmatpush1.bf16.msra.mxu0 %v600
  %844 = vmatprep.subr.bf16.mxu0 0
  %845 = vmatpush1.bf16.msra.mxu0 %v601
  %846 = vmatprep.subr.bf16.mxu0 0
  %847 = vmatpush1.bf16.msra.mxu0 %v602
  %848 = vmatprep.subr.bf16.mxu0 0
  %849 = vmatpush1.bf16.msra.mxu0 %v603
  %850 = vmatprep.subr.bf16.mxu0 0
  %851 = vmatpush1.bf16.msra.mxu0 %v604
  %852 = vmatprep.subr.bf16.mxu0 0
  %853 = vmatpush1.bf16.msra.mxu0 %v605
  %854 = vmatprep.mubr.bf16.mxu0 %v209
  %855 = vmatmul.mubr.bf16.gmra.mrb[0].mxu0 %v208
  %v856 = vpop.f32.mrb[0].mxu0
  %v857 = vadd.f32 %v817, %v856
  %v858 = vpop.f32.mrb[0].mxu0
  %v859 = vpop.f32.mrb[0].mxu0
  %v860 = vpop.f32.mrb[0].mxu0
  %861 = vdwg.mxu0
  %862 = vmatprep.subr.bf16.mxu0 0
  %863 = vmatpush1.bf16.msra.mxu0 %v606
  %864 = vmatprep.subr.bf16.mxu0 0
  %865 = vmatpush1.bf16.msra.mxu0 %v607
  %866 = vmatprep.subr.bf16.mxu0 0
  %867 = vmatpush1.bf16.msra.mxu0 %v608
  %868 = vmatprep.subr.bf16.mxu0 0
  %869 = vmatpush1.bf16.msra.mxu0 %v609
  %870 = vmatprep.subr.bf16.mxu0 0
  %871 = vmatpush1.bf16.msra.mxu0 %v610
  %872 = vmatprep.subr.bf16.mxu0 0
  %873 = vmatpush1.bf16.msra.mxu0 %v611
  %874 = vmatprep.subr.bf16.mxu0 0
  %875 = vmatpush1.bf16.msra.mxu0 %v612
  %876 = vmatprep.subr.bf16.mxu0 0
  %877 = vmatpush1.bf16.msra.mxu0 %v613
  %878 = vmatprep.subr.bf16.mxu0 0
  %879 = vmatpush1.bf16.msra.mxu0 %v614
  %880 = vmatprep.subr.bf16.mxu0 0
  %881 = vmatpush1.bf16.msra.mxu0 %v615
  %882 = vmatprep.subr.bf16.mxu0 0
  %883 = vmatpush1.bf16.msra.mxu0 %v616
  %884 = vmatprep.subr.bf16.mxu0 0
  %885 = vmatpush1.bf16.msra.mxu0 %v617
  %886 = vmatprep.subr.bf16.mxu0 0
  %887 = vmatpush1.bf16.msra.mxu0 %v618
  %888 = vmatprep.subr.bf16.mxu0 0
  %889 = vmatpush1.bf16.msra.mxu0 %v619
  %890 = vmatprep.subr.bf16.mxu0 0
  %891 = vmatpush1.bf16.msra.mxu0 %v620
  %892 = vmatprep.subr.bf16.mxu0 0
  %893 = vmatpush1.bf16.msra.mxu0 %v621
  %894 = vmatprep.mubr.bf16.mxu0 %v211
  %895 = vmatmul.mubr.bf16.gmra.mrb[0].mxu0 %v210
  %v896 = vpop.f32.mrb[0].mxu0
  %v897 = vadd.f32 %v857, %v896
  %v898 = vpop.f32.mrb[0].mxu0
  %v899 = vpop.f32.mrb[0].mxu0
  %v900 = vpop.f32.mrb[0].mxu0
  %901 = vdwg.mxu0
  %vm902 = vcmask 23552
  %903 = vst.msk [vmem:[%s3] sm:$0xff] %vm902, %v897
  // Predicated region
  $region14: #{my_dsp_net_forward.7} parent=0 // pred_check
    _
  $region15: #{my_dsp_net_forward.7} parent=0 // pred_check_branch
    %905 = sbr.rel (0) target = $region17
  $region16: #{my_dsp_net_forward.7} parent=0 // pred_region
    _
  $region17: #{my_dsp_net_forward.7} parent=0 // pred_fallthru
    _
  // Predicated region
  $region18: #{my_dsp_net_forward.7} parent=0 // pred_check
    _
  $region19: #{my_dsp_net_forward.7} parent=0 // pred_check_branch
    %907 = sbr.rel (0) target = $region21
  $region20: #{my_dsp_net_forward.7} parent=0 // pred_region
    _
  $region21: #{my_dsp_net_forward.7} parent=0 // pred_fallthru
    _

</llo_original>
